<compile_context>
chip_gen: v5e
topology: v5e:2x2
jax: 0.10.0
libtpu: 0.0.40
codegen_flags: <defaults>
</compile_context>

<pallas_src>
import functools

import jax
import jax.numpy as jnp
from jax import lax
from jax.experimental import pallas as pl
from jax.experimental.pallas import tpu as pltpu

_TILE_B = 256     # max images per grid step (multiple of 16)
_R1 = 12          # conv1 output rows/cols consumed by conv2 (row/col 12 unused)
_KU = 256         # unfolded-row lane width: 8 tap rows x 32 padded columns
_C1 = 16          # conv1 out channels
_C2 = 32          # conv2 out channels
_N1 = _R1 * _C1   # 192 conv1 lanes per output row: (iw, c1)
_N2 = 5 * _C2     # 160 conv2 lanes per output row: (ow, c2)
_NOUT = 128       # fc2 output padded to a full lane tile (10 -> 128)


def _round_up(a, m):
    return (a + m - 1) // m * m


# ----------------------------- fused Pallas kernel ---------------------------

def _fused_convnet_kernel(xu_ref, w1_ref, b1_ref, w2_ref, b2_ref,
                          w3_ref, b3_ref, w4_ref, b4_ref, o_ref, *, tb):
    """conv1+tanh -> conv2+tanh -> fc1+tanh -> fc2 for one batch tile.

    xu_ref: (12*tb, 256) bf16  rows=(conv1 out-row ih, image), lanes=(tap row di, padded col j)
    w1_ref: (256, 192)   bf16  column-banded conv1 weight, cols=(iw, c1)
    w2_ref: (768, 160)   bf16  rows=(di, iw, c1) column-banded over (ow, c2)
    w3_ref: (800, 32)    bf16  rows=(oh, ow, c2) -- torch (C,H,W) flatten folded in
    o_ref : (tb, 128)    f32   fc2 logits (lanes 10..127 are zero padding)
    """
    # conv1 (+bias, tanh): ONE MXU matmul for all 12 used output rows.
    a1 = jnp.dot(xu_ref[...], w1_ref[...], preferred_element_type=jnp.float32)
    h1 = jnp.tanh((a1 + b1_ref[...]).astype(jnp.bfloat16))        # (12*tb, 192)

    # Hoisted, re-used operands (no broadcasts / weight loads inside loops).
    w2 = w2_ref[...]                                              # (768, 160)
    w3 = w3_ref[...]                                              # (800, 32)
    b2 = jnp.zeros((tb, _N2), jnp.float32) + b2_ref[...]          # (tb, 160)
    fc1 = jnp.zeros((tb, _C2), jnp.float32) + b3_ref[...]         # (tb, 32)

    # conv2 (+tanh) fused with the fc1 contraction, one output row oh at a
    # time.  LHS slices are full 192-lane row blocks at tb-aligned row
    # offsets; the five ow windows live in the banded weight -> no lane work.
    for oh in range(5):
        acc = b2
        for di in range(4):
            r = 2 * oh + di
            acc = acc + jnp.dot(h1[r * tb:(r + 1) * tb, :],
                                w2[di * _N1:(di + 1) * _N1, :],
                                preferred_element_type=jnp.float32)
        h2 = jnp.tanh(acc.astype(jnp.bfloat16))                    # (tb, 160)
        fc1 = fc1 + jnp.dot(h2, w3[oh * _N2:(oh + 1) * _N2, :],
                            preferred_element_type=jnp.float32)

    h3 = jnp.tanh(fc1.astype(jnp.bfloat16))                        # (tb, 32)
    out = jnp.dot(h3, w4_ref[...], preferred_element_type=jnp.float32)
    o_ref[...] = out + b4_ref[...]                                 # lane-dense (tb, 128)


# --------------------------------- wrapper -----------------------------------

def _unfold_rows(x_pad, num_tiles, tb):
    """(n_pad, 32, 32) bf16 -> (num_tiles*12*tb, 256) bf16 row-unfolded input.

    Row = (tile, conv1 out-row ih, image); lane = (tap row di, padded col j),
    value = x_pad[b, 2*ih + di, j].  Only 3x inflation (vs 9x full im2col).
    """
    rows = [lax.slice_in_dim(x_pad, 2 * ih, 2 * ih + 8, axis=1)    # (n_pad, 8, 32)
            for ih in range(_R1)]
    xu = jnp.stack(rows, axis=1)                                   # (n_pad, 12, 8, 32)
    xu = xu.reshape(num_tiles, tb, _R1, _KU)
    xu = xu.transpose(0, 2, 1, 3)                                  # (tiles, ih, b, 256)
    return xu.reshape(num_tiles * _R1 * tb, _KU)


@jax.jit
def convnet_forward(x, params):
    # x.view(-1, 1, 28, 28); C == 1 so keep (N, 28, 28).  bf16 feeds the MXU,
    # so cast before padding/unfolding (halves wrapper HBM traffic).
    x = x.reshape(-1, 28, 28).astype(jnp.bfloat16)
    n = x.shape[0]
    n16 = _round_up(n, 16)
    if n16 <= 16:
        tb = 16
    else:
        # >= 2 tiles whenever possible so both v7x TensorCores get work.
        tb = min(_TILE_B, _round_up(n16 // 2, 16))
    n_pad = _round_up(n16, tb)
    num_tiles = n_pad // tb

    # XLA glue: batch pad + conv1 spatial pad (=2) + row unfold.
    x_pad = jnp.pad(x, ((0, n_pad - n), (2, 2), (2, 2)))
    xu = _unfold_rows(x_pad, num_tiles, tb)

    # ---- one-time weight re-layouts (a few KB; banding/permutations folded) ----
    # conv1: column-banded W1, (di*32 + j, iw*16 + c) = W1[c, di, j - 2*iw].
    w1t = jnp.transpose(params["w1"].reshape(_C1, 8, 8), (1, 2, 0))      # (di, dj, c)
    B1 = jnp.zeros((8, 32, _R1, _C1), jnp.float32)
    for iw in range(_R1):
        B1 = B1.at[:, 2 * iw:2 * iw + 8, iw, :].set(w1t)
    w1b = B1.reshape(_KU, _N1).astype(jnp.bfloat16)                      # (256, 192)
    b1 = jnp.tile(params["b1"].reshape(1, _C1), (1, _R1)).astype(jnp.float32)

    # conv2: per-di row block, column-banded over (ow, c2):
    # (di*192 + iw*16 + ci, ow*32 + c2) = W2[c2, ci, di, iw - 2*ow].
    w2t = jnp.transpose(params["w2"], (2, 3, 1, 0))                      # (di, dj, ci, c2)
    B2 = jnp.zeros((4, _R1, _C1, 5, _C2), jnp.float32)
    for ow in range(5):
        B2 = B2.at[:, 2 * ow:2 * ow + 4, :, ow, :].set(w2t)
    w2b = B2.reshape(4 * _N1, _N2).astype(jnp.bfloat16)                  # (768, 160)
    b2 = jnp.tile(params["b2"].reshape(1, _C2), (1, 5)).astype(jnp.float32)

    # fc1: fold torch.flatten's (C,H,W) row order c*25+h*5+w into (oh, ow, c2)
    # row blocks stacked along K:  row = oh*160 + ow*32 + c2.
    w3b = jnp.transpose(params["w3"].reshape(_C2, 5, 5, _C2), (1, 2, 0, 3))
    w3b = w3b.reshape(25 * _C2, _C2).astype(jnp.bfloat16)                # (800, 32)
    b3 = params["b3"].reshape(1, _C2).astype(jnp.float32)

    # fc2: lane-pad 10 -> 128 for unmasked lane-dense stores.
    w4 = jnp.zeros((_C2, _NOUT), jnp.bfloat16).at[:, :10].set(
        params["w4"].astype(jnp.bfloat16))
    b4 = jnp.zeros((1, _NOUT), jnp.float32).at[0, :10].set(
        params["b4"].astype(jnp.float32))

    flops = int(n_pad * 2 * (_R1 * _KU * _N1        # conv1 banded matmul
                             + 20 * _N1 * _N2       # conv2: 5 oh x 4 di
                             + 5 * _N2 * _C2        # fc1
                             + _C2 * _NOUT))        # fc2
    transcendentals = int(n_pad * (_R1 * _N1 + 25 * _C2 + _C2))
    bytes_accessed = int(n_pad * (_R1 * _KU * 2 + _NOUT * 4)
                         + (w1b.size + w2b.size + w3b.size + w4.size) * 2
                         + (b1.size + b2.size + b3.size + b4.size) * 4)

    kernel = functools.partial(_fused_convnet_kernel, tb=tb)
    out = pl.pallas_call(
        kernel,
        out_shape=jax.ShapeDtypeStruct((n_pad, _NOUT), jnp.float32),
        grid=(num_tiles,),
        in_specs=[
            pl.BlockSpec((_R1 * tb, _KU), lambda i: (i, 0)),     # unfolded rows (tiled)
            pl.BlockSpec((_KU, _N1), lambda i: (0, 0)),          # w1 banded (resident)
            pl.BlockSpec((1, _N1), lambda i: (0, 0)),            # b1
            pl.BlockSpec((4 * _N1, _N2), lambda i: (0, 0)),      # w2 banded
            pl.BlockSpec((1, _N2), lambda i: (0, 0)),            # b2
            pl.BlockSpec((25 * _C2, _C2), lambda i: (0, 0)),     # w3 (perm folded)
            pl.BlockSpec((1, _C2), lambda i: (0, 0)),            # b3
            pl.BlockSpec((_C2, _NOUT), lambda i: (0, 0)),        # w4 (lane padded)
            pl.BlockSpec((1, _NOUT), lambda i: (0, 0)),          # b4
        ],
        out_specs=pl.BlockSpec((tb, _NOUT), lambda i: (i, 0)),
        compiler_params=pltpu.CompilerParams(
            dimension_semantics=("parallel",),
            vmem_limit_bytes=32 * 1024 * 1024),
        cost_estimate=pl.CostEstimate(
            flops=flops, transcendentals=transcendentals,
            bytes_accessed=bytes_accessed),
    )(xu, w1b, b1, w2b, b2, w3b, b3, w4, b4)

    return out[:n, :10]


# ----------------------------- params / reference ----------------------------

def init_params(key):
    ks = jax.random.split(key, 8)

    def uni(k, shape, fan_in):
        bound = 1.0 / jnp.sqrt(fan_in)
        return jax.random.uniform(k, shape, jnp.float32, -bound, bound)

    return {
        # conv1: Conv2d(1, 16, 8, stride=2, padding=2)
        "w1": uni(ks[0], (16, 1, 8, 8), 1 * 8 * 8),
        "b1": uni(ks[1], (16,), 1 * 8 * 8),
        # conv2: Conv2d(16, 32, 4, stride=2, padding=0)
        "w2": uni(ks[2], (32, 16, 4, 4), 16 * 4 * 4),
        "b2": uni(ks[3], (32,), 16 * 4 * 4),
        # fc1: Linear(32*5*5, 32)  (stored (in, out); rows in torch (C,H,W) order)
        "w3": uni(ks[4], (32 * 5 * 5, 32), 32 * 5 * 5),
        "b3": uni(ks[5], (32,), 32 * 5 * 5),
        # fc2: Linear(32, 10)
        "w4": uni(ks[6], (32, 10), 32),
        "b4": uni(ks[7], (10,), 32),
    }


def reference_forward(x, params):
    """Pure-JAX reference with PyTorch semantics (for validation only)."""
    x = x.reshape(-1, 1, 28, 28).astype(jnp.float32)
    y = lax.conv_general_dilated(x, params["w1"], (2, 2), ((2, 2), (2, 2)),
                                 dimension_numbers=("NCHW", "OIHW", "NCHW"))
    y = jnp.tanh(y + params["b1"].reshape(1, -1, 1, 1))
    # avg_pool2d(kernel_size=1) == identity
    y = lax.conv_general_dilated(y, params["w2"], (2, 2), ((0, 0), (0, 0)),
                                 dimension_numbers=("NCHW", "OIHW", "NCHW"))
    y = jnp.tanh(y + params["b2"].reshape(1, -1, 1, 1))
    y = y.reshape(y.shape[0], -1)                          # torch.flatten(x, 1)
    y = jnp.tanh(y @ params["w3"] + params["b3"])
    return y @ params["w4"] + params["b4"]


if __name__ == "__main__":
    key = jax.random.PRNGKey(0)
    k_x, k_p = jax.random.split(key)
    batch = 2
    x = jax.random.normal(k_x, (batch, 1, 28, 28), jnp.float32)
    params = init_params(k_p)

    out = convnet_forward(x, params)
    jax.block_until_ready(out)
    assert out.shape == (batch, 10) and out.dtype == jnp.float32

    ref = reference_forward(x, params)
    max_err = float(jnp.max(jnp.abs(out - ref)))
    assert max_err < 1e-1, f"kernel/reference mismatch: max abs err {max_err}"
    print("KERNEL_OK")
</pallas_src>

<mosaic_0001>
module attributes {stable_mosaic.version = 11 : i64} {
  func.func @_fused_convnet_kernel(%arg0: i32, %arg1: memref<192x256xbf16, #tpu.memory_space<vmem>>, %arg2: memref<256x192xbf16, #tpu.memory_space<vmem>>, %arg3: memref<1x192xf32, #tpu.memory_space<vmem>>, %arg4: memref<768x160xbf16, #tpu.memory_space<vmem>>, %arg5: memref<1x160xf32, #tpu.memory_space<vmem>>, %arg6: memref<800x32xbf16, #tpu.memory_space<vmem>>, %arg7: memref<1x32xf32, #tpu.memory_space<vmem>>, %arg8: memref<32x128xbf16, #tpu.memory_space<vmem>>, %arg9: memref<1x128xf32, #tpu.memory_space<vmem>>, %arg10: memref<16x128xf32, #tpu.memory_space<vmem>>) attributes {dimension_semantics = [#tpu.dimension_semantics<parallel>], iteration_bounds = array<i64: 1>, scalar_prefetch = 0 : i64, scratch_operands = 0 : i64, tpu.core_type = #tpu.core_type<tc>, window_params = [{transform_indices = @transform_0, window_bounds = array<i64: 192, 256>}, {pipeline_mode = #tpu.pipeline_mode<synchronous>, transform_indices = @transform_1, window_bounds = array<i64: 256, 192>}, {pipeline_mode = #tpu.pipeline_mode<synchronous>, transform_indices = @transform_2, window_bounds = array<i64: 1, 192>}, {pipeline_mode = #tpu.pipeline_mode<synchronous>, transform_indices = @transform_3, window_bounds = array<i64: 768, 160>}, {pipeline_mode = #tpu.pipeline_mode<synchronous>, transform_indices = @transform_4, window_bounds = array<i64: 1, 160>}, {pipeline_mode = #tpu.pipeline_mode<synchronous>, transform_indices = @transform_5, window_bounds = array<i64: 800, 32>}, {pipeline_mode = #tpu.pipeline_mode<synchronous>, transform_indices = @transform_6, window_bounds = array<i64: 1, 32>}, {pipeline_mode = #tpu.pipeline_mode<synchronous>, transform_indices = @transform_7, window_bounds = array<i64: 32, 128>}, {pipeline_mode = #tpu.pipeline_mode<synchronous>, transform_indices = @transform_8, window_bounds = array<i64: 1, 128>}, {transform_indices = @transform_9, window_bounds = array<i64: 16, 128>}]} {
    %c0 = arith.constant 0 : index
    %c0_0 = arith.constant 0 : index
    %0 = vector.load %arg1[%c0, %c0_0] : memref<192x256xbf16, #tpu.memory_space<vmem>>, vector<192x256xbf16>
    %c0_1 = arith.constant 0 : index
    %c0_2 = arith.constant 0 : index
    %1 = vector.load %arg2[%c0_1, %c0_2] : memref<256x192xbf16, #tpu.memory_space<vmem>>, vector<256x192xbf16>
    %cst = arith.constant dense<0.000000e+00> : vector<192x192xf32>
    %2 = tpu.matmul %0, %1, %cst {dimension_numbers = #tpu.dot_dimension_numbers<[1], [0], [0], [1], [0, 0, 1, 1], [], []>} : vector<192x256xbf16>, vector<256x192xbf16>, vector<192x192xf32> -> vector<192x192xf32>
    %c0_3 = arith.constant 0 : index
    %c0_4 = arith.constant 0 : index
    %3 = vector.load %arg3[%c0_3, %c0_4] : memref<1x192xf32, #tpu.memory_space<vmem>>, vector<1x192xf32>
    %4 = vector.broadcast %3 : vector<1x192xf32> to vector<192x192xf32>
    %5 = arith.addf %2, %4 : vector<192x192xf32>
    %6 = arith.truncf %5 : vector<192x192xf32> to vector<192x192xbf16>
    %7 = math.tanh %6 : vector<192x192xbf16>
    %c0_5 = arith.constant 0 : index
    %c0_6 = arith.constant 0 : index
    %8 = vector.load %arg4[%c0_5, %c0_6] : memref<768x160xbf16, #tpu.memory_space<vmem>>, vector<768x160xbf16>
    %c0_7 = arith.constant 0 : index
    %c0_8 = arith.constant 0 : index
    %9 = vector.load %arg6[%c0_7, %c0_8] : memref<800x32xbf16, #tpu.memory_space<vmem>>, vector<800x32xbf16>
    %cst_9 = arith.constant 0.000000e+00 : f32
    %10 = vector.broadcast %cst_9 : f32 to vector<16x160xf32>
    %c0_10 = arith.constant 0 : index
    %c0_11 = arith.constant 0 : index
    %11 = vector.load %arg5[%c0_10, %c0_11] : memref<1x160xf32, #tpu.memory_space<vmem>>, vector<1x160xf32>
    %12 = vector.broadcast %11 : vector<1x160xf32> to vector<16x160xf32>
    %13 = arith.addf %10, %12 : vector<16x160xf32>
    %cst_12 = arith.constant 0.000000e+00 : f32
    %14 = vector.broadcast %cst_12 : f32 to vector<16x32xf32>
    %c0_13 = arith.constant 0 : index
    %c0_14 = arith.constant 0 : index
    %15 = vector.load %arg7[%c0_13, %c0_14] : memref<1x32xf32, #tpu.memory_space<vmem>>, vector<1x32xf32>
    %16 = vector.broadcast %15 : vector<1x32xf32> to vector<16x32xf32>
    %17 = arith.addf %14, %16 : vector<16x32xf32>
    %18 = vector.extract_strided_slice %7 {offsets = [0, 0], sizes = [16, 192], strides = [1, 1]} : vector<192x192xbf16> to vector<16x192xbf16>
    %19 = vector.extract_strided_slice %8 {offsets = [0, 0], sizes = [192, 160], strides = [1, 1]} : vector<768x160xbf16> to vector<192x160xbf16>
    %cst_15 = arith.constant dense<0.000000e+00> : vector<16x160xf32>
    %20 = tpu.matmul %18, %19, %cst_15 {dimension_numbers = #tpu.dot_dimension_numbers<[1], [0], [0], [1], [0, 0, 1, 1], [], []>} : vector<16x192xbf16>, vector<192x160xbf16>, vector<16x160xf32> -> vector<16x160xf32>
    %21 = arith.addf %13, %20 : vector<16x160xf32>
    %22 = vector.extract_strided_slice %7 {offsets = [16, 0], sizes = [16, 192], strides = [1, 1]} : vector<192x192xbf16> to vector<16x192xbf16>
    %23 = vector.extract_strided_slice %8 {offsets = [192, 0], sizes = [192, 160], strides = [1, 1]} : vector<768x160xbf16> to vector<192x160xbf16>
    %cst_16 = arith.constant dense<0.000000e+00> : vector<16x160xf32>
    %24 = tpu.matmul %22, %23, %cst_16 {dimension_numbers = #tpu.dot_dimension_numbers<[1], [0], [0], [1], [0, 0, 1, 1], [], []>} : vector<16x192xbf16>, vector<192x160xbf16>, vector<16x160xf32> -> vector<16x160xf32>
    %25 = arith.addf %21, %24 : vector<16x160xf32>
    %26 = vector.extract_strided_slice %7 {offsets = [32, 0], sizes = [16, 192], strides = [1, 1]} : vector<192x192xbf16> to vector<16x192xbf16>
    %27 = vector.extract_strided_slice %8 {offsets = [384, 0], sizes = [192, 160], strides = [1, 1]} : vector<768x160xbf16> to vector<192x160xbf16>
    %cst_17 = arith.constant dense<0.000000e+00> : vector<16x160xf32>
    %28 = tpu.matmul %26, %27, %cst_17 {dimension_numbers = #tpu.dot_dimension_numbers<[1], [0], [0], [1], [0, 0, 1, 1], [], []>} : vector<16x192xbf16>, vector<192x160xbf16>, vector<16x160xf32> -> vector<16x160xf32>
    %29 = arith.addf %25, %28 : vector<16x160xf32>
    %30 = vector.extract_strided_slice %7 {offsets = [48, 0], sizes = [16, 192], strides = [1, 1]} : vector<192x192xbf16> to vector<16x192xbf16>
    %31 = vector.extract_strided_slice %8 {offsets = [576, 0], sizes = [192, 160], strides = [1, 1]} : vector<768x160xbf16> to vector<192x160xbf16>
    %cst_18 = arith.constant dense<0.000000e+00> : vector<16x160xf32>
    %32 = tpu.matmul %30, %31, %cst_18 {dimension_numbers = #tpu.dot_dimension_numbers<[1], [0], [0], [1], [0, 0, 1, 1], [], []>} : vector<16x192xbf16>, vector<192x160xbf16>, vector<16x160xf32> -> vector<16x160xf32>
    %33 = arith.addf %29, %32 : vector<16x160xf32>
    %34 = arith.truncf %33 : vector<16x160xf32> to vector<16x160xbf16>
    %35 = math.tanh %34 : vector<16x160xbf16>
    %36 = vector.extract_strided_slice %9 {offsets = [0, 0], sizes = [160, 32], strides = [1, 1]} : vector<800x32xbf16> to vector<160x32xbf16>
    %cst_19 = arith.constant dense<0.000000e+00> : vector<16x32xf32>
    %37 = tpu.matmul %35, %36, %cst_19 {dimension_numbers = #tpu.dot_dimension_numbers<[1], [0], [0], [1], [0, 0, 1, 1], [], []>} : vector<16x160xbf16>, vector<160x32xbf16>, vector<16x32xf32> -> vector<16x32xf32>
    %38 = arith.addf %17, %37 : vector<16x32xf32>
    %39 = vector.extract_strided_slice %7 {offsets = [32, 0], sizes = [16, 192], strides = [1, 1]} : vector<192x192xbf16> to vector<16x192xbf16>
    %40 = vector.extract_strided_slice %8 {offsets = [0, 0], sizes = [192, 160], strides = [1, 1]} : vector<768x160xbf16> to vector<192x160xbf16>
    %cst_20 = arith.constant dense<0.000000e+00> : vector<16x160xf32>
    %41 = tpu.matmul %39, %40, %cst_20 {dimension_numbers = #tpu.dot_dimension_numbers<[1], [0], [0], [1], [0, 0, 1, 1], [], []>} : vector<16x192xbf16>, vector<192x160xbf16>, vector<16x160xf32> -> vector<16x160xf32>
    %42 = arith.addf %13, %41 : vector<16x160xf32>
    %43 = vector.extract_strided_slice %7 {offsets = [48, 0], sizes = [16, 192], strides = [1, 1]} : vector<192x192xbf16> to vector<16x192xbf16>
    %44 = vector.extract_strided_slice %8 {offsets = [192, 0], sizes = [192, 160], strides = [1, 1]} : vector<768x160xbf16> to vector<192x160xbf16>
    %cst_21 = arith.constant dense<0.000000e+00> : vector<16x160xf32>
    %45 = tpu.matmul %43, %44, %cst_21 {dimension_numbers = #tpu.dot_dimension_numbers<[1], [0], [0], [1], [0, 0, 1, 1], [], []>} : vector<16x192xbf16>, vector<192x160xbf16>, vector<16x160xf32> -> vector<16x160xf32>
    %46 = arith.addf %42, %45 : vector<16x160xf32>
    %47 = vector.extract_strided_slice %7 {offsets = [64, 0], sizes = [16, 192], strides = [1, 1]} : vector<192x192xbf16> to vector<16x192xbf16>
    %48 = vector.extract_strided_slice %8 {offsets = [384, 0], sizes = [192, 160], strides = [1, 1]} : vector<768x160xbf16> to vector<192x160xbf16>
    %cst_22 = arith.constant dense<0.000000e+00> : vector<16x160xf32>
    %49 = tpu.matmul %47, %48, %cst_22 {dimension_numbers = #tpu.dot_dimension_numbers<[1], [0], [0], [1], [0, 0, 1, 1], [], []>} : vector<16x192xbf16>, vector<192x160xbf16>, vector<16x160xf32> -> vector<16x160xf32>
    %50 = arith.addf %46, %49 : vector<16x160xf32>
    %51 = vector.extract_strided_slice %7 {offsets = [80, 0], sizes = [16, 192], strides = [1, 1]} : vector<192x192xbf16> to vector<16x192xbf16>
    %52 = vector.extract_strided_slice %8 {offsets = [576, 0], sizes = [192, 160], strides = [1, 1]} : vector<768x160xbf16> to vector<192x160xbf16>
    %cst_23 = arith.constant dense<0.000000e+00> : vector<16x160xf32>
    %53 = tpu.matmul %51, %52, %cst_23 {dimension_numbers = #tpu.dot_dimension_numbers<[1], [0], [0], [1], [0, 0, 1, 1], [], []>} : vector<16x192xbf16>, vector<192x160xbf16>, vector<16x160xf32> -> vector<16x160xf32>
    %54 = arith.addf %50, %53 : vector<16x160xf32>
    %55 = arith.truncf %54 : vector<16x160xf32> to vector<16x160xbf16>
    %56 = math.tanh %55 : vector<16x160xbf16>
    %57 = vector.extract_strided_slice %9 {offsets = [160, 0], sizes = [160, 32], strides = [1, 1]} : vector<800x32xbf16> to vector<160x32xbf16>
    %cst_24 = arith.constant dense<0.000000e+00> : vector<16x32xf32>
    %58 = tpu.matmul %56, %57, %cst_24 {dimension_numbers = #tpu.dot_dimension_numbers<[1], [0], [0], [1], [0, 0, 1, 1], [], []>} : vector<16x160xbf16>, vector<160x32xbf16>, vector<16x32xf32> -> vector<16x32xf32>
    %59 = arith.addf %38, %58 : vector<16x32xf32>
    %60 = vector.extract_strided_slice %7 {offsets = [64, 0], sizes = [16, 192], strides = [1, 1]} : vector<192x192xbf16> to vector<16x192xbf16>
    %61 = vector.extract_strided_slice %8 {offsets = [0, 0], sizes = [192, 160], strides = [1, 1]} : vector<768x160xbf16> to vector<192x160xbf16>
    %cst_25 = arith.constant dense<0.000000e+00> : vector<16x160xf32>
    %62 = tpu.matmul %60, %61, %cst_25 {dimension_numbers = #tpu.dot_dimension_numbers<[1], [0], [0], [1], [0, 0, 1, 1], [], []>} : vector<16x192xbf16>, vector<192x160xbf16>, vector<16x160xf32> -> vector<16x160xf32>
    %63 = arith.addf %13, %62 : vector<16x160xf32>
    %64 = vector.extract_strided_slice %7 {offsets = [80, 0], sizes = [16, 192], strides = [1, 1]} : vector<192x192xbf16> to vector<16x192xbf16>
    %65 = vector.extract_strided_slice %8 {offsets = [192, 0], sizes = [192, 160], strides = [1, 1]} : vector<768x160xbf16> to vector<192x160xbf16>
    %cst_26 = arith.constant dense<0.000000e+00> : vector<16x160xf32>
    %66 = tpu.matmul %64, %65, %cst_26 {dimension_numbers = #tpu.dot_dimension_numbers<[1], [0], [0], [1], [0, 0, 1, 1], [], []>} : vector<16x192xbf16>, vector<192x160xbf16>, vector<16x160xf32> -> vector<16x160xf32>
    %67 = arith.addf %63, %66 : vector<16x160xf32>
    %68 = vector.extract_strided_slice %7 {offsets = [96, 0], sizes = [16, 192], strides = [1, 1]} : vector<192x192xbf16> to vector<16x192xbf16>
    %69 = vector.extract_strided_slice %8 {offsets = [384, 0], sizes = [192, 160], strides = [1, 1]} : vector<768x160xbf16> to vector<192x160xbf16>
    %cst_27 = arith.constant dense<0.000000e+00> : vector<16x160xf32>
    %70 = tpu.matmul %68, %69, %cst_27 {dimension_numbers = #tpu.dot_dimension_numbers<[1], [0], [0], [1], [0, 0, 1, 1], [], []>} : vector<16x192xbf16>, vector<192x160xbf16>, vector<16x160xf32> -> vector<16x160xf32>
    %71 = arith.addf %67, %70 : vector<16x160xf32>
    %72 = vector.extract_strided_slice %7 {offsets = [112, 0], sizes = [16, 192], strides = [1, 1]} : vector<192x192xbf16> to vector<16x192xbf16>
    %73 = vector.extract_strided_slice %8 {offsets = [576, 0], sizes = [192, 160], strides = [1, 1]} : vector<768x160xbf16> to vector<192x160xbf16>
    %cst_28 = arith.constant dense<0.000000e+00> : vector<16x160xf32>
    %74 = tpu.matmul %72, %73, %cst_28 {dimension_numbers = #tpu.dot_dimension_numbers<[1], [0], [0], [1], [0, 0, 1, 1], [], []>} : vector<16x192xbf16>, vector<192x160xbf16>, vector<16x160xf32> -> vector<16x160xf32>
    %75 = arith.addf %71, %74 : vector<16x160xf32>
    %76 = arith.truncf %75 : vector<16x160xf32> to vector<16x160xbf16>
    %77 = math.tanh %76 : vector<16x160xbf16>
    %78 = vector.extract_strided_slice %9 {offsets = [320, 0], sizes = [160, 32], strides = [1, 1]} : vector<800x32xbf16> to vector<160x32xbf16>
    %cst_29 = arith.constant dense<0.000000e+00> : vector<16x32xf32>
    %79 = tpu.matmul %77, %78, %cst_29 {dimension_numbers = #tpu.dot_dimension_numbers<[1], [0], [0], [1], [0, 0, 1, 1], [], []>} : vector<16x160xbf16>, vector<160x32xbf16>, vector<16x32xf32> -> vector<16x32xf32>
    %80 = arith.addf %59, %79 : vector<16x32xf32>
    %81 = vector.extract_strided_slice %7 {offsets = [96, 0], sizes = [16, 192], strides = [1, 1]} : vector<192x192xbf16> to vector<16x192xbf16>
    %82 = vector.extract_strided_slice %8 {offsets = [0, 0], sizes = [192, 160], strides = [1, 1]} : vector<768x160xbf16> to vector<192x160xbf16>
    %cst_30 = arith.constant dense<0.000000e+00> : vector<16x160xf32>
    %83 = tpu.matmul %81, %82, %cst_30 {dimension_numbers = #tpu.dot_dimension_numbers<[1], [0], [0], [1], [0, 0, 1, 1], [], []>} : vector<16x192xbf16>, vector<192x160xbf16>, vector<16x160xf32> -> vector<16x160xf32>
    %84 = arith.addf %13, %83 : vector<16x160xf32>
    %85 = vector.extract_strided_slice %7 {offsets = [112, 0], sizes = [16, 192], strides = [1, 1]} : vector<192x192xbf16> to vector<16x192xbf16>
    %86 = vector.extract_strided_slice %8 {offsets = [192, 0], sizes = [192, 160], strides = [1, 1]} : vector<768x160xbf16> to vector<192x160xbf16>
    %cst_31 = arith.constant dense<0.000000e+00> : vector<16x160xf32>
    %87 = tpu.matmul %85, %86, %cst_31 {dimension_numbers = #tpu.dot_dimension_numbers<[1], [0], [0], [1], [0, 0, 1, 1], [], []>} : vector<16x192xbf16>, vector<192x160xbf16>, vector<16x160xf32> -> vector<16x160xf32>
    %88 = arith.addf %84, %87 : vector<16x160xf32>
    %89 = vector.extract_strided_slice %7 {offsets = [128, 0], sizes = [16, 192], strides = [1, 1]} : vector<192x192xbf16> to vector<16x192xbf16>
    %90 = vector.extract_strided_slice %8 {offsets = [384, 0], sizes = [192, 160], strides = [1, 1]} : vector<768x160xbf16> to vector<192x160xbf16>
    %cst_32 = arith.constant dense<0.000000e+00> : vector<16x160xf32>
    %91 = tpu.matmul %89, %90, %cst_32 {dimension_numbers = #tpu.dot_dimension_numbers<[1], [0], [0], [1], [0, 0, 1, 1], [], []>} : vector<16x192xbf16>, vector<192x160xbf16>, vector<16x160xf32> -> vector<16x160xf32>
    %92 = arith.addf %88, %91 : vector<16x160xf32>
    %93 = vector.extract_strided_slice %7 {offsets = [144, 0], sizes = [16, 192], strides = [1, 1]} : vector<192x192xbf16> to vector<16x192xbf16>
    %94 = vector.extract_strided_slice %8 {offsets = [576, 0], sizes = [192, 160], strides = [1, 1]} : vector<768x160xbf16> to vector<192x160xbf16>
    %cst_33 = arith.constant dense<0.000000e+00> : vector<16x160xf32>
    %95 = tpu.matmul %93, %94, %cst_33 {dimension_numbers = #tpu.dot_dimension_numbers<[1], [0], [0], [1], [0, 0, 1, 1], [], []>} : vector<16x192xbf16>, vector<192x160xbf16>, vector<16x160xf32> -> vector<16x160xf32>
    %96 = arith.addf %92, %95 : vector<16x160xf32>
    %97 = arith.truncf %96 : vector<16x160xf32> to vector<16x160xbf16>
    %98 = math.tanh %97 : vector<16x160xbf16>
    %99 = vector.extract_strided_slice %9 {offsets = [480, 0], sizes = [160, 32], strides = [1, 1]} : vector<800x32xbf16> to vector<160x32xbf16>
    %cst_34 = arith.constant dense<0.000000e+00> : vector<16x32xf32>
    %100 = tpu.matmul %98, %99, %cst_34 {dimension_numbers = #tpu.dot_dimension_numbers<[1], [0], [0], [1], [0, 0, 1, 1], [], []>} : vector<16x160xbf16>, vector<160x32xbf16>, vector<16x32xf32> -> vector<16x32xf32>
    %101 = arith.addf %80, %100 : vector<16x32xf32>
    %102 = vector.extract_strided_slice %7 {offsets = [128, 0], sizes = [16, 192], strides = [1, 1]} : vector<192x192xbf16> to vector<16x192xbf16>
    %103 = vector.extract_strided_slice %8 {offsets = [0, 0], sizes = [192, 160], strides = [1, 1]} : vector<768x160xbf16> to vector<192x160xbf16>
    %cst_35 = arith.constant dense<0.000000e+00> : vector<16x160xf32>
    %104 = tpu.matmul %102, %103, %cst_35 {dimension_numbers = #tpu.dot_dimension_numbers<[1], [0], [0], [1], [0, 0, 1, 1], [], []>} : vector<16x192xbf16>, vector<192x160xbf16>, vector<16x160xf32> -> vector<16x160xf32>
    %105 = arith.addf %13, %104 : vector<16x160xf32>
    %106 = vector.extract_strided_slice %7 {offsets = [144, 0], sizes = [16, 192], strides = [1, 1]} : vector<192x192xbf16> to vector<16x192xbf16>
    %107 = vector.extract_strided_slice %8 {offsets = [192, 0], sizes = [192, 160], strides = [1, 1]} : vector<768x160xbf16> to vector<192x160xbf16>
    %cst_36 = arith.constant dense<0.000000e+00> : vector<16x160xf32>
    %108 = tpu.matmul %106, %107, %cst_36 {dimension_numbers = #tpu.dot_dimension_numbers<[1], [0], [0], [1], [0, 0, 1, 1], [], []>} : vector<16x192xbf16>, vector<192x160xbf16>, vector<16x160xf32> -> vector<16x160xf32>
    %109 = arith.addf %105, %108 : vector<16x160xf32>
    %110 = vector.extract_strided_slice %7 {offsets = [160, 0], sizes = [16, 192], strides = [1, 1]} : vector<192x192xbf16> to vector<16x192xbf16>
    %111 = vector.extract_strided_slice %8 {offsets = [384, 0], sizes = [192, 160], strides = [1, 1]} : vector<768x160xbf16> to vector<192x160xbf16>
    %cst_37 = arith.constant dense<0.000000e+00> : vector<16x160xf32>
    %112 = tpu.matmul %110, %111, %cst_37 {dimension_numbers = #tpu.dot_dimension_numbers<[1], [0], [0], [1], [0, 0, 1, 1], [], []>} : vector<16x192xbf16>, vector<192x160xbf16>, vector<16x160xf32> -> vector<16x160xf32>
    %113 = arith.addf %109, %112 : vector<16x160xf32>
    %114 = vector.extract_strided_slice %7 {offsets = [176, 0], sizes = [16, 192], strides = [1, 1]} : vector<192x192xbf16> to vector<16x192xbf16>
    %115 = vector.extract_strided_slice %8 {offsets = [576, 0], sizes = [192, 160], strides = [1, 1]} : vector<768x160xbf16> to vector<192x160xbf16>
    %cst_38 = arith.constant dense<0.000000e+00> : vector<16x160xf32>
    %116 = tpu.matmul %114, %115, %cst_38 {dimension_numbers = #tpu.dot_dimension_numbers<[1], [0], [0], [1], [0, 0, 1, 1], [], []>} : vector<16x192xbf16>, vector<192x160xbf16>, vector<16x160xf32> -> vector<16x160xf32>
    %117 = arith.addf %113, %116 : vector<16x160xf32>
    %118 = arith.truncf %117 : vector<16x160xf32> to vector<16x160xbf16>
    %119 = math.tanh %118 : vector<16x160xbf16>
    %120 = vector.extract_strided_slice %9 {offsets = [640, 0], sizes = [160, 32], strides = [1, 1]} : vector<800x32xbf16> to vector<160x32xbf16>
    %cst_39 = arith.constant dense<0.000000e+00> : vector<16x32xf32>
    %121 = tpu.matmul %119, %120, %cst_39 {dimension_numbers = #tpu.dot_dimension_numbers<[1], [0], [0], [1], [0, 0, 1, 1], [], []>} : vector<16x160xbf16>, vector<160x32xbf16>, vector<16x32xf32> -> vector<16x32xf32>
    %122 = arith.addf %101, %121 : vector<16x32xf32>
    %123 = arith.truncf %122 : vector<16x32xf32> to vector<16x32xbf16>
    %124 = math.tanh %123 : vector<16x32xbf16>
    %c0_40 = arith.constant 0 : index
    %c0_41 = arith.constant 0 : index
    %125 = vector.load %arg8[%c0_40, %c0_41] : memref<32x128xbf16, #tpu.memory_space<vmem>>, vector<32x128xbf16>
    %cst_42 = arith.constant dense<0.000000e+00> : vector<16x128xf32>
    %126 = tpu.matmul %124, %125, %cst_42 {dimension_numbers = #tpu.dot_dimension_numbers<[1], [0], [0], [1], [0, 0, 1, 1], [], []>} : vector<16x32xbf16>, vector<32x128xbf16>, vector<16x128xf32> -> vector<16x128xf32>
    %c0_43 = arith.constant 0 : index
    %c0_44 = arith.constant 0 : index
    %127 = vector.load %arg9[%c0_43, %c0_44] : memref<1x128xf32, #tpu.memory_space<vmem>>, vector<1x128xf32>
    %128 = vector.broadcast %127 : vector<1x128xf32> to vector<16x128xf32>
    %129 = arith.addf %126, %128 : vector<16x128xf32>
    %c0_45 = arith.constant 0 : index
    %c0_46 = arith.constant 0 : index
    %130 = vector.load %arg10[%c0_45, %c0_46] : memref<16x128xf32, #tpu.memory_space<vmem>>, vector<16x128xf32>
    tpu.vector_store %arg10[%c0_45, %c0_46], %129 {strides = array<i32>} : memref<16x128xf32, #tpu.memory_space<vmem>>, vector<16x128xf32>,
    return
  }
  func.func @transform_0(%arg0: i32) -> (i32, i32) {
    %c0_i32 = arith.constant 0 : i32
    %c0_i32_0 = arith.constant 0 : i32
    return %arg0, %c0_i32 : i32, i32
  }
  func.func @transform_1(%arg0: i32) -> (i32, i32) {
    %c0_i32 = arith.constant 0 : i32
    %c0_i32_0 = arith.constant 0 : i32
    %c0_i32_1 = arith.constant 0 : i32
    return %c0_i32, %c0_i32_0 : i32, i32
  }
  func.func @transform_2(%arg0: i32) -> (i32, i32) {
    %c0_i32 = arith.constant 0 : i32
    %c0_i32_0 = arith.constant 0 : i32
    %c0_i32_1 = arith.constant 0 : i32
    return %c0_i32, %c0_i32_0 : i32, i32
  }
  func.func @transform_3(%arg0: i32) -> (i32, i32) {
    %c0_i32 = arith.constant 0 : i32
    %c0_i32_0 = arith.constant 0 : i32
    %c0_i32_1 = arith.constant 0 : i32
    return %c0_i32, %c0_i32_0 : i32, i32
  }
  func.func @transform_4(%arg0: i32) -> (i32, i32) {
    %c0_i32 = arith.constant 0 : i32
    %c0_i32_0 = arith.constant 0 : i32
    %c0_i32_1 = arith.constant 0 : i32
    return %c0_i32, %c0_i32_0 : i32, i32
  }
  func.func @transform_5(%arg0: i32) -> (i32, i32) {
    %c0_i32 = arith.constant 0 : i32
    %c0_i32_0 = arith.constant 0 : i32
    %c0_i32_1 = arith.constant 0 : i32
    return %c0_i32, %c0_i32_0 : i32, i32
  }
  func.func @transform_6(%arg0: i32) -> (i32, i32) {
    %c0_i32 = arith.constant 0 : i32
    %c0_i32_0 = arith.constant 0 : i32
    %c0_i32_1 = arith.constant 0 : i32
    return %c0_i32, %c0_i32_0 : i32, i32
  }
  func.func @transform_7(%arg0: i32) -> (i32, i32) {
    %c0_i32 = arith.constant 0 : i32
    %c0_i32_0 = arith.constant 0 : i32
    %c0_i32_1 = arith.constant 0 : i32
    return %c0_i32, %c0_i32_0 : i32, i32
  }
  func.func @transform_8(%arg0: i32) -> (i32, i32) {
    %c0_i32 = arith.constant 0 : i32
    %c0_i32_0 = arith.constant 0 : i32
    %c0_i32_1 = arith.constant 0 : i32
    return %c0_i32, %c0_i32_0 : i32, i32
  }
  func.func @transform_9(%arg0: i32) -> (i32, i32) {
    %c0_i32 = arith.constant 0 : i32
    %c0_i32_0 = arith.constant 0 : i32
    return %arg0, %c0_i32 : i32, i32
  }
}

</mosaic_0001>

<llo_original>
// kernel: convnet_forward.1
$region0: #{convnet_forward.1}
  #allocation0 [shape = 'u32[]', space=smem, size = 0x4, offset = 0x4, fixed_abs, tag = 'smem constant byte address 0x4 - core index']
  #allocation1 [shape = 'u32[72,128]{1,0:T(1,128)}', space=vmem, size = 0x9000, scoped, tag = 'internal scratch']
  %s0 = inlined_call_operand.vmem [shape: bf16[192,256], index: 0, kind: input, shape index: {}]
  %s1 = inlined_call_operand.vmem [shape: bf16[256,192], index: 1, kind: input, shape index: {}]
  %s2 = inlined_call_operand.vmem [shape: f32[1,192], index: 2, kind: input, shape index: {}]
  %s3 = inlined_call_operand.vmem [shape: bf16[768,160], index: 3, kind: input, shape index: {}]
  %s4 = inlined_call_operand.vmem [shape: f32[1,160], index: 4, kind: input, shape index: {}]
  %s5 = inlined_call_operand.vmem [shape: bf16[800,32], index: 5, kind: input, shape index: {}]
  %s6 = inlined_call_operand.vmem [shape: f32[1,32], index: 6, kind: input, shape index: {}]
  %s7 = inlined_call_operand.vmem [shape: bf16[32,128], index: 7, kind: input, shape index: {}]
  %s8 = inlined_call_operand.vmem [shape: f32[1,128], index: 8, kind: input, shape index: {}]
  %s9 = inlined_call_operand.vmem [shape: f32[16,128], index: 9, kind: output, shape index: {}]
  %s10 = sld [smem:[#allocation0]]
  $region46: #{convnet_forward.1} parent=0
    _
  %s12 = ssub.s32 1, %s10
  %s13 = scalar_select 0, %s12, %s10
  // Predicated region
  $region2: #{convnet_forward.1} parent=0 // pred_check
    _
  $region3: #{convnet_forward.1} parent=0 // pred_check_branch
    %15 = sbr.rel (0) target = $region5
  $region4: #{convnet_forward.1} parent=0 // pred_region
    _
  $region5: #{convnet_forward.1} parent=0 // pred_fallthru
    _
  // Predicated region
  $region6: #{convnet_forward.1} parent=0 // pred_check
    _
  $region7: #{convnet_forward.1} parent=0 // pred_check_branch
    %17 = sbr.rel (0) target = $region9
  $region8: #{convnet_forward.1} parent=0 // pred_region
    _
  $region9: #{convnet_forward.1} parent=0 // pred_fallthru
    _
  // Predicated region
  $region10: #{convnet_forward.1} parent=0 // pred_check
    _
  $region11: #{convnet_forward.1} parent=0 // pred_check_branch
    %19 = sbr.rel (0) target = $region13
  $region12: #{convnet_forward.1} parent=0 // pred_region
    _
  $region13: #{convnet_forward.1} parent=0 // pred_fallthru
    _
  // Predicated region
  $region14: #{convnet_forward.1} parent=0 // pred_check
    _
  $region15: #{convnet_forward.1} parent=0 // pred_check_branch
    %21 = sbr.rel (0) target = $region17
  $region16: #{convnet_forward.1} parent=0 // pred_region
    _
  $region17: #{convnet_forward.1} parent=0 // pred_fallthru
    _
  // Predicated region
  $region18: #{convnet_forward.1} parent=0 // pred_check
    _
  $region19: #{convnet_forward.1} parent=0 // pred_check_branch
    %23 = sbr.rel (0) target = $region21
  $region20: #{convnet_forward.1} parent=0 // pred_region
    _
  $region21: #{convnet_forward.1} parent=0 // pred_fallthru
    _
  // Predicated region
  $region22: #{convnet_forward.1} parent=0 // pred_check
    _
  $region23: #{convnet_forward.1} parent=0 // pred_check_branch
    %25 = sbr.rel (0) target = $region25
  $region24: #{convnet_forward.1} parent=0 // pred_region
    _
  $region25: #{convnet_forward.1} parent=0 // pred_fallthru
    _
  // Predicated region
  $region26: #{convnet_forward.1} parent=0 // pred_check
    _
  $region27: #{convnet_forward.1} parent=0 // pred_check_branch
    %27 = sbr.rel (0) target = $region29
  $region28: #{convnet_forward.1} parent=0 // pred_region
    _
  $region29: #{convnet_forward.1} parent=0 // pred_fallthru
    _
  // Predicated region
  $region30: #{convnet_forward.1} parent=0 // pred_check
    _
  $region31: #{convnet_forward.1} parent=0 // pred_check_branch
    %29 = sbr.rel (0) target = $region33
  $region32: #{convnet_forward.1} parent=0 // pred_region
    _
  $region33: #{convnet_forward.1} parent=0 // pred_fallthru
    _
  // Predicated region
  $region34: #{convnet_forward.1} parent=0 // pred_check
    _
  $region35: #{convnet_forward.1} parent=0 // pred_check_branch
    %31 = sbr.rel (0) target = $region37
  $region36: #{convnet_forward.1} parent=0 // pred_region
    _
  $region37: #{convnet_forward.1} parent=0 // pred_fallthru
    _
  %v33 = vld [vmem:[%s0] sm:$0xff]
  %v34 = vld [vmem:[%s0 + $0x8] sm:$0xff]
  %v35 = vld [vmem:[%s0 + $0x10] sm:$0xff]
  %v36 = vld [vmem:[%s0 + $0x18] sm:$0xff]
  %v37 = vld [vmem:[%s0 + $0x20] sm:$0xff]
  %v38 = vld [vmem:[%s0 + $0x28] sm:$0xff]
  %v39 = vld [vmem:[%s0 + $0x30] sm:$0xff]
  %v40 = vld [vmem:[%s0 + $0x38] sm:$0xff]
  %v41 = vld [vmem:[%s0 + $0x40] sm:$0xff]
  %v42 = vld [vmem:[%s0 + $0x48] sm:$0xff]
  %v43 = vld [vmem:[%s0 + $0x50] sm:$0xff]
  %v44 = vld [vmem:[%s0 + $0x58] sm:$0xff]
  %v45 = vld [vmem:[%s0 + $0x60] sm:$0xff]
  %v46 = vld [vmem:[%s0 + $0x68] sm:$0xff]
  %v47 = vld [vmem:[%s0 + $0x70] sm:$0xff]
  %v48 = vld [vmem:[%s0 + $0x78] sm:$0xff]
  %v49 = vld [vmem:[%s0 + $0x80] sm:$0xff]
  %v50 = vld [vmem:[%s0 + $0x88] sm:$0xff]
  %v51 = vld [vmem:[%s0 + $0x90] sm:$0xff]
  %v52 = vld [vmem:[%s0 + $0x98] sm:$0xff]
  %v53 = vld [vmem:[%s0 + $0xa0] sm:$0xff]
  %v54 = vld [vmem:[%s0 + $0xa8] sm:$0xff]
  %v55 = vld [vmem:[%s0 + $0xb0] sm:$0xff]
  %v56 = vld [vmem:[%s0 + $0xb8] sm:$0xff]
  %v57 = vld [vmem:[%s1] sm:$0xff]
  %v58 = vld [vmem:[%s1 + $0x8] sm:$0xff]
  %v59 = vld [vmem:[%s1 + $0x10] sm:$0xff]
  %v60 = vld [vmem:[%s1 + $0x18] sm:$0xff]
  %v61 = vld [vmem:[%s1 + $0x20] sm:$0xff]
  %v62 = vld [vmem:[%s1 + $0x28] sm:$0xff]
  %v63 = vld [vmem:[%s1 + $0x30] sm:$0xff]
  %v64 = vld [vmem:[%s1 + $0x38] sm:$0xff]
  %v65 = vld [vmem:[%s1 + $0x40] sm:$0xff]
  %v66 = vld [vmem:[%s1 + $0x48] sm:$0xff]
  %v67 = vld [vmem:[%s1 + $0x50] sm:$0xff]
  %v68 = vld [vmem:[%s1 + $0x58] sm:$0xff]
  %v69 = vld [vmem:[%s1 + $0x60] sm:$0xff]
  %v70 = vld [vmem:[%s1 + $0x68] sm:$0xff]
  %v71 = vld [vmem:[%s1 + $0x70] sm:$0xff]
  %v72 = vld [vmem:[%s1 + $0x78] sm:$0xff]
  %v73 = vld [vmem:[%s1 + $0x80] sm:$0xff]
  %v74 = vld [vmem:[%s1 + $0x88] sm:$0xff]
  %v75 = vld [vmem:[%s1 + $0x90] sm:$0xff]
  %v76 = vld [vmem:[%s1 + $0x98] sm:$0xff]
  %v77 = vld [vmem:[%s1 + $0xa0] sm:$0xff]
  %v78 = vld [vmem:[%s1 + $0xa8] sm:$0xff]
  %v79 = vld [vmem:[%s1 + $0xb0] sm:$0xff]
  %v80 = vld [vmem:[%s1 + $0xb8] sm:$0xff]
  %v81 = vld [vmem:[%s1 + $0xc0] sm:$0xff]
  %v82 = vld [vmem:[%s1 + $0xc8] sm:$0xff]
  %v83 = vld [vmem:[%s1 + $0xd0] sm:$0xff]
  %v84 = vld [vmem:[%s1 + $0xd8] sm:$0xff]
  %v85 = vld [vmem:[%s1 + $0xe0] sm:$0xff]
  %v86 = vld [vmem:[%s1 + $0xe8] sm:$0xff]
  %v87 = vld [vmem:[%s1 + $0xf0] sm:$0xff]
  %v88 = vld [vmem:[%s1 + $0xf8] sm:$0xff]
  %v89 = vld [vmem:[%s2] sm:$0x3]
  %v91 = vperm.slane %v89, 0
  %v92 = vperm.slane %v89, 1
  %v119 = vunpack.c.l.b16 %v33
  %v120 = vunpack.c.h.b16 %v33
  %v121 = vunpack.c.l.b16 %v34
  %v122 = vunpack.c.h.b16 %v34
  %v123 = vunpack.c.l.b16 %v35
  %v124 = vunpack.c.h.b16 %v35
  %v125 = vunpack.c.l.b16 %v36
  %v126 = vunpack.c.h.b16 %v36
  %v127 = vunpack.c.l.b16 %v37
  %v128 = vunpack.c.h.b16 %v37
  %v129 = vunpack.c.l.b16 %v38
  %v130 = vunpack.c.h.b16 %v38
  %v131 = vunpack.c.l.b16 %v39
  %v132 = vunpack.c.h.b16 %v39
  %v133 = vunpack.c.l.b16 %v40
  %v134 = vunpack.c.h.b16 %v40
  %v135 = vunpack.c.l.b16 %v41
  %v136 = vunpack.c.h.b16 %v41
  %v137 = vunpack.c.l.b16 %v42
  %v138 = vunpack.c.h.b16 %v42
  %v139 = vunpack.c.l.b16 %v43
  %v140 = vunpack.c.h.b16 %v43
  %v141 = vunpack.c.l.b16 %v44
  %v142 = vunpack.c.h.b16 %v44
  %v143 = vunpack.c.l.b16 %v45
  %v144 = vunpack.c.h.b16 %v45
  %v145 = vunpack.c.l.b16 %v46
  %v146 = vunpack.c.h.b16 %v46
  %v147 = vunpack.c.l.b16 %v47
  %v148 = vunpack.c.h.b16 %v47
  %v149 = vunpack.c.l.b16 %v48
  %v150 = vunpack.c.h.b16 %v48
  %v151 = vunpack.c.l.b16 %v49
  %v152 = vunpack.c.h.b16 %v49
  %v153 = vunpack.c.l.b16 %v50
  %v154 = vunpack.c.h.b16 %v50
  %v155 = vunpack.c.l.b16 %v51
  %v156 = vunpack.c.h.b16 %v51
  %v157 = vunpack.c.l.b16 %v52
  %v158 = vunpack.c.h.b16 %v52
  %v159 = vunpack.c.l.b16 %v53
  %v160 = vunpack.c.h.b16 %v53
  %v161 = vunpack.c.l.b16 %v54
  %v162 = vunpack.c.h.b16 %v54
  %v163 = vunpack.c.l.b16 %v55
  %v164 = vunpack.c.h.b16 %v55
  %v165 = vunpack.c.l.b16 %v56
  %v166 = vunpack.c.h.b16 %v56
  %v167 = vpack.c.b16 %v121, %v119
  %v168 = vpack.c.b16 %v122, %v120
  %v169 = vpack.c.b16 %v125, %v123
  %v170 = vpack.c.b16 %v126, %v124
  %v171 = vpack.c.b16 %v129, %v127
  %v172 = vpack.c.b16 %v130, %v128
  %v173 = vpack.c.b16 %v133, %v131
  %v174 = vpack.c.b16 %v134, %v132
  %v175 = vpack.c.b16 %v137, %v135
  %v176 = vpack.c.b16 %v138, %v136
  %v177 = vpack.c.b16 %v141, %v139
  %v178 = vpack.c.b16 %v142, %v140
  %v179 = vpack.c.b16 %v145, %v143
  %v180 = vpack.c.b16 %v146, %v144
  %v181 = vpack.c.b16 %v149, %v147
  %v182 = vpack.c.b16 %v150, %v148
  %v183 = vpack.c.b16 %v153, %v151
  %v184 = vpack.c.b16 %v154, %v152
  %v185 = vpack.c.b16 %v157, %v155
  %v186 = vpack.c.b16 %v158, %v156
  %v187 = vpack.c.b16 %v161, %v159
  %v188 = vpack.c.b16 %v162, %v160
  %v189 = vpack.c.b16 %v165, %v163
  %v190 = vpack.c.b16 %v166, %v164
  %v247 = vunpack.c.l.b16 %v57
  %v248 = vunpack.c.h.b16 %v57
  %v249 = vunpack.c.l.b16 %v58
  %v250 = vunpack.c.h.b16 %v58
  %v251 = vunpack.c.l.b16 %v59
  %v252 = vunpack.c.h.b16 %v59
  %v253 = vunpack.c.l.b16 %v60
  %v254 = vunpack.c.h.b16 %v60
  %v255 = vunpack.c.l.b16 %v61
  %v256 = vunpack.c.h.b16 %v61
  %v257 = vunpack.c.l.b16 %v62
  %v258 = vunpack.c.h.b16 %v62
  %v259 = vunpack.c.l.b16 %v63
  %v260 = vunpack.c.h.b16 %v63
  %v261 = vunpack.c.l.b16 %v64
  %v262 = vunpack.c.h.b16 %v64
  %v263 = vunpack.c.l.b16 %v65
  %v264 = vunpack.c.h.b16 %v65
  %v265 = vunpack.c.l.b16 %v66
  %v266 = vunpack.c.h.b16 %v66
  %v267 = vunpack.c.l.b16 %v67
  %v268 = vunpack.c.h.b16 %v67
  %v269 = vunpack.c.l.b16 %v68
  %v270 = vunpack.c.h.b16 %v68
  %v271 = vunpack.c.l.b16 %v69
  %v272 = vunpack.c.h.b16 %v69
  %v273 = vunpack.c.l.b16 %v70
  %v274 = vunpack.c.h.b16 %v70
  %v275 = vunpack.c.l.b16 %v71
  %v276 = vunpack.c.h.b16 %v71
  %v277 = vunpack.c.l.b16 %v72
  %v278 = vunpack.c.h.b16 %v72
  %v279 = vunpack.c.l.b16 %v73
  %v280 = vunpack.c.h.b16 %v73
  %v281 = vunpack.c.l.b16 %v74
  %v282 = vunpack.c.h.b16 %v74
  %v283 = vunpack.c.l.b16 %v75
  %v284 = vunpack.c.h.b16 %v75
  %v285 = vunpack.c.l.b16 %v76
  %v286 = vunpack.c.h.b16 %v76
  %v287 = vunpack.c.l.b16 %v77
  %v288 = vunpack.c.h.b16 %v77
  %v289 = vunpack.c.l.b16 %v78
  %v290 = vunpack.c.h.b16 %v78
  %v291 = vunpack.c.l.b16 %v79
  %v292 = vunpack.c.h.b16 %v79
  %v293 = vunpack.c.l.b16 %v80
  %v294 = vunpack.c.h.b16 %v80
  %v295 = vunpack.c.l.b16 %v81
  %v296 = vunpack.c.h.b16 %v81
  %v297 = vunpack.c.l.b16 %v82
  %v298 = vunpack.c.h.b16 %v82
  %v299 = vunpack.c.l.b16 %v83
  %v300 = vunpack.c.h.b16 %v83
  %v301 = vunpack.c.l.b16 %v84
  %v302 = vunpack.c.h.b16 %v84
  %v303 = vunpack.c.l.b16 %v85
  %v304 = vunpack.c.h.b16 %v85
  %v305 = vunpack.c.l.b16 %v86
  %v306 = vunpack.c.h.b16 %v86
  %v307 = vunpack.c.l.b16 %v87
  %v308 = vunpack.c.h.b16 %v87
  %v309 = vunpack.c.l.b16 %v88
  %v310 = vunpack.c.h.b16 %v88
  %v311 = vpack.c.b16 %v249, %v247
  %v312 = vpack.c.b16 %v250, %v248
  %v313 = vpack.c.b16 %v253, %v251
  %v314 = vpack.c.b16 %v254, %v252
  %v315 = vpack.c.b16 %v257, %v255
  %v316 = vpack.c.b16 %v258, %v256
  %v317 = vpack.c.b16 %v261, %v259
  %v318 = vpack.c.b16 %v262, %v260
  %v319 = vpack.c.b16 %v265, %v263
  %v320 = vpack.c.b16 %v266, %v264
  %v321 = vpack.c.b16 %v269, %v267
  %v322 = vpack.c.b16 %v270, %v268
  %v323 = vpack.c.b16 %v273, %v271
  %v324 = vpack.c.b16 %v274, %v272
  %v325 = vpack.c.b16 %v277, %v275
  %v326 = vpack.c.b16 %v278, %v276
  %v327 = vpack.c.b16 %v281, %v279
  %v328 = vpack.c.b16 %v282, %v280
  %v329 = vpack.c.b16 %v285, %v283
  %v330 = vpack.c.b16 %v286, %v284
  %v331 = vpack.c.b16 %v289, %v287
  %v332 = vpack.c.b16 %v290, %v288
  %v333 = vpack.c.b16 %v293, %v291
  %v334 = vpack.c.b16 %v294, %v292
  %v335 = vpack.c.b16 %v297, %v295
  %v336 = vpack.c.b16 %v298, %v296
  %v337 = vpack.c.b16 %v301, %v299
  %v338 = vpack.c.b16 %v302, %v300
  %v339 = vpack.c.b16 %v305, %v303
  %v340 = vpack.c.b16 %v306, %v304
  %v341 = vpack.c.b16 %v309, %v307
  %v342 = vpack.c.b16 %v310, %v308
  %375 = vmatpush.bf16.msra.mxu0 %v325
  %376 = vmatpush.bf16.msra.mxu0 %v323
  %377 = vmatpush.bf16.msra.mxu0 %v321
  %378 = vmatpush.bf16.msra.mxu0 %v319
  %379 = vmatpush.bf16.msra.mxu0 %v317
  %380 = vmatpush.bf16.msra.mxu0 %v315
  %381 = vmatpush.bf16.msra.mxu0 %v313
  %382 = vmatpush.bf16.msra.mxu0 %v311
  %383 = vmatmul.bf16.gmra.mxu0 %v167
  %v384 = vpop.f32.mrf.mxu0
  %v385 = vadd.f32 %v91, %v384
  %v386 = vpop.f32.mrf.mxu0
  %v387 = vadd.f32 %v91, %v386
  %388 = vmatmul.bf16.gmra.mxu0 %v169
  %v389 = vpop.f32.mrf.mxu0
  %v390 = vadd.f32 %v91, %v389
  %v391 = vpop.f32.mrf.mxu0
  %v392 = vadd.f32 %v91, %v391
  %393 = vmatmul.bf16.gmra.mxu0 %v171
  %v394 = vpop.f32.mrf.mxu0
  %v395 = vadd.f32 %v91, %v394
  %v396 = vpop.f32.mrf.mxu0
  %v397 = vadd.f32 %v91, %v396
  %398 = vmatmul.bf16.gmra.mxu0 %v173
  %v399 = vpop.f32.mrf.mxu0
  %v400 = vadd.f32 %v91, %v399
  %v401 = vpop.f32.mrf.mxu0
  %v402 = vadd.f32 %v91, %v401
  %403 = vmatmul.bf16.gmra.mxu0 %v175
  %v404 = vpop.f32.mrf.mxu0
  %v405 = vadd.f32 %v91, %v404
  %v406 = vpop.f32.mrf.mxu0
  %v407 = vadd.f32 %v91, %v406
  %408 = vmatmul.bf16.gmra.mxu0 %v177
  %v409 = vpop.f32.mrf.mxu0
  %v410 = vadd.f32 %v91, %v409
  %v411 = vpop.f32.mrf.mxu0
  %v412 = vadd.f32 %v91, %v411
  %413 = vmatmul.bf16.gmra.mxu0 %v179
  %v414 = vpop.f32.mrf.mxu0
  %v415 = vadd.f32 %v91, %v414
  %v416 = vpop.f32.mrf.mxu0
  %v417 = vadd.f32 %v91, %v416
  %418 = vmatmul.bf16.gmra.mxu0 %v181
  %v419 = vpop.f32.mrf.mxu0
  %v420 = vadd.f32 %v91, %v419
  %v421 = vpop.f32.mrf.mxu0
  %v422 = vadd.f32 %v91, %v421
  %423 = vmatmul.bf16.gmra.mxu0 %v183
  %v424 = vpop.f32.mrf.mxu0
  %v425 = vadd.f32 %v91, %v424
  %v426 = vpop.f32.mrf.mxu0
  %v427 = vadd.f32 %v91, %v426
  %428 = vmatmul.bf16.gmra.mxu0 %v185
  %v429 = vpop.f32.mrf.mxu0
  %v430 = vadd.f32 %v91, %v429
  %v431 = vpop.f32.mrf.mxu0
  %v432 = vadd.f32 %v91, %v431
  %433 = vmatmul.bf16.gmra.mxu0 %v187
  %v434 = vpop.f32.mrf.mxu0
  %v435 = vadd.f32 %v91, %v434
  %v436 = vpop.f32.mrf.mxu0
  %v437 = vadd.f32 %v91, %v436
  %438 = vmatmul.bf16.gmra.mxu0 %v189
  %v439 = vpop.f32.mrf.mxu0
  %v440 = vadd.f32 %v91, %v439
  %v441 = vpop.f32.mrf.mxu0
  %v442 = vadd.f32 %v91, %v441
  %443 = vdwg.mxu0
  %444 = vmatpush.bf16.msra.mxu0 %v341
  %445 = vmatpush.bf16.msra.mxu0 %v339
  %446 = vmatpush.bf16.msra.mxu0 %v337
  %447 = vmatpush.bf16.msra.mxu0 %v335
  %448 = vmatpush.bf16.msra.mxu0 %v333
  %449 = vmatpush.bf16.msra.mxu0 %v331
  %450 = vmatpush.bf16.msra.mxu0 %v329
  %451 = vmatpush.bf16.msra.mxu0 %v327
  %452 = vmatmul.bf16.gmra.mxu0 %v168
  %v453 = vpop.f32.mrf.mxu0
  %v454 = vadd.f32 %v385, %v453
  %v455 = vpop.f32.mrf.mxu0
  %v456 = vadd.f32 %v387, %v455
  %457 = vmatmul.bf16.gmra.mxu0 %v170
  %v458 = vpop.f32.mrf.mxu0
  %v459 = vadd.f32 %v390, %v458
  %v460 = vpop.f32.mrf.mxu0
  %v461 = vadd.f32 %v392, %v460
  %462 = vmatmul.bf16.gmra.mxu0 %v172
  %v463 = vpop.f32.mrf.mxu0
  %v464 = vadd.f32 %v395, %v463
  %v465 = vpop.f32.mrf.mxu0
  %v466 = vadd.f32 %v397, %v465
  %467 = vmatmul.bf16.gmra.mxu0 %v174
  %v468 = vpop.f32.mrf.mxu0
  %v469 = vadd.f32 %v400, %v468
  %v470 = vpop.f32.mrf.mxu0
  %v471 = vadd.f32 %v402, %v470
  %472 = vmatmul.bf16.gmra.mxu0 %v176
  %v473 = vpop.f32.mrf.mxu0
  %v474 = vadd.f32 %v405, %v473
  %v475 = vpop.f32.mrf.mxu0
  %v476 = vadd.f32 %v407, %v475
  %477 = vmatmul.bf16.gmra.mxu0 %v178
  %v478 = vpop.f32.mrf.mxu0
  %v479 = vadd.f32 %v410, %v478
  %v480 = vpop.f32.mrf.mxu0
  %v481 = vadd.f32 %v412, %v480
  %482 = vmatmul.bf16.gmra.mxu0 %v180
  %v483 = vpop.f32.mrf.mxu0
  %v484 = vadd.f32 %v415, %v483
  %v485 = vpop.f32.mrf.mxu0
  %v486 = vadd.f32 %v417, %v485
  %487 = vmatmul.bf16.gmra.mxu0 %v182
  %v488 = vpop.f32.mrf.mxu0
  %v489 = vadd.f32 %v420, %v488
  %v490 = vpop.f32.mrf.mxu0
  %v491 = vadd.f32 %v422, %v490
  %492 = vmatmul.bf16.gmra.mxu0 %v184
  %v493 = vpop.f32.mrf.mxu0
  %v494 = vadd.f32 %v425, %v493
  %v495 = vpop.f32.mrf.mxu0
  %v496 = vadd.f32 %v427, %v495
  %497 = vmatmul.bf16.gmra.mxu0 %v186
  %v498 = vpop.f32.mrf.mxu0
  %v499 = vadd.f32 %v430, %v498
  %v500 = vpop.f32.mrf.mxu0
  %v501 = vadd.f32 %v432, %v500
  %502 = vmatmul.bf16.gmra.mxu0 %v188
  %v503 = vpop.f32.mrf.mxu0
  %v504 = vadd.f32 %v435, %v503
  %v505 = vpop.f32.mrf.mxu0
  %v506 = vadd.f32 %v437, %v505
  %507 = vmatmul.bf16.gmra.mxu0 %v190
  %v508 = vpop.f32.mrf.mxu0
  %v509 = vadd.f32 %v440, %v508
  %v510 = vpop.f32.mrf.mxu0
  %v511 = vadd.f32 %v442, %v510
  %512 = vdwg.mxu0
  %513 = vmatpush.bf16.msra.mxu0 %v326
  %514 = vmatpush.bf16.msra.mxu0 %v324
  %515 = vmatpush.bf16.msra.mxu0 %v322
  %516 = vmatpush.bf16.msra.mxu0 %v320
  %517 = vmatpush.bf16.msra.mxu0 %v318
  %518 = vmatpush.bf16.msra.mxu0 %v316
  %519 = vmatpush.bf16.msra.mxu0 %v314
  %520 = vmatpush.bf16.msra.mxu0 %v312
  %521 = vmatmul.bf16.gmra.mxu0 %v167
  %v522 = vpop.f32.mrf.mxu0
  %v523 = vadd.f32 %v92, %v522
  %v524 = vpop.f32.mrf.mxu0
  %v525 = vadd.f32 %v92, %v524
  %526 = vmatmul.bf16.gmra.mxu0 %v169
  %v527 = vpop.f32.mrf.mxu0
  %v528 = vadd.f32 %v92, %v527
  %v529 = vpop.f32.mrf.mxu0
  %v530 = vadd.f32 %v92, %v529
  %531 = vmatmul.bf16.gmra.mxu0 %v171
  %v532 = vpop.f32.mrf.mxu0
  %v533 = vadd.f32 %v92, %v532
  %v534 = vpop.f32.mrf.mxu0
  %v535 = vadd.f32 %v92, %v534
  %536 = vmatmul.bf16.gmra.mxu0 %v173
  %v537 = vpop.f32.mrf.mxu0
  %v538 = vadd.f32 %v92, %v537
  %v539 = vpop.f32.mrf.mxu0
  %v540 = vadd.f32 %v92, %v539
  %541 = vmatmul.bf16.gmra.mxu0 %v175
  %v542 = vpop.f32.mrf.mxu0
  %v543 = vadd.f32 %v92, %v542
  %v544 = vpop.f32.mrf.mxu0
  %v545 = vadd.f32 %v92, %v544
  %546 = vmatmul.bf16.gmra.mxu0 %v177
  %v547 = vpop.f32.mrf.mxu0
  %v548 = vadd.f32 %v92, %v547
  %v549 = vpop.f32.mrf.mxu0
  %v550 = vadd.f32 %v92, %v549
  %551 = vmatmul.bf16.gmra.mxu0 %v179
  %v552 = vpop.f32.mrf.mxu0
  %v553 = vadd.f32 %v92, %v552
  %v554 = vpop.f32.mrf.mxu0
  %v555 = vadd.f32 %v92, %v554
  %556 = vmatmul.bf16.gmra.mxu0 %v181
  %v557 = vpop.f32.mrf.mxu0
  %v558 = vadd.f32 %v92, %v557
  %v559 = vpop.f32.mrf.mxu0
  %v560 = vadd.f32 %v92, %v559
  %561 = vmatmul.bf16.gmra.mxu0 %v183
  %v562 = vpop.f32.mrf.mxu0
  %v563 = vadd.f32 %v92, %v562
  %v564 = vpop.f32.mrf.mxu0
  %v565 = vadd.f32 %v92, %v564
  %566 = vmatmul.bf16.gmra.mxu0 %v185
  %v567 = vpop.f32.mrf.mxu0
  %v568 = vadd.f32 %v92, %v567
  %v569 = vpop.f32.mrf.mxu0
  %v570 = vadd.f32 %v92, %v569
  %571 = vmatmul.bf16.gmra.mxu0 %v187
  %v572 = vpop.f32.mrf.mxu0
  %v573 = vadd.f32 %v92, %v572
  %v574 = vpop.f32.mrf.mxu0
  %v575 = vadd.f32 %v92, %v574
  %576 = vmatmul.bf16.gmra.mxu0 %v189
  %v577 = vpop.f32.mrf.mxu0
  %v578 = vadd.f32 %v92, %v577
  %v579 = vpop.f32.mrf.mxu0
  %v580 = vadd.f32 %v92, %v579
  %581 = vdwg.mxu0
  %582 = vmatpush.bf16.msra.mxu0 %v342
  %583 = vmatpush.bf16.msra.mxu0 %v340
  %584 = vmatpush.bf16.msra.mxu0 %v338
  %585 = vmatpush.bf16.msra.mxu0 %v336
  %586 = vmatpush.bf16.msra.mxu0 %v334
  %587 = vmatpush.bf16.msra.mxu0 %v332
  %588 = vmatpush.bf16.msra.mxu0 %v330
  %589 = vmatpush.bf16.msra.mxu0 %v328
  %590 = vmatmul.bf16.gmra.mxu0 %v168
  %v591 = vpop.f32.mrf.mxu0
  %v592 = vadd.f32 %v523, %v591
  %v593 = vpop.f32.mrf.mxu0
  %v594 = vadd.f32 %v525, %v593
  %595 = vmatmul.bf16.gmra.mxu0 %v170
  %v596 = vpop.f32.mrf.mxu0
  %v597 = vadd.f32 %v528, %v596
  %v598 = vpop.f32.mrf.mxu0
  %v599 = vadd.f32 %v530, %v598
  %600 = vmatmul.bf16.gmra.mxu0 %v172
  %v601 = vpop.f32.mrf.mxu0
  %v602 = vadd.f32 %v533, %v601
  %v603 = vpop.f32.mrf.mxu0
  %v604 = vadd.f32 %v535, %v603
  %605 = vmatmul.bf16.gmra.mxu0 %v174
  %v606 = vpop.f32.mrf.mxu0
  %v607 = vadd.f32 %v538, %v606
  %v608 = vpop.f32.mrf.mxu0
  %v609 = vadd.f32 %v540, %v608
  %610 = vmatmul.bf16.gmra.mxu0 %v176
  %v611 = vpop.f32.mrf.mxu0
  %v612 = vadd.f32 %v543, %v611
  %v613 = vpop.f32.mrf.mxu0
  %v614 = vadd.f32 %v545, %v613
  %615 = vmatmul.bf16.gmra.mxu0 %v178
  %v616 = vpop.f32.mrf.mxu0
  %v617 = vadd.f32 %v548, %v616
  %v618 = vpop.f32.mrf.mxu0
  %v619 = vadd.f32 %v550, %v618
  %620 = vmatmul.bf16.gmra.mxu0 %v180
  %v621 = vpop.f32.mrf.mxu0
  %v622 = vadd.f32 %v553, %v621
  %v623 = vpop.f32.mrf.mxu0
  %v624 = vadd.f32 %v555, %v623
  %625 = vmatmul.bf16.gmra.mxu0 %v182
  %v626 = vpop.f32.mrf.mxu0
  %v627 = vadd.f32 %v558, %v626
  %v628 = vpop.f32.mrf.mxu0
  %v629 = vadd.f32 %v560, %v628
  %630 = vmatmul.bf16.gmra.mxu0 %v184
  %v631 = vpop.f32.mrf.mxu0
  %v632 = vadd.f32 %v563, %v631
  %v633 = vpop.f32.mrf.mxu0
  %v634 = vadd.f32 %v565, %v633
  %635 = vmatmul.bf16.gmra.mxu0 %v186
  %v636 = vpop.f32.mrf.mxu0
  %v637 = vadd.f32 %v568, %v636
  %v638 = vpop.f32.mrf.mxu0
  %v639 = vadd.f32 %v570, %v638
  %640 = vmatmul.bf16.gmra.mxu0 %v188
  %v641 = vpop.f32.mrf.mxu0
  %v642 = vadd.f32 %v573, %v641
  %v643 = vpop.f32.mrf.mxu0
  %v644 = vadd.f32 %v575, %v643
  %645 = vmatmul.bf16.gmra.mxu0 %v190
  %v646 = vpop.f32.mrf.mxu0
  %v647 = vadd.f32 %v578, %v646
  %v648 = vpop.f32.mrf.mxu0
  %v649 = vadd.f32 %v580, %v648
  %650 = vdwg.mxu0
  %v651 = vpack.c.bf16 %v592, %v454
  %v652 = vpack.c.bf16 %v594, %v456
  %v653 = vpack.c.bf16 %v597, %v459
  %v654 = vpack.c.bf16 %v599, %v461
  %v655 = vpack.c.bf16 %v602, %v464
  %v656 = vpack.c.bf16 %v604, %v466
  %v657 = vpack.c.bf16 %v607, %v469
  %v658 = vpack.c.bf16 %v609, %v471
  %v659 = vpack.c.bf16 %v612, %v474
  %v660 = vpack.c.bf16 %v614, %v476
  %v661 = vpack.c.bf16 %v617, %v479
  %v662 = vpack.c.bf16 %v619, %v481
  %v663 = vpack.c.bf16 %v622, %v484
  %v664 = vpack.c.bf16 %v624, %v486
  %v665 = vpack.c.bf16 %v627, %v489
  %v666 = vpack.c.bf16 %v629, %v491
  %v667 = vpack.c.bf16 %v632, %v494
  %v668 = vpack.c.bf16 %v634, %v496
  %v669 = vpack.c.bf16 %v637, %v499
  %v670 = vpack.c.bf16 %v639, %v501
  %v671 = vpack.c.bf16 %v642, %v504
  %v672 = vpack.c.bf16 %v644, %v506
  %v673 = vpack.c.bf16 %v647, %v509
  %v674 = vpack.c.bf16 %v649, %v511
  %v675 = vunpack.c.l.bf16 %v651
  %v676 = vunpack.c.h.bf16 %v651
  %v677 = vunpack.c.l.bf16 %v652
  %v678 = vunpack.c.h.bf16 %v652
  %v679 = vunpack.c.l.bf16 %v653
  %v680 = vunpack.c.h.bf16 %v653
  %v681 = vunpack.c.l.bf16 %v654
  %v682 = vunpack.c.h.bf16 %v654
  %v683 = vunpack.c.l.bf16 %v655
  %v684 = vunpack.c.h.bf16 %v655
  %v685 = vunpack.c.l.bf16 %v656
  %v686 = vunpack.c.h.bf16 %v656
  %v687 = vunpack.c.l.bf16 %v657
  %v688 = vunpack.c.h.bf16 %v657
  %v689 = vunpack.c.l.bf16 %v658
  %v690 = vunpack.c.h.bf16 %v658
  %v691 = vunpack.c.l.bf16 %v659
  %v692 = vunpack.c.h.bf16 %v659
  %v693 = vunpack.c.l.bf16 %v660
  %v694 = vunpack.c.h.bf16 %v660
  %v695 = vunpack.c.l.bf16 %v661
  %v696 = vunpack.c.h.bf16 %v661
  %v697 = vunpack.c.l.bf16 %v662
  %v698 = vunpack.c.h.bf16 %v662
  %v699 = vunpack.c.l.bf16 %v663
  %v700 = vunpack.c.h.bf16 %v663
  %v701 = vunpack.c.l.bf16 %v664
  %v702 = vunpack.c.h.bf16 %v664
  %v703 = vunpack.c.l.bf16 %v665
  %v704 = vunpack.c.h.bf16 %v665
  %v705 = vunpack.c.l.bf16 %v666
  %v706 = vunpack.c.h.bf16 %v666
  %v707 = vunpack.c.l.bf16 %v667
  %v708 = vunpack.c.h.bf16 %v667
  %v709 = vunpack.c.l.bf16 %v668
  %v710 = vunpack.c.h.bf16 %v668
  %v711 = vunpack.c.l.bf16 %v669
  %v712 = vunpack.c.h.bf16 %v669
  %v713 = vunpack.c.l.bf16 %v670
  %v714 = vunpack.c.h.bf16 %v670
  %v715 = vunpack.c.l.bf16 %v671
  %v716 = vunpack.c.h.bf16 %v671
  %v717 = vunpack.c.l.bf16 %v672
  %v718 = vunpack.c.h.bf16 %v672
  %v719 = vunpack.c.l.bf16 %v673
  %v720 = vunpack.c.h.bf16 %v673
  %v721 = vunpack.c.l.bf16 %v674
  %v722 = vunpack.c.h.bf16 %v674
  %v723 = vtanh.pop %v675
  %v724 = vtanh.pop %v676
  %v725 = vtanh.pop %v677
  %v726 = vtanh.pop %v678
  %v727 = vtanh.pop %v679
  %v728 = vtanh.pop %v680
  %v729 = vtanh.pop %v681
  %v730 = vtanh.pop %v682
  %v731 = vtanh.pop %v683
  %v732 = vtanh.pop %v684
  %v733 = vtanh.pop %v685
  %v734 = vtanh.pop %v686
  %v735 = vtanh.pop %v687
  %v736 = vtanh.pop %v688
  %v737 = vtanh.pop %v689
  %v738 = vtanh.pop %v690
  %v739 = vtanh.pop %v691
  %v740 = vtanh.pop %v692
  %v741 = vtanh.pop %v693
  %v742 = vtanh.pop %v694
  %v743 = vtanh.pop %v695
  %v744 = vtanh.pop %v696
  %v745 = vtanh.pop %v697
  %v746 = vtanh.pop %v698
  %v747 = vtanh.pop %v699
  %v748 = vtanh.pop %v700
  %v749 = vtanh.pop %v701
  %v750 = vtanh.pop %v702
  %v751 = vtanh.pop %v703
  %v752 = vtanh.pop %v704
  %v753 = vtanh.pop %v705
  %v754 = vtanh.pop %v706
  %v755 = vtanh.pop %v707
  %v756 = vtanh.pop %v708
  %v757 = vtanh.pop %v709
  %v758 = vtanh.pop %v710
  %v759 = vtanh.pop %v711
  %v760 = vtanh.pop %v712
  %v761 = vtanh.pop %v713
  %v762 = vtanh.pop %v714
  %v763 = vtanh.pop %v715
  %v764 = vtanh.pop %v716
  %v765 = vtanh.pop %v717
  %v766 = vtanh.pop %v718
  %v767 = vtanh.pop %v719
  %v768 = vtanh.pop %v720
  %v769 = vtanh.pop %v721
  %v770 = vtanh.pop %v722
  %v771 = vpack.c.bf16 %v724, %v723
  %v772 = vpack.c.bf16 %v726, %v725
  %v773 = vpack.c.bf16 %v728, %v727
  %v774 = vpack.c.bf16 %v730, %v729
  %v775 = vpack.c.bf16 %v732, %v731
  %v776 = vpack.c.bf16 %v734, %v733
  %v777 = vpack.c.bf16 %v736, %v735
  %v778 = vpack.c.bf16 %v738, %v737
  %v779 = vpack.c.bf16 %v740, %v739
  %v780 = vpack.c.bf16 %v742, %v741
  %v781 = vpack.c.bf16 %v744, %v743
  %v782 = vpack.c.bf16 %v746, %v745
  %v783 = vpack.c.bf16 %v748, %v747
  %v784 = vpack.c.bf16 %v750, %v749
  %v785 = vpack.c.bf16 %v752, %v751
  %v786 = vpack.c.bf16 %v754, %v753
  %v787 = vpack.c.bf16 %v756, %v755
  %v788 = vpack.c.bf16 %v758, %v757
  %v789 = vpack.c.bf16 %v760, %v759
  %v790 = vpack.c.bf16 %v762, %v761
  %v791 = vpack.c.bf16 %v764, %v763
  %v792 = vpack.c.bf16 %v766, %v765
  %v793 = vpack.c.bf16 %v768, %v767
  %v794 = vpack.c.bf16 %v770, %v769
  %v795 = vld [vmem:[%s3] sm:$0xff]
  %v796 = vld [vmem:[%s3 + $0x8] sm:$0xff]
  %v797 = vld [vmem:[%s3 + $0x10] sm:$0xff]
  %v798 = vld [vmem:[%s3 + $0x18] sm:$0xff]
  %v799 = vld [vmem:[%s3 + $0x20] sm:$0xff]
  %v800 = vld [vmem:[%s3 + $0x28] sm:$0xff]
  %v801 = vld [vmem:[%s3 + $0x30] sm:$0xff]
  %v802 = vld [vmem:[%s3 + $0x38] sm:$0xff]
  %v803 = vld [vmem:[%s3 + $0x40] sm:$0xff]
  %v804 = vld [vmem:[%s3 + $0x48] sm:$0xff]
  %v805 = vld [vmem:[%s3 + $0x50] sm:$0xff]
  %v806 = vld [vmem:[%s3 + $0x58] sm:$0xff]
  %v807 = vld [vmem:[%s3 + $0x60] sm:$0xff]
  %v808 = vld [vmem:[%s3 + $0x68] sm:$0xff]
  %v809 = vld [vmem:[%s3 + $0x70] sm:$0xff]
  %v810 = vld [vmem:[%s3 + $0x78] sm:$0xff]
  %v811 = vld [vmem:[%s3 + $0x80] sm:$0xff]
  %v812 = vld [vmem:[%s3 + $0x88] sm:$0xff]
  %v813 = vld [vmem:[%s3 + $0x90] sm:$0xff]
  %v814 = vld [vmem:[%s3 + $0x98] sm:$0xff]
  %v815 = vld [vmem:[%s3 + $0xa0] sm:$0xff]
  %v816 = vld [vmem:[%s3 + $0xa8] sm:$0xff]
  %v817 = vld [vmem:[%s3 + $0xb0] sm:$0xff]
  %v818 = vld [vmem:[%s3 + $0xb8] sm:$0xff]
  %v819 = vld [vmem:[%s3 + $0xc0] sm:$0xff]
  %v820 = vld [vmem:[%s3 + $0xc8] sm:$0xff]
  %v821 = vld [vmem:[%s3 + $0xd0] sm:$0xff]
  %v822 = vld [vmem:[%s3 + $0xd8] sm:$0xff]
  %v823 = vld [vmem:[%s3 + $0xe0] sm:$0xff]
  %v824 = vld [vmem:[%s3 + $0xe8] sm:$0xff]
  %v825 = vld [vmem:[%s3 + $0xf0] sm:$0xff]
  %v826 = vld [vmem:[%s3 + $0xf8] sm:$0xff]
  %v827 = vld [vmem:[%s3 + $0x100] sm:$0xff]
  %v828 = vld [vmem:[%s3 + $0x108] sm:$0xff]
  %v829 = vld [vmem:[%s3 + $0x110] sm:$0xff]
  %v830 = vld [vmem:[%s3 + $0x118] sm:$0xff]
  %v831 = vld [vmem:[%s3 + $0x120] sm:$0xff]
  %v832 = vld [vmem:[%s3 + $0x128] sm:$0xff]
  %v833 = vld [vmem:[%s3 + $0x130] sm:$0xff]
  %v834 = vld [vmem:[%s3 + $0x138] sm:$0xff]
  %v835 = vld [vmem:[%s3 + $0x140] sm:$0xff]
  %v836 = vld [vmem:[%s3 + $0x148] sm:$0xff]
  %v837 = vld [vmem:[%s3 + $0x150] sm:$0xff]
  %v838 = vld [vmem:[%s3 + $0x158] sm:$0xff]
  %v839 = vld [vmem:[%s3 + $0x160] sm:$0xff]
  %v840 = vld [vmem:[%s3 + $0x168] sm:$0xff]
  %v841 = vld [vmem:[%s3 + $0x170] sm:$0xff]
  %v842 = vld [vmem:[%s3 + $0x178] sm:$0xff]
  %v843 = vld [vmem:[%s3 + $0x180] sm:$0xff]
  %v844 = vld [vmem:[%s3 + $0x188] sm:$0xff]
  %v845 = vld [vmem:[%s3 + $0x190] sm:$0xff]
  %v846 = vld [vmem:[%s3 + $0x198] sm:$0xff]
  %v847 = vld [vmem:[%s3 + $0x1a0] sm:$0xff]
  %v848 = vld [vmem:[%s3 + $0x1a8] sm:$0xff]
  %v849 = vld [vmem:[%s3 + $0x1b0] sm:$0xff]
  %v850 = vld [vmem:[%s3 + $0x1b8] sm:$0xff]
  %v851 = vld [vmem:[%s3 + $0x1c0] sm:$0xff]
  %v852 = vld [vmem:[%s3 + $0x1c8] sm:$0xff]
  %v853 = vld [vmem:[%s3 + $0x1d0] sm:$0xff]
  %v854 = vld [vmem:[%s3 + $0x1d8] sm:$0xff]
  %v855 = vld [vmem:[%s3 + $0x1e0] sm:$0xff]
  %v856 = vld [vmem:[%s3 + $0x1e8] sm:$0xff]
  %v857 = vld [vmem:[%s3 + $0x1f0] sm:$0xff]
  %v858 = vld [vmem:[%s3 + $0x1f8] sm:$0xff]
  %v859 = vld [vmem:[%s3 + $0x200] sm:$0xff]
  %v860 = vld [vmem:[%s3 + $0x208] sm:$0xff]
  %v861 = vld [vmem:[%s3 + $0x210] sm:$0xff]
  %v862 = vld [vmem:[%s3 + $0x218] sm:$0xff]
  %v863 = vld [vmem:[%s3 + $0x220] sm:$0xff]
  %v864 = vld [vmem:[%s3 + $0x228] sm:$0xff]
  %v865 = vld [vmem:[%s3 + $0x230] sm:$0xff]
  %v866 = vld [vmem:[%s3 + $0x238] sm:$0xff]
  %v867 = vld [vmem:[%s3 + $0x240] sm:$0xff]
  %v868 = vld [vmem:[%s3 + $0x248] sm:$0xff]
  %v869 = vld [vmem:[%s3 + $0x250] sm:$0xff]
  %v870 = vld [vmem:[%s3 + $0x258] sm:$0xff]
  %v871 = vld [vmem:[%s3 + $0x260] sm:$0xff]
  %v872 = vld [vmem:[%s3 + $0x268] sm:$0xff]
  %v873 = vld [vmem:[%s3 + $0x270] sm:$0xff]
  %v874 = vld [vmem:[%s3 + $0x278] sm:$0xff]
  %v875 = vld [vmem:[%s3 + $0x280] sm:$0xff]
  %v876 = vld [vmem:[%s3 + $0x288] sm:$0xff]
  %v877 = vld [vmem:[%s3 + $0x290] sm:$0xff]
  %v878 = vld [vmem:[%s3 + $0x298] sm:$0xff]
  %v879 = vld [vmem:[%s3 + $0x2a0] sm:$0xff]
  %v880 = vld [vmem:[%s3 + $0x2a8] sm:$0xff]
  %v881 = vld [vmem:[%s3 + $0x2b0] sm:$0xff]
  %v882 = vld [vmem:[%s3 + $0x2b8] sm:$0xff]
  %v883 = vld [vmem:[%s3 + $0x2c0] sm:$0xff]
  %v884 = vld [vmem:[%s3 + $0x2c8] sm:$0xff]
  %v885 = vld [vmem:[%s3 + $0x2d0] sm:$0xff]
  %v886 = vld [vmem:[%s3 + $0x2d8] sm:$0xff]
  %v887 = vld [vmem:[%s3 + $0x2e0] sm:$0xff]
  %v888 = vld [vmem:[%s3 + $0x2e8] sm:$0xff]
  %v889 = vld [vmem:[%s3 + $0x2f0] sm:$0xff]
  %v890 = vld [vmem:[%s3 + $0x2f8] sm:$0xff]
  %v891 = vld [vmem:[%s5] sm:$0xf]
  %v892 = vld [vmem:[%s5 + $0x4] sm:$0xf]
  %v893 = vld [vmem:[%s5 + $0x8] sm:$0xf]
  %v894 = vld [vmem:[%s5 + $0xc] sm:$0xf]
  %v895 = vld [vmem:[%s5 + $0x10] sm:$0xf]
  %v896 = vld [vmem:[%s5 + $0x14] sm:$0xf]
  %v897 = vld [vmem:[%s5 + $0x18] sm:$0xf]
  %v898 = vld [vmem:[%s5 + $0x1c] sm:$0xf]
  %v899 = vld [vmem:[%s5 + $0x20] sm:$0xf]
  %v900 = vld [vmem:[%s5 + $0x24] sm:$0xf]
  %v901 = vld [vmem:[%s5 + $0x28] sm:$0xf]
  %v902 = vld [vmem:[%s5 + $0x2c] sm:$0xf]
  %v903 = vld [vmem:[%s5 + $0x30] sm:$0xf]
  %v904 = vld [vmem:[%s5 + $0x34] sm:$0xf]
  %v905 = vld [vmem:[%s5 + $0x38] sm:$0xf]
  %v906 = vld [vmem:[%s5 + $0x3c] sm:$0xf]
  %v907 = vld [vmem:[%s5 + $0x40] sm:$0xf]
  %v908 = vld [vmem:[%s5 + $0x44] sm:$0xf]
  %v909 = vld [vmem:[%s5 + $0x48] sm:$0xf]
  %v910 = vld [vmem:[%s5 + $0x4c] sm:$0xf]
  %v911 = vld [vmem:[%s5 + $0x50] sm:$0xf]
  %v912 = vld [vmem:[%s5 + $0x54] sm:$0xf]
  %v913 = vld [vmem:[%s5 + $0x58] sm:$0xf]
  %v914 = vld [vmem:[%s5 + $0x5c] sm:$0xf]
  %v915 = vld [vmem:[%s5 + $0x60] sm:$0xf]
  %v916 = vld [vmem:[%s5 + $0x64] sm:$0xf]
  %v917 = vld [vmem:[%s5 + $0x68] sm:$0xf]
  %v918 = vld [vmem:[%s5 + $0x6c] sm:$0xf]
  %v919 = vld [vmem:[%s5 + $0x70] sm:$0xf]
  %v920 = vld [vmem:[%s5 + $0x74] sm:$0xf]
  %v921 = vld [vmem:[%s5 + $0x78] sm:$0xf]
  %v922 = vld [vmem:[%s5 + $0x7c] sm:$0xf]
  %v923 = vld [vmem:[%s5 + $0x80] sm:$0xf]
  %v924 = vld [vmem:[%s5 + $0x84] sm:$0xf]
  %v925 = vld [vmem:[%s5 + $0x88] sm:$0xf]
  %v926 = vld [vmem:[%s5 + $0x8c] sm:$0xf]
  %v927 = vld [vmem:[%s5 + $0x90] sm:$0xf]
  %v928 = vld [vmem:[%s5 + $0x94] sm:$0xf]
  %v929 = vld [vmem:[%s5 + $0x98] sm:$0xf]
  %v930 = vld [vmem:[%s5 + $0x9c] sm:$0xf]
  %v931 = vld [vmem:[%s5 + $0xa0] sm:$0xf]
  %v932 = vld [vmem:[%s5 + $0xa4] sm:$0xf]
  %v933 = vld [vmem:[%s5 + $0xa8] sm:$0xf]
  %v934 = vld [vmem:[%s5 + $0xac] sm:$0xf]
  %v935 = vld [vmem:[%s5 + $0xb0] sm:$0xf]
  %v936 = vld [vmem:[%s5 + $0xb4] sm:$0xf]
  %v937 = vld [vmem:[%s5 + $0xb8] sm:$0xf]
  %v938 = vld [vmem:[%s5 + $0xbc] sm:$0xf]
  %v939 = vld [vmem:[%s5 + $0xc0] sm:$0xf]
  %v940 = vld [vmem:[%s5 + $0xc4] sm:$0xf]
  %v941 = vld [vmem:[%s5 + $0xc8] sm:$0xf]
  %v942 = vld [vmem:[%s5 + $0xcc] sm:$0xf]
  %v943 = vld [vmem:[%s5 + $0xd0] sm:$0xf]
  %v944 = vld [vmem:[%s5 + $0xd4] sm:$0xf]
  %v945 = vld [vmem:[%s5 + $0xd8] sm:$0xf]
  %v946 = vld [vmem:[%s5 + $0xdc] sm:$0xf]
  %v947 = vld [vmem:[%s5 + $0xe0] sm:$0xf]
  %v948 = vld [vmem:[%s5 + $0xe4] sm:$0xf]
  %v949 = vld [vmem:[%s5 + $0xe8] sm:$0xf]
  %v950 = vld [vmem:[%s5 + $0xec] sm:$0xf]
  %v951 = vld [vmem:[%s5 + $0xf0] sm:$0xf]
  %v952 = vld [vmem:[%s5 + $0xf4] sm:$0xf]
  %v953 = vld [vmem:[%s5 + $0xf8] sm:$0xf]
  %v954 = vld [vmem:[%s5 + $0xfc] sm:$0xf]
  %v955 = vld [vmem:[%s5 + $0x100] sm:$0xf]
  %v956 = vld [vmem:[%s5 + $0x104] sm:$0xf]
  %v957 = vld [vmem:[%s5 + $0x108] sm:$0xf]
  %v958 = vld [vmem:[%s5 + $0x10c] sm:$0xf]
  %v959 = vld [vmem:[%s5 + $0x110] sm:$0xf]
  %v960 = vld [vmem:[%s5 + $0x114] sm:$0xf]
  %v961 = vld [vmem:[%s5 + $0x118] sm:$0xf]
  %v962 = vld [vmem:[%s5 + $0x11c] sm:$0xf]
  %v963 = vld [vmem:[%s5 + $0x120] sm:$0xf]
  %v964 = vld [vmem:[%s5 + $0x124] sm:$0xf]
  %v965 = vld [vmem:[%s5 + $0x128] sm:$0xf]
  %v966 = vld [vmem:[%s5 + $0x12c] sm:$0xf]
  %v967 = vld [vmem:[%s5 + $0x130] sm:$0xf]
  %v968 = vld [vmem:[%s5 + $0x134] sm:$0xf]
  %v969 = vld [vmem:[%s5 + $0x138] sm:$0xf]
  %v970 = vld [vmem:[%s5 + $0x13c] sm:$0xf]
  %v971 = vld [vmem:[%s5 + $0x140] sm:$0xf]
  %v972 = vld [vmem:[%s5 + $0x144] sm:$0xf]
  %v973 = vld [vmem:[%s5 + $0x148] sm:$0xf]
  %v974 = vld [vmem:[%s5 + $0x14c] sm:$0xf]
  %v975 = vld [vmem:[%s5 + $0x150] sm:$0xf]
  %v976 = vld [vmem:[%s5 + $0x154] sm:$0xf]
  %v977 = vld [vmem:[%s5 + $0x158] sm:$0xf]
  %v978 = vld [vmem:[%s5 + $0x15c] sm:$0xf]
  %v979 = vld [vmem:[%s5 + $0x160] sm:$0xf]
  %v980 = vld [vmem:[%s5 + $0x164] sm:$0xf]
  %v981 = vld [vmem:[%s5 + $0x168] sm:$0xf]
  %v982 = vld [vmem:[%s5 + $0x16c] sm:$0xf]
  %v983 = vld [vmem:[%s5 + $0x170] sm:$0xf]
  %v984 = vld [vmem:[%s5 + $0x174] sm:$0xf]
  %v985 = vld [vmem:[%s5 + $0x178] sm:$0xf]
  %v986 = vld [vmem:[%s5 + $0x17c] sm:$0xf]
  %v987 = vld [vmem:[%s5 + $0x180] sm:$0xf]
  %v988 = vld [vmem:[%s5 + $0x184] sm:$0xf]
  %v989 = vld [vmem:[%s5 + $0x188] sm:$0xf]
  %v990 = vld [vmem:[%s5 + $0x18c] sm:$0xf]
  %v991 = vld [vmem:[%s4] sm:$0x3]
  %v993 = vperm.slane %v991, 0
  %v994 = vperm.slane %v991, 1
  %v997 = vadd.f32 %v993, 0.0
  %v998 = vadd.f32 %v994, 0.0
  %v999 = vld [vmem:[%s6] sm:$0x1]
  %v1001 = vperm.slane %v999, 0
  %v1003 = vadd.f32 %v1001, 0.0
  %v1006 = vunpack.c.l.b16 %v771
  %v1007 = vunpack.c.h.b16 %v771
  %v1008 = vunpack.c.l.b16 %v772
  %v1009 = vunpack.c.h.b16 %v772
  %v1010 = vpack.c.b16 %v1008, %v1006
  %v1011 = vpack.c.b16 %v1009, %v1007
  %v1037 = vunpack.c.l.b16 %v795
  %v1038 = vunpack.c.h.b16 %v795
  %v1039 = vunpack.c.l.b16 %v796
  %v1040 = vunpack.c.h.b16 %v796
  %v1041 = vunpack.c.l.b16 %v797
  %v1042 = vunpack.c.h.b16 %v797
  %v1043 = vunpack.c.l.b16 %v798
  %v1044 = vunpack.c.h.b16 %v798
  %v1045 = vunpack.c.l.b16 %v799
  %v1046 = vunpack.c.h.b16 %v799
  %v1047 = vunpack.c.l.b16 %v800
  %v1048 = vunpack.c.h.b16 %v800
  %v1049 = vunpack.c.l.b16 %v801
  %v1050 = vunpack.c.h.b16 %v801
  %v1051 = vunpack.c.l.b16 %v802
  %v1052 = vunpack.c.h.b16 %v802
  %v1053 = vunpack.c.l.b16 %v803
  %v1054 = vunpack.c.h.b16 %v803
  %v1055 = vunpack.c.l.b16 %v804
  %v1056 = vunpack.c.h.b16 %v804
  %v1057 = vunpack.c.l.b16 %v805
  %v1058 = vunpack.c.h.b16 %v805
  %v1059 = vunpack.c.l.b16 %v806
  %v1060 = vunpack.c.h.b16 %v806
  %v1061 = vunpack.c.l.b16 %v807
  %v1062 = vunpack.c.h.b16 %v807
  %v1063 = vunpack.c.l.b16 %v808
  %v1064 = vunpack.c.h.b16 %v808
  %v1065 = vunpack.c.l.b16 %v809
  %v1066 = vunpack.c.h.b16 %v809
  %v1067 = vunpack.c.l.b16 %v810
  %v1068 = vunpack.c.h.b16 %v810
  %v1069 = vunpack.c.l.b16 %v811
  %v1070 = vunpack.c.h.b16 %v811
  %v1071 = vunpack.c.l.b16 %v812
  %v1072 = vunpack.c.h.b16 %v812
  %v1073 = vunpack.c.l.b16 %v813
  %v1074 = vunpack.c.h.b16 %v813
  %v1075 = vunpack.c.l.b16 %v814
  %v1076 = vunpack.c.h.b16 %v814
  %v1077 = vunpack.c.l.b16 %v815
  %v1078 = vunpack.c.h.b16 %v815
  %v1079 = vunpack.c.l.b16 %v816
  %v1080 = vunpack.c.h.b16 %v816
  %v1081 = vunpack.c.l.b16 %v817
  %v1082 = vunpack.c.h.b16 %v817
  %v1083 = vunpack.c.l.b16 %v818
  %v1084 = vunpack.c.h.b16 %v818
  %v1085 = vpack.c.b16 %v1039, %v1037
  %v1086 = vpack.c.b16 %v1040, %v1038
  %v1087 = vpack.c.b16 %v1043, %v1041
  %v1088 = vpack.c.b16 %v1044, %v1042
  %v1089 = vpack.c.b16 %v1047, %v1045
  %v1090 = vpack.c.b16 %v1048, %v1046
  %v1091 = vpack.c.b16 %v1051, %v1049
  %v1092 = vpack.c.b16 %v1052, %v1050
  %v1093 = vpack.c.b16 %v1055, %v1053
  %v1094 = vpack.c.b16 %v1056, %v1054
  %v1095 = vpack.c.b16 %v1059, %v1057
  %v1096 = vpack.c.b16 %v1060, %v1058
  %v1097 = vpack.c.b16 %v1063, %v1061
  %v1098 = vpack.c.b16 %v1064, %v1062
  %v1099 = vpack.c.b16 %v1067, %v1065
  %v1100 = vpack.c.b16 %v1068, %v1066
  %v1101 = vpack.c.b16 %v1071, %v1069
  %v1102 = vpack.c.b16 %v1072, %v1070
  %v1103 = vpack.c.b16 %v1075, %v1073
  %v1104 = vpack.c.b16 %v1076, %v1074
  %v1105 = vpack.c.b16 %v1079, %v1077
  %v1106 = vpack.c.b16 %v1080, %v1078
  %v1107 = vpack.c.b16 %v1083, %v1081
  %v1108 = vpack.c.b16 %v1084, %v1082
  %vm1133 = vcmask 523264
  %v1135 = vsel %vm1133, %v1011, 0
  %1137 = vmatpush.bf16.msra.mxu0 %v1099
  %1138 = vmatpush.bf16.msra.mxu0 %v1097
  %1139 = vmatpush.bf16.msra.mxu0 %v1095
  %1140 = vmatpush.bf16.msra.mxu0 %v1093
  %1141 = vmatpush.bf16.msra.mxu0 %v1091
  %1142 = vmatpush.bf16.msra.mxu0 %v1089
  %1143 = vmatpush.bf16.msra.mxu0 %v1087
  %1144 = vmatpush.bf16.msra.mxu0 %v1085
  %1145 = vmatmul.bf16.gmra.mxu0 %v1010
  %v1146 = vpop.f32.mrf.mxu0
  %v1147 = vadd.f32 0.0, %v1146
  %v1148 = vpop.f32.mrf.mxu0
  %v1149 = vadd.f32 0.0, %v1148
  %1150 = vdwg.mxu0
  %1151 = vmatpush.bf16.msra.mxu0 0
  %1152 = vmatpush.bf16.msra.mxu0 0
  %1153 = vmatpush.bf16.msra.mxu0 0
  %1154 = vmatpush.bf16.msra.mxu0 0
  %1155 = vmatpush.bf16.msra.mxu0 %v1107
  %1156 = vmatpush.bf16.msra.mxu0 %v1105
  %1157 = vmatpush.bf16.msra.mxu0 %v1103
  %1158 = vmatpush.bf16.msra.mxu0 %v1101
  %1159 = vmatmul.bf16.gmra.mxu0 %v1135
  %v1160 = vpop.f32.mrf.mxu0
  %v1161 = vadd.f32 %v1147, %v1160
  %v1162 = vpop.f32.mrf.mxu0
  %v1163 = vadd.f32 %v1149, %v1162
  %1164 = vdwg.mxu0
  %1165 = vmatpush.bf16.msra.mxu0 %v1100
  %1166 = vmatpush.bf16.msra.mxu0 %v1098
  %1167 = vmatpush.bf16.msra.mxu0 %v1096
  %1168 = vmatpush.bf16.msra.mxu0 %v1094
  %1169 = vmatpush.bf16.msra.mxu0 %v1092
  %1170 = vmatpush.bf16.msra.mxu0 %v1090
  %1171 = vmatpush.bf16.msra.mxu0 %v1088
  %1172 = vmatpush.bf16.msra.mxu0 %v1086
  %1173 = vmatmul.bf16.gmra.mxu0 %v1010
  %v1174 = vpop.f32.mrf.mxu0
  %v1175 = vadd.f32 0.0, %v1174
  %v1176 = vpop.f32.mrf.mxu0
  %v1177 = vadd.f32 0.0, %v1176
  %1178 = vdwg.mxu0
  %1179 = vmatpush.bf16.msra.mxu0 0
  %1180 = vmatpush.bf16.msra.mxu0 0
  %1181 = vmatpush.bf16.msra.mxu0 0
  %1182 = vmatpush.bf16.msra.mxu0 0
  %1183 = vmatpush.bf16.msra.mxu0 %v1108
  %1184 = vmatpush.bf16.msra.mxu0 %v1106
  %1185 = vmatpush.bf16.msra.mxu0 %v1104
  %1186 = vmatpush.bf16.msra.mxu0 %v1102
  %1187 = vmatmul.bf16.gmra.mxu0 %v1135
  %v1188 = vpop.f32.mrf.mxu0
  %v1189 = vadd.f32 %v1175, %v1188
  %v1190 = vpop.f32.mrf.mxu0
  %v1191 = vadd.f32 %v1177, %v1190
  %1192 = vdwg.mxu0
  %v1193 = vadd.f32 %v997, %v1161
  %v1194 = vadd.f32 %v998, %v1189
  %v1195 = vadd.f32 %v997, %v1163
  %v1196 = vadd.f32 %v998, %v1191
  %v1199 = vunpack.c.l.b16 %v773
  %v1200 = vunpack.c.h.b16 %v773
  %v1201 = vunpack.c.l.b16 %v774
  %v1202 = vunpack.c.h.b16 %v774
  %v1203 = vpack.c.b16 %v1201, %v1199
  %v1204 = vpack.c.b16 %v1202, %v1200
  %v1230 = vunpack.c.l.b16 %v819
  %v1231 = vunpack.c.h.b16 %v819
  %v1232 = vunpack.c.l.b16 %v820
  %v1233 = vunpack.c.h.b16 %v820
  %v1234 = vunpack.c.l.b16 %v821
  %v1235 = vunpack.c.h.b16 %v821
  %v1236 = vunpack.c.l.b16 %v822
  %v1237 = vunpack.c.h.b16 %v822
  %v1238 = vunpack.c.l.b16 %v823
  %v1239 = vunpack.c.h.b16 %v823
  %v1240 = vunpack.c.l.b16 %v824
  %v1241 = vunpack.c.h.b16 %v824
  %v1242 = vunpack.c.l.b16 %v825
  %v1243 = vunpack.c.h.b16 %v825
  %v1244 = vunpack.c.l.b16 %v826
  %v1245 = vunpack.c.h.b16 %v826
  %v1246 = vunpack.c.l.b16 %v827
  %v1247 = vunpack.c.h.b16 %v827
  %v1248 = vunpack.c.l.b16 %v828
  %v1249 = vunpack.c.h.b16 %v828
  %v1250 = vunpack.c.l.b16 %v829
  %v1251 = vunpack.c.h.b16 %v829
  %v1252 = vunpack.c.l.b16 %v830
  %v1253 = vunpack.c.h.b16 %v830
  %v1254 = vunpack.c.l.b16 %v831
  %v1255 = vunpack.c.h.b16 %v831
  %v1256 = vunpack.c.l.b16 %v832
  %v1257 = vunpack.c.h.b16 %v832
  %v1258 = vunpack.c.l.b16 %v833
  %v1259 = vunpack.c.h.b16 %v833
  %v1260 = vunpack.c.l.b16 %v834
  %v1261 = vunpack.c.h.b16 %v834
  %v1262 = vunpack.c.l.b16 %v835
  %v1263 = vunpack.c.h.b16 %v835
  %v1264 = vunpack.c.l.b16 %v836
  %v1265 = vunpack.c.h.b16 %v836
  %v1266 = vunpack.c.l.b16 %v837
  %v1267 = vunpack.c.h.b16 %v837
  %v1268 = vunpack.c.l.b16 %v838
  %v1269 = vunpack.c.h.b16 %v838
  %v1270 = vunpack.c.l.b16 %v839
  %v1271 = vunpack.c.h.b16 %v839
  %v1272 = vunpack.c.l.b16 %v840
  %v1273 = vunpack.c.h.b16 %v840
  %v1274 = vunpack.c.l.b16 %v841
  %v1275 = vunpack.c.h.b16 %v841
  %v1276 = vunpack.c.l.b16 %v842
  %v1277 = vunpack.c.h.b16 %v842
  %v1278 = vpack.c.b16 %v1232, %v1230
  %v1279 = vpack.c.b16 %v1233, %v1231
  %v1280 = vpack.c.b16 %v1236, %v1234
  %v1281 = vpack.c.b16 %v1237, %v1235
  %v1282 = vpack.c.b16 %v1240, %v1238
  %v1283 = vpack.c.b16 %v1241, %v1239
  %v1284 = vpack.c.b16 %v1244, %v1242
  %v1285 = vpack.c.b16 %v1245, %v1243
  %v1286 = vpack.c.b16 %v1248, %v1246
  %v1287 = vpack.c.b16 %v1249, %v1247
  %v1288 = vpack.c.b16 %v1252, %v1250
  %v1289 = vpack.c.b16 %v1253, %v1251
  %v1290 = vpack.c.b16 %v1256, %v1254
  %v1291 = vpack.c.b16 %v1257, %v1255
  %v1292 = vpack.c.b16 %v1260, %v1258
  %v1293 = vpack.c.b16 %v1261, %v1259
  %v1294 = vpack.c.b16 %v1264, %v1262
  %v1295 = vpack.c.b16 %v1265, %v1263
  %v1296 = vpack.c.b16 %v1268, %v1266
  %v1297 = vpack.c.b16 %v1269, %v1267
  %v1298 = vpack.c.b16 %v1272, %v1270
  %v1299 = vpack.c.b16 %v1273, %v1271
  %v1300 = vpack.c.b16 %v1276, %v1274
  %v1301 = vpack.c.b16 %v1277, %v1275
  %v1327 = vsel %vm1133, %v1204, 0
  %1329 = vmatpush.bf16.msra.mxu0 %v1292
  %1330 = vmatpush.bf16.msra.mxu0 %v1290
  %1331 = vmatpush.bf16.msra.mxu0 %v1288
  %1332 = vmatpush.bf16.msra.mxu0 %v1286
  %1333 = vmatpush.bf16.msra.mxu0 %v1284
  %1334 = vmatpush.bf16.msra.mxu0 %v1282
  %1335 = vmatpush.bf16.msra.mxu0 %v1280
  %1336 = vmatpush.bf16.msra.mxu0 %v1278
  %1337 = vmatmul.bf16.gmra.mxu0 %v1203
  %v1338 = vpop.f32.mrf.mxu0
  %v1339 = vadd.f32 0.0, %v1338
  %v1340 = vpop.f32.mrf.mxu0
  %v1341 = vadd.f32 0.0, %v1340
  %1342 = vdwg.mxu0
  %1343 = vmatpush.bf16.msra.mxu0 0
  %1344 = vmatpush.bf16.msra.mxu0 0
  %1345 = vmatpush.bf16.msra.mxu0 0
  %1346 = vmatpush.bf16.msra.mxu0 0
  %1347 = vmatpush.bf16.msra.mxu0 %v1300
  %1348 = vmatpush.bf16.msra.mxu0 %v1298
  %1349 = vmatpush.bf16.msra.mxu0 %v1296
  %1350 = vmatpush.bf16.msra.mxu0 %v1294
  %1351 = vmatmul.bf16.gmra.mxu0 %v1327
  %v1352 = vpop.f32.mrf.mxu0
  %v1353 = vadd.f32 %v1339, %v1352
  %v1354 = vpop.f32.mrf.mxu0
  %v1355 = vadd.f32 %v1341, %v1354
  %1356 = vdwg.mxu0
  %1357 = vmatpush.bf16.msra.mxu0 %v1293
  %1358 = vmatpush.bf16.msra.mxu0 %v1291
  %1359 = vmatpush.bf16.msra.mxu0 %v1289
  %1360 = vmatpush.bf16.msra.mxu0 %v1287
  %1361 = vmatpush.bf16.msra.mxu0 %v1285
  %1362 = vmatpush.bf16.msra.mxu0 %v1283
  %1363 = vmatpush.bf16.msra.mxu0 %v1281
  %1364 = vmatpush.bf16.msra.mxu0 %v1279
  %1365 = vmatmul.bf16.gmra.mxu0 %v1203
  %v1366 = vpop.f32.mrf.mxu0
  %v1367 = vadd.f32 0.0, %v1366
  %v1368 = vpop.f32.mrf.mxu0
  %v1369 = vadd.f32 0.0, %v1368
  %1370 = vdwg.mxu0
  %1371 = vmatpush.bf16.msra.mxu0 0
  %1372 = vmatpush.bf16.msra.mxu0 0
  %1373 = vmatpush.bf16.msra.mxu0 0
  %1374 = vmatpush.bf16.msra.mxu0 0
  %1375 = vmatpush.bf16.msra.mxu0 %v1301
  %1376 = vmatpush.bf16.msra.mxu0 %v1299
  %1377 = vmatpush.bf16.msra.mxu0 %v1297
  %1378 = vmatpush.bf16.msra.mxu0 %v1295
  %1379 = vmatmul.bf16.gmra.mxu0 %v1327
  %v1380 = vpop.f32.mrf.mxu0
  %v1381 = vadd.f32 %v1367, %v1380
  %v1382 = vpop.f32.mrf.mxu0
  %v1383 = vadd.f32 %v1369, %v1382
  %1384 = vdwg.mxu0
  %v1385 = vadd.f32 %v1193, %v1353
  %v1386 = vadd.f32 %v1194, %v1381
  %v1387 = vadd.f32 %v1195, %v1355
  %v1388 = vadd.f32 %v1196, %v1383
  %v1391 = vunpack.c.l.b16 %v775
  %v1392 = vunpack.c.h.b16 %v775
  %v1393 = vunpack.c.l.b16 %v776
  %v1394 = vunpack.c.h.b16 %v776
  %v1395 = vpack.c.b16 %v1393, %v1391
  %v1396 = vpack.c.b16 %v1394, %v1392
  %v1422 = vunpack.c.l.b16 %v843
  %v1423 = vunpack.c.h.b16 %v843
  %v1424 = vunpack.c.l.b16 %v844
  %v1425 = vunpack.c.h.b16 %v844
  %v1426 = vunpack.c.l.b16 %v845
  %v1427 = vunpack.c.h.b16 %v845
  %v1428 = vunpack.c.l.b16 %v846
  %v1429 = vunpack.c.h.b16 %v846
  %v1430 = vunpack.c.l.b16 %v847
  %v1431 = vunpack.c.h.b16 %v847
  %v1432 = vunpack.c.l.b16 %v848
  %v1433 = vunpack.c.h.b16 %v848
  %v1434 = vunpack.c.l.b16 %v849
  %v1435 = vunpack.c.h.b16 %v849
  %v1436 = vunpack.c.l.b16 %v850
  %v1437 = vunpack.c.h.b16 %v850
  %v1438 = vunpack.c.l.b16 %v851
  %v1439 = vunpack.c.h.b16 %v851
  %v1440 = vunpack.c.l.b16 %v852
  %v1441 = vunpack.c.h.b16 %v852
  %v1442 = vunpack.c.l.b16 %v853
  %v1443 = vunpack.c.h.b16 %v853
  %v1444 = vunpack.c.l.b16 %v854
  %v1445 = vunpack.c.h.b16 %v854
  %v1446 = vunpack.c.l.b16 %v855
  %v1447 = vunpack.c.h.b16 %v855
  %v1448 = vunpack.c.l.b16 %v856
  %v1449 = vunpack.c.h.b16 %v856
  %v1450 = vunpack.c.l.b16 %v857
  %v1451 = vunpack.c.h.b16 %v857
  %v1452 = vunpack.c.l.b16 %v858
  %v1453 = vunpack.c.h.b16 %v858
  %v1454 = vunpack.c.l.b16 %v859
  %v1455 = vunpack.c.h.b16 %v859
  %v1456 = vunpack.c.l.b16 %v860
  %v1457 = vunpack.c.h.b16 %v860
  %v1458 = vunpack.c.l.b16 %v861
  %v1459 = vunpack.c.h.b16 %v861
  %v1460 = vunpack.c.l.b16 %v862
  %v1461 = vunpack.c.h.b16 %v862
  %v1462 = vunpack.c.l.b16 %v863
  %v1463 = vunpack.c.h.b16 %v863
  %v1464 = vunpack.c.l.b16 %v864
  %v1465 = vunpack.c.h.b16 %v864
  %v1466 = vunpack.c.l.b16 %v865
  %v1467 = vunpack.c.h.b16 %v865
  %v1468 = vunpack.c.l.b16 %v866
  %v1469 = vunpack.c.h.b16 %v866
  %v1470 = vpack.c.b16 %v1424, %v1422
  %v1471 = vpack.c.b16 %v1425, %v1423
  %v1472 = vpack.c.b16 %v1428, %v1426
  %v1473 = vpack.c.b16 %v1429, %v1427
  %v1474 = vpack.c.b16 %v1432, %v1430
  %v1475 = vpack.c.b16 %v1433, %v1431
  %v1476 = vpack.c.b16 %v1436, %v1434
  %v1477 = vpack.c.b16 %v1437, %v1435
  %v1478 = vpack.c.b16 %v1440, %v1438
  %v1479 = vpack.c.b16 %v1441, %v1439
  %v1480 = vpack.c.b16 %v1444, %v1442
  %v1481 = vpack.c.b16 %v1445, %v1443
  %v1482 = vpack.c.b16 %v1448, %v1446
  %v1483 = vpack.c.b16 %v1449, %v1447
  %v1484 = vpack.c.b16 %v1452, %v1450
  %v1485 = vpack.c.b16 %v1453, %v1451
  %v1486 = vpack.c.b16 %v1456, %v1454
  %v1487 = vpack.c.b16 %v1457, %v1455
  %v1488 = vpack.c.b16 %v1460, %v1458
  %v1489 = vpack.c.b16 %v1461, %v1459
  %v1490 = vpack.c.b16 %v1464, %v1462
  %v1491 = vpack.c.b16 %v1465, %v1463
  %v1492 = vpack.c.b16 %v1468, %v1466
  %v1493 = vpack.c.b16 %v1469, %v1467
  %v1519 = vsel %vm1133, %v1396, 0
  %1521 = vmatpush.bf16.msra.mxu0 %v1484
  %1522 = vmatpush.bf16.msra.mxu0 %v1482
  %1523 = vmatpush.bf16.msra.mxu0 %v1480
  %1524 = vmatpush.bf16.msra.mxu0 %v1478
  %1525 = vmatpush.bf16.msra.mxu0 %v1476
  %1526 = vmatpush.bf16.msra.mxu0 %v1474
  %1527 = vmatpush.bf16.msra.mxu0 %v1472
  %1528 = vmatpush.bf16.msra.mxu0 %v1470
  %1529 = vmatmul.bf16.gmra.mxu0 %v1395
  %v1530 = vpop.f32.mrf.mxu0
  %v1531 = vadd.f32 0.0, %v1530
  %v1532 = vpop.f32.mrf.mxu0
  %v1533 = vadd.f32 0.0, %v1532
  %1534 = vdwg.mxu0
  %1535 = vmatpush.bf16.msra.mxu0 0
  %1536 = vmatpush.bf16.msra.mxu0 0
  %1537 = vmatpush.bf16.msra.mxu0 0
  %1538 = vmatpush.bf16.msra.mxu0 0
  %1539 = vmatpush.bf16.msra.mxu0 %v1492
  %1540 = vmatpush.bf16.msra.mxu0 %v1490
  %1541 = vmatpush.bf16.msra.mxu0 %v1488
  %1542 = vmatpush.bf16.msra.mxu0 %v1486
  %1543 = vmatmul.bf16.gmra.mxu0 %v1519
  %v1544 = vpop.f32.mrf.mxu0
  %v1545 = vadd.f32 %v1531, %v1544
  %v1546 = vpop.f32.mrf.mxu0
  %v1547 = vadd.f32 %v1533, %v1546
  %1548 = vdwg.mxu0
  %1549 = vmatpush.bf16.msra.mxu0 %v1485
  %1550 = vmatpush.bf16.msra.mxu0 %v1483
  %1551 = vmatpush.bf16.msra.mxu0 %v1481
  %1552 = vmatpush.bf16.msra.mxu0 %v1479
  %1553 = vmatpush.bf16.msra.mxu0 %v1477
  %1554 = vmatpush.bf16.msra.mxu0 %v1475
  %1555 = vmatpush.bf16.msra.mxu0 %v1473
  %1556 = vmatpush.bf16.msra.mxu0 %v1471
  %1557 = vmatmul.bf16.gmra.mxu0 %v1395
  %v1558 = vpop.f32.mrf.mxu0
  %v1559 = vadd.f32 0.0, %v1558
  %v1560 = vpop.f32.mrf.mxu0
  %v1561 = vadd.f32 0.0, %v1560
  %1562 = vdwg.mxu0
  %1563 = vmatpush.bf16.msra.mxu0 0
  %1564 = vmatpush.bf16.msra.mxu0 0
  %1565 = vmatpush.bf16.msra.mxu0 0
  %1566 = vmatpush.bf16.msra.mxu0 0
  %1567 = vmatpush.bf16.msra.mxu0 %v1493
  %1568 = vmatpush.bf16.msra.mxu0 %v1491
  %1569 = vmatpush.bf16.msra.mxu0 %v1489
  %1570 = vmatpush.bf16.msra.mxu0 %v1487
  %1571 = vmatmul.bf16.gmra.mxu0 %v1519
  %v1572 = vpop.f32.mrf.mxu0
  %v1573 = vadd.f32 %v1559, %v1572
  %v1574 = vpop.f32.mrf.mxu0
  %v1575 = vadd.f32 %v1561, %v1574
  %1576 = vdwg.mxu0
  %v1577 = vadd.f32 %v1385, %v1545
  %v1578 = vadd.f32 %v1386, %v1573
  %v1579 = vadd.f32 %v1387, %v1547
  %v1580 = vadd.f32 %v1388, %v1575
  %v1583 = vunpack.c.l.b16 %v777
  %v1584 = vunpack.c.h.b16 %v777
  %v1585 = vunpack.c.l.b16 %v778
  %v1586 = vunpack.c.h.b16 %v778
  %v1587 = vpack.c.b16 %v1585, %v1583
  %v1588 = vpack.c.b16 %v1586, %v1584
  %v1614 = vunpack.c.l.b16 %v867
  %v1615 = vunpack.c.h.b16 %v867
  %v1616 = vunpack.c.l.b16 %v868
  %v1617 = vunpack.c.h.b16 %v868
  %v1618 = vunpack.c.l.b16 %v869
  %v1619 = vunpack.c.h.b16 %v869
  %v1620 = vunpack.c.l.b16 %v870
  %v1621 = vunpack.c.h.b16 %v870
  %v1622 = vunpack.c.l.b16 %v871
  %v1623 = vunpack.c.h.b16 %v871
  %v1624 = vunpack.c.l.b16 %v872
  %v1625 = vunpack.c.h.b16 %v872
  %v1626 = vunpack.c.l.b16 %v873
  %v1627 = vunpack.c.h.b16 %v873
  %v1628 = vunpack.c.l.b16 %v874
  %v1629 = vunpack.c.h.b16 %v874
  %v1630 = vunpack.c.l.b16 %v875
  %v1631 = vunpack.c.h.b16 %v875
  %v1632 = vunpack.c.l.b16 %v876
  %v1633 = vunpack.c.h.b16 %v876
  %v1634 = vunpack.c.l.b16 %v877
  %v1635 = vunpack.c.h.b16 %v877
  %v1636 = vunpack.c.l.b16 %v878
  %v1637 = vunpack.c.h.b16 %v878
  %v1638 = vunpack.c.l.b16 %v879
  %v1639 = vunpack.c.h.b16 %v879
  %v1640 = vunpack.c.l.b16 %v880
  %v1641 = vunpack.c.h.b16 %v880
  %v1642 = vunpack.c.l.b16 %v881
  %v1643 = vunpack.c.h.b16 %v881
  %v1644 = vunpack.c.l.b16 %v882
  %v1645 = vunpack.c.h.b16 %v882
  %v1646 = vunpack.c.l.b16 %v883
  %v1647 = vunpack.c.h.b16 %v883
  %v1648 = vunpack.c.l.b16 %v884
  %v1649 = vunpack.c.h.b16 %v884
  %v1650 = vunpack.c.l.b16 %v885
  %v1651 = vunpack.c.h.b16 %v885
  %v1652 = vunpack.c.l.b16 %v886
  %v1653 = vunpack.c.h.b16 %v886
  %v1654 = vunpack.c.l.b16 %v887
  %v1655 = vunpack.c.h.b16 %v887
  %v1656 = vunpack.c.l.b16 %v888
  %v1657 = vunpack.c.h.b16 %v888
  %v1658 = vunpack.c.l.b16 %v889
  %v1659 = vunpack.c.h.b16 %v889
  %v1660 = vunpack.c.l.b16 %v890
  %v1661 = vunpack.c.h.b16 %v890
  %v1662 = vpack.c.b16 %v1616, %v1614
  %v1663 = vpack.c.b16 %v1617, %v1615
  %v1664 = vpack.c.b16 %v1620, %v1618
  %v1665 = vpack.c.b16 %v1621, %v1619
  %v1666 = vpack.c.b16 %v1624, %v1622
  %v1667 = vpack.c.b16 %v1625, %v1623
  %v1668 = vpack.c.b16 %v1628, %v1626
  %v1669 = vpack.c.b16 %v1629, %v1627
  %v1670 = vpack.c.b16 %v1632, %v1630
  %v1671 = vpack.c.b16 %v1633, %v1631
  %v1672 = vpack.c.b16 %v1636, %v1634
  %v1673 = vpack.c.b16 %v1637, %v1635
  %v1674 = vpack.c.b16 %v1640, %v1638
  %v1675 = vpack.c.b16 %v1641, %v1639
  %v1676 = vpack.c.b16 %v1644, %v1642
  %v1677 = vpack.c.b16 %v1645, %v1643
  %v1678 = vpack.c.b16 %v1648, %v1646
  %v1679 = vpack.c.b16 %v1649, %v1647
  %v1680 = vpack.c.b16 %v1652, %v1650
  %v1681 = vpack.c.b16 %v1653, %v1651
  %v1682 = vpack.c.b16 %v1656, %v1654
  %v1683 = vpack.c.b16 %v1657, %v1655
  %v1684 = vpack.c.b16 %v1660, %v1658
  %v1685 = vpack.c.b16 %v1661, %v1659
  %v1711 = vsel %vm1133, %v1588, 0
  %1713 = vmatpush.bf16.msra.mxu0 %v1676
  %1714 = vmatpush.bf16.msra.mxu0 %v1674
  %1715 = vmatpush.bf16.msra.mxu0 %v1672
  %1716 = vmatpush.bf16.msra.mxu0 %v1670
  %1717 = vmatpush.bf16.msra.mxu0 %v1668
  %1718 = vmatpush.bf16.msra.mxu0 %v1666
  %1719 = vmatpush.bf16.msra.mxu0 %v1664
  %1720 = vmatpush.bf16.msra.mxu0 %v1662
  %1721 = vmatmul.bf16.gmra.mxu0 %v1587
  %v1722 = vpop.f32.mrf.mxu0
  %v1723 = vadd.f32 0.0, %v1722
  %v1724 = vpop.f32.mrf.mxu0
  %v1725 = vadd.f32 0.0, %v1724
  %1726 = vdwg.mxu0
  %1727 = vmatpush.bf16.msra.mxu0 0
  %1728 = vmatpush.bf16.msra.mxu0 0
  %1729 = vmatpush.bf16.msra.mxu0 0
  %1730 = vmatpush.bf16.msra.mxu0 0
  %1731 = vmatpush.bf16.msra.mxu0 %v1684
  %1732 = vmatpush.bf16.msra.mxu0 %v1682
  %1733 = vmatpush.bf16.msra.mxu0 %v1680
  %1734 = vmatpush.bf16.msra.mxu0 %v1678
  %1735 = vmatmul.bf16.gmra.mxu0 %v1711
  %v1736 = vpop.f32.mrf.mxu0
  %v1737 = vadd.f32 %v1723, %v1736
  %v1738 = vpop.f32.mrf.mxu0
  %v1739 = vadd.f32 %v1725, %v1738
  %1740 = vdwg.mxu0
  %1741 = vmatpush.bf16.msra.mxu0 %v1677
  %1742 = vmatpush.bf16.msra.mxu0 %v1675
  %1743 = vmatpush.bf16.msra.mxu0 %v1673
  %1744 = vmatpush.bf16.msra.mxu0 %v1671
  %1745 = vmatpush.bf16.msra.mxu0 %v1669
  %1746 = vmatpush.bf16.msra.mxu0 %v1667
  %1747 = vmatpush.bf16.msra.mxu0 %v1665
  %1748 = vmatpush.bf16.msra.mxu0 %v1663
  %1749 = vmatmul.bf16.gmra.mxu0 %v1587
  %v1750 = vpop.f32.mrf.mxu0
  %v1751 = vadd.f32 0.0, %v1750
  %v1752 = vpop.f32.mrf.mxu0
  %v1753 = vadd.f32 0.0, %v1752
  %1754 = vdwg.mxu0
  %1755 = vmatpush.bf16.msra.mxu0 0
  %1756 = vmatpush.bf16.msra.mxu0 0
  %1757 = vmatpush.bf16.msra.mxu0 0
  %1758 = vmatpush.bf16.msra.mxu0 0
  %1759 = vmatpush.bf16.msra.mxu0 %v1685
  %1760 = vmatpush.bf16.msra.mxu0 %v1683
  %1761 = vmatpush.bf16.msra.mxu0 %v1681
  %1762 = vmatpush.bf16.msra.mxu0 %v1679
  %1763 = vmatmul.bf16.gmra.mxu0 %v1711
  %v1764 = vpop.f32.mrf.mxu0
  %v1765 = vadd.f32 %v1751, %v1764
  %v1766 = vpop.f32.mrf.mxu0
  %v1767 = vadd.f32 %v1753, %v1766
  %1768 = vdwg.mxu0
  %v1769 = vadd.f32 %v1577, %v1737
  %v1770 = vadd.f32 %v1578, %v1765
  %v1771 = vadd.f32 %v1579, %v1739
  %v1772 = vadd.f32 %v1580, %v1767
  %v1773 = vpack.c.bf16 %v1771, %v1769
  %v1774 = vpack.c.bf16 %v1772, %v1770
  %v1775 = vunpack.c.l.bf16 %v1773
  %v1776 = vunpack.c.l.bf16 %v1774
  %v1777 = vunpack.c.h.bf16 %v1773
  %v1778 = vunpack.c.h.bf16 %v1774
  %v1779 = vtanh.pop %v1775
  %v1780 = vtanh.pop %v1776
  %v1781 = vtanh.pop %v1777
  %v1782 = vtanh.pop %v1778
  %v1783 = vpack.c.bf16 %v1781, %v1779
  %v1784 = vpack.c.bf16 %v1782, %v1780
  %v1805 = vunpack.c.l.b16 %v891
  %v1806 = vunpack.c.l.b16 %v892
  %v1807 = vunpack.c.l.b16 %v893
  %v1808 = vunpack.c.l.b16 %v894
  %v1809 = vunpack.c.l.b16 %v895
  %v1810 = vunpack.c.l.b16 %v896
  %v1811 = vunpack.c.l.b16 %v897
  %v1812 = vunpack.c.l.b16 %v898
  %v1813 = vunpack.c.l.b16 %v899
  %v1814 = vunpack.c.l.b16 %v900
  %v1815 = vunpack.c.l.b16 %v901
  %v1816 = vunpack.c.l.b16 %v902
  %v1817 = vunpack.c.l.b16 %v903
  %v1818 = vunpack.c.l.b16 %v904
  %v1819 = vunpack.c.l.b16 %v905
  %v1820 = vunpack.c.l.b16 %v906
  %v1821 = vunpack.c.l.b16 %v907
  %v1822 = vunpack.c.l.b16 %v908
  %v1823 = vunpack.c.l.b16 %v909
  %v1824 = vunpack.c.l.b16 %v910
  %v1825 = vpack.c.b16 %v1806, %v1805
  %v1826 = vpack.c.b16 %v1808, %v1807
  %v1827 = vpack.c.b16 %v1810, %v1809
  %v1828 = vpack.c.b16 %v1812, %v1811
  %v1829 = vpack.c.b16 %v1814, %v1813
  %v1830 = vpack.c.b16 %v1816, %v1815
  %v1831 = vpack.c.b16 %v1818, %v1817
  %v1832 = vpack.c.b16 %v1820, %v1819
  %v1833 = vpack.c.b16 %v1822, %v1821
  %v1834 = vpack.c.b16 %v1824, %v1823
  %vm1845 = vcmask 261120
  %v1847 = vsel %vm1845, %v1784, 0
  %1849 = vmatpush.bf16.msra.mxu0 %v1832
  %1850 = vmatpush.bf16.msra.mxu0 %v1831
  %1851 = vmatpush.bf16.msra.mxu0 %v1830
  %1852 = vmatpush.bf16.msra.mxu0 %v1829
  %1853 = vmatpush.bf16.msra.mxu0 %v1828
  %1854 = vmatpush.bf16.msra.mxu0 %v1827
  %1855 = vmatpush.bf16.msra.mxu0 %v1826
  %1856 = vmatpush.bf16.msra.mxu0 %v1825
  %1857 = vmatmul.bf16.gmra.mxu0 %v1783
  %v1858 = vpop.f32.mrf.mxu0
  %v1859 = vadd.f32 0.0, %v1858
  %v1860 = vpop.f32.mrf.mxu0
  %v1861 = vadd.f32 0.0, %v1860
  %1862 = vdwg.mxu0
  %1863 = vmatpush.bf16.msra.mxu0 0
  %1864 = vmatpush.bf16.msra.mxu0 0
  %1865 = vmatpush.bf16.msra.mxu0 0
  %1866 = vmatpush.bf16.msra.mxu0 0
  %1867 = vmatpush.bf16.msra.mxu0 0
  %1868 = vmatpush.bf16.msra.mxu0 0
  %1869 = vmatpush.bf16.msra.mxu0 %v1834
  %1870 = vmatpush.bf16.msra.mxu0 %v1833
  %1871 = vmatmul.bf16.gmra.mxu0 %v1847
  %v1872 = vpop.f32.mrf.mxu0
  %v1873 = vadd.f32 %v1859, %v1872
  %v1874 = vpop.f32.mrf.mxu0
  %v1875 = vadd.f32 %v1861, %v1874
  %1876 = vdwg.mxu0
  %v1877 = vadd.f32 %v1003, %v1873
  %v1878 = vadd.f32 %v1003, %v1875
  %1879 = vmatpush.bf16.msra.mxu0 %v1099
  %1880 = vmatpush.bf16.msra.mxu0 %v1097
  %1881 = vmatpush.bf16.msra.mxu0 %v1095
  %1882 = vmatpush.bf16.msra.mxu0 %v1093
  %1883 = vmatpush.bf16.msra.mxu0 %v1091
  %1884 = vmatpush.bf16.msra.mxu0 %v1089
  %1885 = vmatpush.bf16.msra.mxu0 %v1087
  %1886 = vmatpush.bf16.msra.mxu0 %v1085
  %1887 = vmatmul.bf16.gmra.mxu0 %v1395
  %v1888 = vpop.f32.mrf.mxu0
  %v1889 = vadd.f32 0.0, %v1888
  %v1890 = vpop.f32.mrf.mxu0
  %v1891 = vadd.f32 0.0, %v1890
  %1892 = vdwg.mxu0
  %1893 = vmatpush.bf16.msra.mxu0 0
  %1894 = vmatpush.bf16.msra.mxu0 0
  %1895 = vmatpush.bf16.msra.mxu0 0
  %1896 = vmatpush.bf16.msra.mxu0 0
  %1897 = vmatpush.bf16.msra.mxu0 %v1107
  %1898 = vmatpush.bf16.msra.mxu0 %v1105
  %1899 = vmatpush.bf16.msra.mxu0 %v1103
  %1900 = vmatpush.bf16.msra.mxu0 %v1101
  %1901 = vmatmul.bf16.gmra.mxu0 %v1519
  %v1902 = vpop.f32.mrf.mxu0
  %v1903 = vadd.f32 %v1889, %v1902
  %v1904 = vpop.f32.mrf.mxu0
  %v1905 = vadd.f32 %v1891, %v1904
  %1906 = vdwg.mxu0
  %1907 = vmatpush.bf16.msra.mxu0 %v1100
  %1908 = vmatpush.bf16.msra.mxu0 %v1098
  %1909 = vmatpush.bf16.msra.mxu0 %v1096
  %1910 = vmatpush.bf16.msra.mxu0 %v1094
  %1911 = vmatpush.bf16.msra.mxu0 %v1092
  %1912 = vmatpush.bf16.msra.mxu0 %v1090
  %1913 = vmatpush.bf16.msra.mxu0 %v1088
  %1914 = vmatpush.bf16.msra.mxu0 %v1086
  %1915 = vmatmul.bf16.gmra.mxu0 %v1395
  %v1916 = vpop.f32.mrf.mxu0
  %v1917 = vadd.f32 0.0, %v1916
  %v1918 = vpop.f32.mrf.mxu0
  %v1919 = vadd.f32 0.0, %v1918
  %1920 = vdwg.mxu0
  %1921 = vmatpush.bf16.msra.mxu0 0
  %1922 = vmatpush.bf16.msra.mxu0 0
  %1923 = vmatpush.bf16.msra.mxu0 0
  %1924 = vmatpush.bf16.msra.mxu0 0
  %1925 = vmatpush.bf16.msra.mxu0 %v1108
  %1926 = vmatpush.bf16.msra.mxu0 %v1106
  %1927 = vmatpush.bf16.msra.mxu0 %v1104
  %1928 = vmatpush.bf16.msra.mxu0 %v1102
  %1929 = vmatmul.bf16.gmra.mxu0 %v1519
  %v1930 = vpop.f32.mrf.mxu0
  %v1931 = vadd.f32 %v1917, %v1930
  %v1932 = vpop.f32.mrf.mxu0
  %v1933 = vadd.f32 %v1919, %v1932
  %1934 = vdwg.mxu0
  %v1935 = vadd.f32 %v997, %v1903
  %v1936 = vadd.f32 %v998, %v1931
  %v1937 = vadd.f32 %v997, %v1905
  %v1938 = vadd.f32 %v998, %v1933
  %1939 = vmatpush.bf16.msra.mxu0 %v1292
  %1940 = vmatpush.bf16.msra.mxu0 %v1290
  %1941 = vmatpush.bf16.msra.mxu0 %v1288
  %1942 = vmatpush.bf16.msra.mxu0 %v1286
  %1943 = vmatpush.bf16.msra.mxu0 %v1284
  %1944 = vmatpush.bf16.msra.mxu0 %v1282
  %1945 = vmatpush.bf16.msra.mxu0 %v1280
  %1946 = vmatpush.bf16.msra.mxu0 %v1278
  %1947 = vmatmul.bf16.gmra.mxu0 %v1587
  %v1948 = vpop.f32.mrf.mxu0
  %v1949 = vadd.f32 0.0, %v1948
  %v1950 = vpop.f32.mrf.mxu0
  %v1951 = vadd.f32 0.0, %v1950
  %1952 = vdwg.mxu0
  %1953 = vmatpush.bf16.msra.mxu0 0
  %1954 = vmatpush.bf16.msra.mxu0 0
  %1955 = vmatpush.bf16.msra.mxu0 0
  %1956 = vmatpush.bf16.msra.mxu0 0
  %1957 = vmatpush.bf16.msra.mxu0 %v1300
  %1958 = vmatpush.bf16.msra.mxu0 %v1298
  %1959 = vmatpush.bf16.msra.mxu0 %v1296
  %1960 = vmatpush.bf16.msra.mxu0 %v1294
  %1961 = vmatmul.bf16.gmra.mxu0 %v1711
  %v1962 = vpop.f32.mrf.mxu0
  %v1963 = vadd.f32 %v1949, %v1962
  %v1964 = vpop.f32.mrf.mxu0
  %v1965 = vadd.f32 %v1951, %v1964
  %1966 = vdwg.mxu0
  %1967 = vmatpush.bf16.msra.mxu0 %v1293
  %1968 = vmatpush.bf16.msra.mxu0 %v1291
  %1969 = vmatpush.bf16.msra.mxu0 %v1289
  %1970 = vmatpush.bf16.msra.mxu0 %v1287
  %1971 = vmatpush.bf16.msra.mxu0 %v1285
  %1972 = vmatpush.bf16.msra.mxu0 %v1283
  %1973 = vmatpush.bf16.msra.mxu0 %v1281
  %1974 = vmatpush.bf16.msra.mxu0 %v1279
  %1975 = vmatmul.bf16.gmra.mxu0 %v1587
  %v1976 = vpop.f32.mrf.mxu0
  %v1977 = vadd.f32 0.0, %v1976
  %v1978 = vpop.f32.mrf.mxu0
  %v1979 = vadd.f32 0.0, %v1978
  %1980 = vdwg.mxu0
  %1981 = vmatpush.bf16.msra.mxu0 0
  %1982 = vmatpush.bf16.msra.mxu0 0
  %1983 = vmatpush.bf16.msra.mxu0 0
  %1984 = vmatpush.bf16.msra.mxu0 0
  %1985 = vmatpush.bf16.msra.mxu0 %v1301
  %1986 = vmatpush.bf16.msra.mxu0 %v1299
  %1987 = vmatpush.bf16.msra.mxu0 %v1297
  %1988 = vmatpush.bf16.msra.mxu0 %v1295
  %1989 = vmatmul.bf16.gmra.mxu0 %v1711
  %v1990 = vpop.f32.mrf.mxu0
  %v1991 = vadd.f32 %v1977, %v1990
  %v1992 = vpop.f32.mrf.mxu0
  %v1993 = vadd.f32 %v1979, %v1992
  %1994 = vdwg.mxu0
  %v1995 = vadd.f32 %v1935, %v1963
  %v1996 = vadd.f32 %v1936, %v1991
  %v1997 = vadd.f32 %v1937, %v1965
  %v1998 = vadd.f32 %v1938, %v1993
  %v2001 = vunpack.c.l.b16 %v779
  %v2002 = vunpack.c.h.b16 %v779
  %v2003 = vunpack.c.l.b16 %v780
  %v2004 = vunpack.c.h.b16 %v780
  %v2005 = vpack.c.b16 %v2003, %v2001
  %v2006 = vpack.c.b16 %v2004, %v2002
  %v2009 = vsel %vm1133, %v2006, 0
  %2011 = vmatpush.bf16.msra.mxu0 %v1484
  %2012 = vmatpush.bf16.msra.mxu0 %v1482
  %2013 = vmatpush.bf16.msra.mxu0 %v1480
  %2014 = vmatpush.bf16.msra.mxu0 %v1478
  %2015 = vmatpush.bf16.msra.mxu0 %v1476
  %2016 = vmatpush.bf16.msra.mxu0 %v1474
  %2017 = vmatpush.bf16.msra.mxu0 %v1472
  %2018 = vmatpush.bf16.msra.mxu0 %v1470
  %2019 = vmatmul.bf16.gmra.mxu0 %v2005
  %v2020 = vpop.f32.mrf.mxu0
  %v2021 = vadd.f32 0.0, %v2020
  %v2022 = vpop.f32.mrf.mxu0
  %v2023 = vadd.f32 0.0, %v2022
  %2024 = vdwg.mxu0
  %2025 = vmatpush.bf16.msra.mxu0 0
  %2026 = vmatpush.bf16.msra.mxu0 0
  %2027 = vmatpush.bf16.msra.mxu0 0
  %2028 = vmatpush.bf16.msra.mxu0 0
  %2029 = vmatpush.bf16.msra.mxu0 %v1492
  %2030 = vmatpush.bf16.msra.mxu0 %v1490
  %2031 = vmatpush.bf16.msra.mxu0 %v1488
  %2032 = vmatpush.bf16.msra.mxu0 %v1486
  %2033 = vmatmul.bf16.gmra.mxu0 %v2009
  %v2034 = vpop.f32.mrf.mxu0
  %v2035 = vadd.f32 %v2021, %v2034
  %v2036 = vpop.f32.mrf.mxu0
  %v2037 = vadd.f32 %v2023, %v2036
  %2038 = vdwg.mxu0
  %2039 = vmatpush.bf16.msra.mxu0 %v1485
  %2040 = vmatpush.bf16.msra.mxu0 %v1483
  %2041 = vmatpush.bf16.msra.mxu0 %v1481
  %2042 = vmatpush.bf16.msra.mxu0 %v1479
  %2043 = vmatpush.bf16.msra.mxu0 %v1477
  %2044 = vmatpush.bf16.msra.mxu0 %v1475
  %2045 = vmatpush.bf16.msra.mxu0 %v1473
  %2046 = vmatpush.bf16.msra.mxu0 %v1471
  %2047 = vmatmul.bf16.gmra.mxu0 %v2005
  %v2048 = vpop.f32.mrf.mxu0
  %v2049 = vadd.f32 0.0, %v2048
  %v2050 = vpop.f32.mrf.mxu0
  %v2051 = vadd.f32 0.0, %v2050
  %2052 = vdwg.mxu0
  %2053 = vmatpush.bf16.msra.mxu0 0
  %2054 = vmatpush.bf16.msra.mxu0 0
  %2055 = vmatpush.bf16.msra.mxu0 0
  %2056 = vmatpush.bf16.msra.mxu0 0
  %2057 = vmatpush.bf16.msra.mxu0 %v1493
  %2058 = vmatpush.bf16.msra.mxu0 %v1491
  %2059 = vmatpush.bf16.msra.mxu0 %v1489
  %2060 = vmatpush.bf16.msra.mxu0 %v1487
  %2061 = vmatmul.bf16.gmra.mxu0 %v2009
  %v2062 = vpop.f32.mrf.mxu0
  %v2063 = vadd.f32 %v2049, %v2062
  %v2064 = vpop.f32.mrf.mxu0
  %v2065 = vadd.f32 %v2051, %v2064
  %2066 = vdwg.mxu0
  %v2067 = vadd.f32 %v1995, %v2035
  %v2068 = vadd.f32 %v1996, %v2063
  %v2069 = vadd.f32 %v1997, %v2037
  %v2070 = vadd.f32 %v1998, %v2065
  %v2073 = vunpack.c.l.b16 %v781
  %v2074 = vunpack.c.h.b16 %v781
  %v2075 = vunpack.c.l.b16 %v782
  %v2076 = vunpack.c.h.b16 %v782
  %v2077 = vpack.c.b16 %v2075, %v2073
  %v2078 = vpack.c.b16 %v2076, %v2074
  %v2081 = vsel %vm1133, %v2078, 0
  %2083 = vmatpush.bf16.msra.mxu0 %v1676
  %2084 = vmatpush.bf16.msra.mxu0 %v1674
  %2085 = vmatpush.bf16.msra.mxu0 %v1672
  %2086 = vmatpush.bf16.msra.mxu0 %v1670
  %2087 = vmatpush.bf16.msra.mxu0 %v1668
  %2088 = vmatpush.bf16.msra.mxu0 %v1666
  %2089 = vmatpush.bf16.msra.mxu0 %v1664
  %2090 = vmatpush.bf16.msra.mxu0 %v1662
  %2091 = vmatmul.bf16.gmra.mxu0 %v2077
  %v2092 = vpop.f32.mrf.mxu0
  %v2093 = vadd.f32 0.0, %v2092
  %v2094 = vpop.f32.mrf.mxu0
  %v2095 = vadd.f32 0.0, %v2094
  %2096 = vdwg.mxu0
  %2097 = vmatpush.bf16.msra.mxu0 0
  %2098 = vmatpush.bf16.msra.mxu0 0
  %2099 = vmatpush.bf16.msra.mxu0 0
  %2100 = vmatpush.bf16.msra.mxu0 0
  %2101 = vmatpush.bf16.msra.mxu0 %v1684
  %2102 = vmatpush.bf16.msra.mxu0 %v1682
  %2103 = vmatpush.bf16.msra.mxu0 %v1680
  %2104 = vmatpush.bf16.msra.mxu0 %v1678
  %2105 = vmatmul.bf16.gmra.mxu0 %v2081
  %v2106 = vpop.f32.mrf.mxu0
  %v2107 = vadd.f32 %v2093, %v2106
  %v2108 = vpop.f32.mrf.mxu0
  %v2109 = vadd.f32 %v2095, %v2108
  %2110 = vdwg.mxu0
  %2111 = vmatpush.bf16.msra.mxu0 %v1677
  %2112 = vmatpush.bf16.msra.mxu0 %v1675
  %2113 = vmatpush.bf16.msra.mxu0 %v1673
  %2114 = vmatpush.bf16.msra.mxu0 %v1671
  %2115 = vmatpush.bf16.msra.mxu0 %v1669
  %2116 = vmatpush.bf16.msra.mxu0 %v1667
  %2117 = vmatpush.bf16.msra.mxu0 %v1665
  %2118 = vmatpush.bf16.msra.mxu0 %v1663
  %2119 = vmatmul.bf16.gmra.mxu0 %v2077
  %v2120 = vpop.f32.mrf.mxu0
  %v2121 = vadd.f32 0.0, %v2120
  %v2122 = vpop.f32.mrf.mxu0
  %v2123 = vadd.f32 0.0, %v2122
  %2124 = vdwg.mxu0
  %2125 = vmatpush.bf16.msra.mxu0 0
  %2126 = vmatpush.bf16.msra.mxu0 0
  %2127 = vmatpush.bf16.msra.mxu0 0
  %2128 = vmatpush.bf16.msra.mxu0 0
  %2129 = vmatpush.bf16.msra.mxu0 %v1685
  %2130 = vmatpush.bf16.msra.mxu0 %v1683
  %2131 = vmatpush.bf16.msra.mxu0 %v1681
  %2132 = vmatpush.bf16.msra.mxu0 %v1679
  %2133 = vmatmul.bf16.gmra.mxu0 %v2081
  %v2134 = vpop.f32.mrf.mxu0
  %v2135 = vadd.f32 %v2121, %v2134
  %v2136 = vpop.f32.mrf.mxu0
  %v2137 = vadd.f32 %v2123, %v2136
  %2138 = vdwg.mxu0
  %v2139 = vadd.f32 %v2067, %v2107
  %v2140 = vadd.f32 %v2068, %v2135
  %v2141 = vadd.f32 %v2069, %v2109
  %v2142 = vadd.f32 %v2070, %v2137
  %v2143 = vpack.c.bf16 %v2141, %v2139
  %v2144 = vpack.c.bf16 %v2142, %v2140
  %v2145 = vunpack.c.l.bf16 %v2143
  %v2146 = vunpack.c.l.bf16 %v2144
  %v2147 = vunpack.c.h.bf16 %v2143
  %v2148 = vunpack.c.h.bf16 %v2144
  %v2149 = vtanh.pop %v2145
  %v2150 = vtanh.pop %v2146
  %v2151 = vtanh.pop %v2147
  %v2152 = vtanh.pop %v2148
  %v2153 = vpack.c.bf16 %v2151, %v2149
  %v2154 = vpack.c.bf16 %v2152, %v2150
  %v2175 = vunpack.c.l.b16 %v911
  %v2176 = vunpack.c.l.b16 %v912
  %v2177 = vunpack.c.l.b16 %v913
  %v2178 = vunpack.c.l.b16 %v914
  %v2179 = vunpack.c.l.b16 %v915
  %v2180 = vunpack.c.l.b16 %v916
  %v2181 = vunpack.c.l.b16 %v917
  %v2182 = vunpack.c.l.b16 %v918
  %v2183 = vunpack.c.l.b16 %v919
  %v2184 = vunpack.c.l.b16 %v920
  %v2185 = vunpack.c.l.b16 %v921
  %v2186 = vunpack.c.l.b16 %v922
  %v2187 = vunpack.c.l.b16 %v923
  %v2188 = vunpack.c.l.b16 %v924
  %v2189 = vunpack.c.l.b16 %v925
  %v2190 = vunpack.c.l.b16 %v926
  %v2191 = vunpack.c.l.b16 %v927
  %v2192 = vunpack.c.l.b16 %v928
  %v2193 = vunpack.c.l.b16 %v929
  %v2194 = vunpack.c.l.b16 %v930
  %v2195 = vpack.c.b16 %v2176, %v2175
  %v2196 = vpack.c.b16 %v2178, %v2177
  %v2197 = vpack.c.b16 %v2180, %v2179
  %v2198 = vpack.c.b16 %v2182, %v2181
  %v2199 = vpack.c.b16 %v2184, %v2183
  %v2200 = vpack.c.b16 %v2186, %v2185
  %v2201 = vpack.c.b16 %v2188, %v2187
  %v2202 = vpack.c.b16 %v2190, %v2189
  %v2203 = vpack.c.b16 %v2192, %v2191
  %v2204 = vpack.c.b16 %v2194, %v2193
  %v2216 = vsel %vm1845, %v2154, 0
  %2218 = vmatpush.bf16.msra.mxu0 %v2202
  %2219 = vmatpush.bf16.msra.mxu0 %v2201
  %2220 = vmatpush.bf16.msra.mxu0 %v2200
  %2221 = vmatpush.bf16.msra.mxu0 %v2199
  %2222 = vmatpush.bf16.msra.mxu0 %v2198
  %2223 = vmatpush.bf16.msra.mxu0 %v2197
  %2224 = vmatpush.bf16.msra.mxu0 %v2196
  %2225 = vmatpush.bf16.msra.mxu0 %v2195
  %2226 = vmatmul.bf16.gmra.mxu0 %v2153
  %v2227 = vpop.f32.mrf.mxu0
  %v2228 = vadd.f32 0.0, %v2227
  %v2229 = vpop.f32.mrf.mxu0
  %v2230 = vadd.f32 0.0, %v2229
  %2231 = vdwg.mxu0
  %2232 = vmatpush.bf16.msra.mxu0 0
  %2233 = vmatpush.bf16.msra.mxu0 0
  %2234 = vmatpush.bf16.msra.mxu0 0
  %2235 = vmatpush.bf16.msra.mxu0 0
  %2236 = vmatpush.bf16.msra.mxu0 0
  %2237 = vmatpush.bf16.msra.mxu0 0
  %2238 = vmatpush.bf16.msra.mxu0 %v2204
  %2239 = vmatpush.bf16.msra.mxu0 %v2203
  %2240 = vmatmul.bf16.gmra.mxu0 %v2216
  %v2241 = vpop.f32.mrf.mxu0
  %v2242 = vadd.f32 %v2228, %v2241
  %v2243 = vpop.f32.mrf.mxu0
  %v2244 = vadd.f32 %v2230, %v2243
  %2245 = vdwg.mxu0
  %v2246 = vadd.f32 %v1877, %v2242
  %v2247 = vadd.f32 %v1878, %v2244
  %2248 = vmatpush.bf16.msra.mxu0 %v1099
  %2249 = vmatpush.bf16.msra.mxu0 %v1097
  %2250 = vmatpush.bf16.msra.mxu0 %v1095
  %2251 = vmatpush.bf16.msra.mxu0 %v1093
  %2252 = vmatpush.bf16.msra.mxu0 %v1091
  %2253 = vmatpush.bf16.msra.mxu0 %v1089
  %2254 = vmatpush.bf16.msra.mxu0 %v1087
  %2255 = vmatpush.bf16.msra.mxu0 %v1085
  %2256 = vmatmul.bf16.gmra.mxu0 %v2005
  %v2257 = vpop.f32.mrf.mxu0
  %v2258 = vadd.f32 0.0, %v2257
  %v2259 = vpop.f32.mrf.mxu0
  %v2260 = vadd.f32 0.0, %v2259
  %2261 = vdwg.mxu0
  %2262 = vmatpush.bf16.msra.mxu0 0
  %2263 = vmatpush.bf16.msra.mxu0 0
  %2264 = vmatpush.bf16.msra.mxu0 0
  %2265 = vmatpush.bf16.msra.mxu0 0
  %2266 = vmatpush.bf16.msra.mxu0 %v1107
  %2267 = vmatpush.bf16.msra.mxu0 %v1105
  %2268 = vmatpush.bf16.msra.mxu0 %v1103
  %2269 = vmatpush.bf16.msra.mxu0 %v1101
  %2270 = vmatmul.bf16.gmra.mxu0 %v2009
  %v2271 = vpop.f32.mrf.mxu0
  %v2272 = vadd.f32 %v2258, %v2271
  %v2273 = vpop.f32.mrf.mxu0
  %v2274 = vadd.f32 %v2260, %v2273
  %2275 = vdwg.mxu0
  %2276 = vmatpush.bf16.msra.mxu0 %v1100
  %2277 = vmatpush.bf16.msra.mxu0 %v1098
  %2278 = vmatpush.bf16.msra.mxu0 %v1096
  %2279 = vmatpush.bf16.msra.mxu0 %v1094
  %2280 = vmatpush.bf16.msra.mxu0 %v1092
  %2281 = vmatpush.bf16.msra.mxu0 %v1090
  %2282 = vmatpush.bf16.msra.mxu0 %v1088
  %2283 = vmatpush.bf16.msra.mxu0 %v1086
  %2284 = vmatmul.bf16.gmra.mxu0 %v2005
  %v2285 = vpop.f32.mrf.mxu0
  %v2286 = vadd.f32 0.0, %v2285
  %v2287 = vpop.f32.mrf.mxu0
  %v2288 = vadd.f32 0.0, %v2287
  %2289 = vdwg.mxu0
  %2290 = vmatpush.bf16.msra.mxu0 0
  %2291 = vmatpush.bf16.msra.mxu0 0
  %2292 = vmatpush.bf16.msra.mxu0 0
  %2293 = vmatpush.bf16.msra.mxu0 0
  %2294 = vmatpush.bf16.msra.mxu0 %v1108
  %2295 = vmatpush.bf16.msra.mxu0 %v1106
  %2296 = vmatpush.bf16.msra.mxu0 %v1104
  %2297 = vmatpush.bf16.msra.mxu0 %v1102
  %2298 = vmatmul.bf16.gmra.mxu0 %v2009
  %v2299 = vpop.f32.mrf.mxu0
  %v2300 = vadd.f32 %v2286, %v2299
  %v2301 = vpop.f32.mrf.mxu0
  %v2302 = vadd.f32 %v2288, %v2301
  %2303 = vdwg.mxu0
  %v2304 = vadd.f32 %v997, %v2272
  %v2305 = vadd.f32 %v998, %v2300
  %v2306 = vadd.f32 %v997, %v2274
  %v2307 = vadd.f32 %v998, %v2302
  %2308 = vmatpush.bf16.msra.mxu0 %v1292
  %2309 = vmatpush.bf16.msra.mxu0 %v1290
  %2310 = vmatpush.bf16.msra.mxu0 %v1288
  %2311 = vmatpush.bf16.msra.mxu0 %v1286
  %2312 = vmatpush.bf16.msra.mxu0 %v1284
  %2313 = vmatpush.bf16.msra.mxu0 %v1282
  %2314 = vmatpush.bf16.msra.mxu0 %v1280
  %2315 = vmatpush.bf16.msra.mxu0 %v1278
  %2316 = vmatmul.bf16.gmra.mxu0 %v2077
  %v2317 = vpop.f32.mrf.mxu0
  %v2318 = vadd.f32 0.0, %v2317
  %v2319 = vpop.f32.mrf.mxu0
  %v2320 = vadd.f32 0.0, %v2319
  %2321 = vdwg.mxu0
  %2322 = vmatpush.bf16.msra.mxu0 0
  %2323 = vmatpush.bf16.msra.mxu0 0
  %2324 = vmatpush.bf16.msra.mxu0 0
  %2325 = vmatpush.bf16.msra.mxu0 0
  %2326 = vmatpush.bf16.msra.mxu0 %v1300
  %2327 = vmatpush.bf16.msra.mxu0 %v1298
  %2328 = vmatpush.bf16.msra.mxu0 %v1296
  %2329 = vmatpush.bf16.msra.mxu0 %v1294
  %2330 = vmatmul.bf16.gmra.mxu0 %v2081
  %v2331 = vpop.f32.mrf.mxu0
  %v2332 = vadd.f32 %v2318, %v2331
  %v2333 = vpop.f32.mrf.mxu0
  %v2334 = vadd.f32 %v2320, %v2333
  %2335 = vdwg.mxu0
  %2336 = vmatpush.bf16.msra.mxu0 %v1293
  %2337 = vmatpush.bf16.msra.mxu0 %v1291
  %2338 = vmatpush.bf16.msra.mxu0 %v1289
  %2339 = vmatpush.bf16.msra.mxu0 %v1287
  %2340 = vmatpush.bf16.msra.mxu0 %v1285
  %2341 = vmatpush.bf16.msra.mxu0 %v1283
  %2342 = vmatpush.bf16.msra.mxu0 %v1281
  %2343 = vmatpush.bf16.msra.mxu0 %v1279
  %2344 = vmatmul.bf16.gmra.mxu0 %v2077
  %v2345 = vpop.f32.mrf.mxu0
  %v2346 = vadd.f32 0.0, %v2345
  %v2347 = vpop.f32.mrf.mxu0
  %v2348 = vadd.f32 0.0, %v2347
  %2349 = vdwg.mxu0
  %2350 = vmatpush.bf16.msra.mxu0 0
  %2351 = vmatpush.bf16.msra.mxu0 0
  %2352 = vmatpush.bf16.msra.mxu0 0
  %2353 = vmatpush.bf16.msra.mxu0 0
  %2354 = vmatpush.bf16.msra.mxu0 %v1301
  %2355 = vmatpush.bf16.msra.mxu0 %v1299
  %2356 = vmatpush.bf16.msra.mxu0 %v1297
  %2357 = vmatpush.bf16.msra.mxu0 %v1295
  %2358 = vmatmul.bf16.gmra.mxu0 %v2081
  %v2359 = vpop.f32.mrf.mxu0
  %v2360 = vadd.f32 %v2346, %v2359
  %v2361 = vpop.f32.mrf.mxu0
  %v2362 = vadd.f32 %v2348, %v2361
  %2363 = vdwg.mxu0
  %v2364 = vadd.f32 %v2304, %v2332
  %v2365 = vadd.f32 %v2305, %v2360
  %v2366 = vadd.f32 %v2306, %v2334
  %v2367 = vadd.f32 %v2307, %v2362
  %v2370 = vunpack.c.l.b16 %v783
  %v2371 = vunpack.c.h.b16 %v783
  %v2372 = vunpack.c.l.b16 %v784
  %v2373 = vunpack.c.h.b16 %v784
  %v2374 = vpack.c.b16 %v2372, %v2370
  %v2375 = vpack.c.b16 %v2373, %v2371
  %v2378 = vsel %vm1133, %v2375, 0
  %2380 = vmatpush.bf16.msra.mxu0 %v1484
  %2381 = vmatpush.bf16.msra.mxu0 %v1482
  %2382 = vmatpush.bf16.msra.mxu0 %v1480
  %2383 = vmatpush.bf16.msra.mxu0 %v1478
  %2384 = vmatpush.bf16.msra.mxu0 %v1476
  %2385 = vmatpush.bf16.msra.mxu0 %v1474
  %2386 = vmatpush.bf16.msra.mxu0 %v1472
  %2387 = vmatpush.bf16.msra.mxu0 %v1470
  %2388 = vmatmul.bf16.gmra.mxu0 %v2374
  %v2389 = vpop.f32.mrf.mxu0
  %v2390 = vadd.f32 0.0, %v2389
  %v2391 = vpop.f32.mrf.mxu0
  %v2392 = vadd.f32 0.0, %v2391
  %2393 = vdwg.mxu0
  %2394 = vmatpush.bf16.msra.mxu0 0
  %2395 = vmatpush.bf16.msra.mxu0 0
  %2396 = vmatpush.bf16.msra.mxu0 0
  %2397 = vmatpush.bf16.msra.mxu0 0
  %2398 = vmatpush.bf16.msra.mxu0 %v1492
  %2399 = vmatpush.bf16.msra.mxu0 %v1490
  %2400 = vmatpush.bf16.msra.mxu0 %v1488
  %2401 = vmatpush.bf16.msra.mxu0 %v1486
  %2402 = vmatmul.bf16.gmra.mxu0 %v2378
  %v2403 = vpop.f32.mrf.mxu0
  %v2404 = vadd.f32 %v2390, %v2403
  %v2405 = vpop.f32.mrf.mxu0
  %v2406 = vadd.f32 %v2392, %v2405
  %2407 = vdwg.mxu0
  %2408 = vmatpush.bf16.msra.mxu0 %v1485
  %2409 = vmatpush.bf16.msra.mxu0 %v1483
  %2410 = vmatpush.bf16.msra.mxu0 %v1481
  %2411 = vmatpush.bf16.msra.mxu0 %v1479
  %2412 = vmatpush.bf16.msra.mxu0 %v1477
  %2413 = vmatpush.bf16.msra.mxu0 %v1475
  %2414 = vmatpush.bf16.msra.mxu0 %v1473
  %2415 = vmatpush.bf16.msra.mxu0 %v1471
  %2416 = vmatmul.bf16.gmra.mxu0 %v2374
  %v2417 = vpop.f32.mrf.mxu0
  %v2418 = vadd.f32 0.0, %v2417
  %v2419 = vpop.f32.mrf.mxu0
  %v2420 = vadd.f32 0.0, %v2419
  %2421 = vdwg.mxu0
  %2422 = vmatpush.bf16.msra.mxu0 0
  %2423 = vmatpush.bf16.msra.mxu0 0
  %2424 = vmatpush.bf16.msra.mxu0 0
  %2425 = vmatpush.bf16.msra.mxu0 0
  %2426 = vmatpush.bf16.msra.mxu0 %v1493
  %2427 = vmatpush.bf16.msra.mxu0 %v1491
  %2428 = vmatpush.bf16.msra.mxu0 %v1489
  %2429 = vmatpush.bf16.msra.mxu0 %v1487
  %2430 = vmatmul.bf16.gmra.mxu0 %v2378
  %v2431 = vpop.f32.mrf.mxu0
  %v2432 = vadd.f32 %v2418, %v2431
  %v2433 = vpop.f32.mrf.mxu0
  %v2434 = vadd.f32 %v2420, %v2433
  %2435 = vdwg.mxu0
  %v2436 = vadd.f32 %v2364, %v2404
  %v2437 = vadd.f32 %v2365, %v2432
  %v2438 = vadd.f32 %v2366, %v2406
  %v2439 = vadd.f32 %v2367, %v2434
  %v2442 = vunpack.c.l.b16 %v785
  %v2443 = vunpack.c.h.b16 %v785
  %v2444 = vunpack.c.l.b16 %v786
  %v2445 = vunpack.c.h.b16 %v786
  %v2446 = vpack.c.b16 %v2444, %v2442
  %v2447 = vpack.c.b16 %v2445, %v2443
  %v2450 = vsel %vm1133, %v2447, 0
  %2452 = vmatpush.bf16.msra.mxu0 %v1676
  %2453 = vmatpush.bf16.msra.mxu0 %v1674
  %2454 = vmatpush.bf16.msra.mxu0 %v1672
  %2455 = vmatpush.bf16.msra.mxu0 %v1670
  %2456 = vmatpush.bf16.msra.mxu0 %v1668
  %2457 = vmatpush.bf16.msra.mxu0 %v1666
  %2458 = vmatpush.bf16.msra.mxu0 %v1664
  %2459 = vmatpush.bf16.msra.mxu0 %v1662
  %2460 = vmatmul.bf16.gmra.mxu0 %v2446
  %v2461 = vpop.f32.mrf.mxu0
  %v2462 = vadd.f32 0.0, %v2461
  %v2463 = vpop.f32.mrf.mxu0
  %v2464 = vadd.f32 0.0, %v2463
  %2465 = vdwg.mxu0
  %2466 = vmatpush.bf16.msra.mxu0 0
  %2467 = vmatpush.bf16.msra.mxu0 0
  %2468 = vmatpush.bf16.msra.mxu0 0
  %2469 = vmatpush.bf16.msra.mxu0 0
  %2470 = vmatpush.bf16.msra.mxu0 %v1684
  %2471 = vmatpush.bf16.msra.mxu0 %v1682
  %2472 = vmatpush.bf16.msra.mxu0 %v1680
  %2473 = vmatpush.bf16.msra.mxu0 %v1678
  %2474 = vmatmul.bf16.gmra.mxu0 %v2450
  %v2475 = vpop.f32.mrf.mxu0
  %v2476 = vadd.f32 %v2462, %v2475
  %v2477 = vpop.f32.mrf.mxu0
  %v2478 = vadd.f32 %v2464, %v2477
  %2479 = vdwg.mxu0
  %2480 = vmatpush.bf16.msra.mxu0 %v1677
  %2481 = vmatpush.bf16.msra.mxu0 %v1675
  %2482 = vmatpush.bf16.msra.mxu0 %v1673
  %2483 = vmatpush.bf16.msra.mxu0 %v1671
  %2484 = vmatpush.bf16.msra.mxu0 %v1669
  %2485 = vmatpush.bf16.msra.mxu0 %v1667
  %2486 = vmatpush.bf16.msra.mxu0 %v1665
  %2487 = vmatpush.bf16.msra.mxu0 %v1663
  %2488 = vmatmul.bf16.gmra.mxu0 %v2446
  %v2489 = vpop.f32.mrf.mxu0
  %v2490 = vadd.f32 0.0, %v2489
  %v2491 = vpop.f32.mrf.mxu0
  %v2492 = vadd.f32 0.0, %v2491
  %2493 = vdwg.mxu0
  %2494 = vmatpush.bf16.msra.mxu0 0
  %2495 = vmatpush.bf16.msra.mxu0 0
  %2496 = vmatpush.bf16.msra.mxu0 0
  %2497 = vmatpush.bf16.msra.mxu0 0
  %2498 = vmatpush.bf16.msra.mxu0 %v1685
  %2499 = vmatpush.bf16.msra.mxu0 %v1683
  %2500 = vmatpush.bf16.msra.mxu0 %v1681
  %2501 = vmatpush.bf16.msra.mxu0 %v1679
  %2502 = vmatmul.bf16.gmra.mxu0 %v2450
  %v2503 = vpop.f32.mrf.mxu0
  %v2504 = vadd.f32 %v2490, %v2503
  %v2505 = vpop.f32.mrf.mxu0
  %v2506 = vadd.f32 %v2492, %v2505
  %2507 = vdwg.mxu0
  %v2508 = vadd.f32 %v2436, %v2476
  %v2509 = vadd.f32 %v2437, %v2504
  %v2510 = vadd.f32 %v2438, %v2478
  %v2511 = vadd.f32 %v2439, %v2506
  %v2512 = vpack.c.bf16 %v2510, %v2508
  %v2513 = vpack.c.bf16 %v2511, %v2509
  %v2514 = vunpack.c.l.bf16 %v2512
  %v2515 = vunpack.c.l.bf16 %v2513
  %v2516 = vunpack.c.h.bf16 %v2512
  %v2517 = vunpack.c.h.bf16 %v2513
  %v2518 = vtanh.pop %v2514
  %v2519 = vtanh.pop %v2515
  %v2520 = vtanh.pop %v2516
  %v2521 = vtanh.pop %v2517
  %v2522 = vpack.c.bf16 %v2520, %v2518
  %v2523 = vpack.c.bf16 %v2521, %v2519
  %v2544 = vunpack.c.l.b16 %v931
  %v2545 = vunpack.c.l.b16 %v932
  %v2546 = vunpack.c.l.b16 %v933
  %v2547 = vunpack.c.l.b16 %v934
  %v2548 = vunpack.c.l.b16 %v935
  %v2549 = vunpack.c.l.b16 %v936
  %v2550 = vunpack.c.l.b16 %v937
  %v2551 = vunpack.c.l.b16 %v938
  %v2552 = vunpack.c.l.b16 %v939
  %v2553 = vunpack.c.l.b16 %v940
  %v2554 = vunpack.c.l.b16 %v941
  %v2555 = vunpack.c.l.b16 %v942
  %v2556 = vunpack.c.l.b16 %v943
  %v2557 = vunpack.c.l.b16 %v944
  %v2558 = vunpack.c.l.b16 %v945
  %v2559 = vunpack.c.l.b16 %v946
  %v2560 = vunpack.c.l.b16 %v947
  %v2561 = vunpack.c.l.b16 %v948
  %v2562 = vunpack.c.l.b16 %v949
  %v2563 = vunpack.c.l.b16 %v950
  %v2564 = vpack.c.b16 %v2545, %v2544
  %v2565 = vpack.c.b16 %v2547, %v2546
  %v2566 = vpack.c.b16 %v2549, %v2548
  %v2567 = vpack.c.b16 %v2551, %v2550
  %v2568 = vpack.c.b16 %v2553, %v2552
  %v2569 = vpack.c.b16 %v2555, %v2554
  %v2570 = vpack.c.b16 %v2557, %v2556
  %v2571 = vpack.c.b16 %v2559, %v2558
  %v2572 = vpack.c.b16 %v2561, %v2560
  %v2573 = vpack.c.b16 %v2563, %v2562
  %v2585 = vsel %vm1845, %v2523, 0
  %2587 = vmatpush.bf16.msra.mxu0 %v2571
  %2588 = vmatpush.bf16.msra.mxu0 %v2570
  %2589 = vmatpush.bf16.msra.mxu0 %v2569
  %2590 = vmatpush.bf16.msra.mxu0 %v2568
  %2591 = vmatpush.bf16.msra.mxu0 %v2567
  %2592 = vmatpush.bf16.msra.mxu0 %v2566
  %2593 = vmatpush.bf16.msra.mxu0 %v2565
  %2594 = vmatpush.bf16.msra.mxu0 %v2564
  %2595 = vmatmul.bf16.gmra.mxu0 %v2522
  %v2596 = vpop.f32.mrf.mxu0
  %v2597 = vadd.f32 0.0, %v2596
  %v2598 = vpop.f32.mrf.mxu0
  %v2599 = vadd.f32 0.0, %v2598
  %2600 = vdwg.mxu0
  %2601 = vmatpush.bf16.msra.mxu0 0
  %2602 = vmatpush.bf16.msra.mxu0 0
  %2603 = vmatpush.bf16.msra.mxu0 0
  %2604 = vmatpush.bf16.msra.mxu0 0
  %2605 = vmatpush.bf16.msra.mxu0 0
  %2606 = vmatpush.bf16.msra.mxu0 0
  %2607 = vmatpush.bf16.msra.mxu0 %v2573
  %2608 = vmatpush.bf16.msra.mxu0 %v2572
  %2609 = vmatmul.bf16.gmra.mxu0 %v2585
  %v2610 = vpop.f32.mrf.mxu0
  %v2611 = vadd.f32 %v2597, %v2610
  %v2612 = vpop.f32.mrf.mxu0
  %v2613 = vadd.f32 %v2599, %v2612
  %2614 = vdwg.mxu0
  %v2615 = vadd.f32 %v2246, %v2611
  %v2616 = vadd.f32 %v2247, %v2613
  %2617 = vmatpush.bf16.msra.mxu0 %v1099
  %2618 = vmatpush.bf16.msra.mxu0 %v1097
  %2619 = vmatpush.bf16.msra.mxu0 %v1095
  %2620 = vmatpush.bf16.msra.mxu0 %v1093
  %2621 = vmatpush.bf16.msra.mxu0 %v1091
  %2622 = vmatpush.bf16.msra.mxu0 %v1089
  %2623 = vmatpush.bf16.msra.mxu0 %v1087
  %2624 = vmatpush.bf16.msra.mxu0 %v1085
  %2625 = vmatmul.bf16.gmra.mxu0 %v2374
  %v2626 = vpop.f32.mrf.mxu0
  %v2627 = vadd.f32 0.0, %v2626
  %v2628 = vpop.f32.mrf.mxu0
  %v2629 = vadd.f32 0.0, %v2628
  %2630 = vdwg.mxu0
  %2631 = vmatpush.bf16.msra.mxu0 0
  %2632 = vmatpush.bf16.msra.mxu0 0
  %2633 = vmatpush.bf16.msra.mxu0 0
  %2634 = vmatpush.bf16.msra.mxu0 0
  %2635 = vmatpush.bf16.msra.mxu0 %v1107
  %2636 = vmatpush.bf16.msra.mxu0 %v1105
  %2637 = vmatpush.bf16.msra.mxu0 %v1103
  %2638 = vmatpush.bf16.msra.mxu0 %v1101
  %2639 = vmatmul.bf16.gmra.mxu0 %v2378
  %v2640 = vpop.f32.mrf.mxu0
  %v2641 = vadd.f32 %v2627, %v2640
  %v2642 = vpop.f32.mrf.mxu0
  %v2643 = vadd.f32 %v2629, %v2642
  %2644 = vdwg.mxu0
  %2645 = vmatpush.bf16.msra.mxu0 %v1100
  %2646 = vmatpush.bf16.msra.mxu0 %v1098
  %2647 = vmatpush.bf16.msra.mxu0 %v1096
  %2648 = vmatpush.bf16.msra.mxu0 %v1094
  %2649 = vmatpush.bf16.msra.mxu0 %v1092
  %2650 = vmatpush.bf16.msra.mxu0 %v1090
  %2651 = vmatpush.bf16.msra.mxu0 %v1088
  %2652 = vmatpush.bf16.msra.mxu0 %v1086
  %2653 = vmatmul.bf16.gmra.mxu0 %v2374
  %v2654 = vpop.f32.mrf.mxu0
  %v2655 = vadd.f32 0.0, %v2654
  %v2656 = vpop.f32.mrf.mxu0
  %v2657 = vadd.f32 0.0, %v2656
  %2658 = vdwg.mxu0
  %2659 = vmatpush.bf16.msra.mxu0 0
  %2660 = vmatpush.bf16.msra.mxu0 0
  %2661 = vmatpush.bf16.msra.mxu0 0
  %2662 = vmatpush.bf16.msra.mxu0 0
  %2663 = vmatpush.bf16.msra.mxu0 %v1108
  %2664 = vmatpush.bf16.msra.mxu0 %v1106
  %2665 = vmatpush.bf16.msra.mxu0 %v1104
  %2666 = vmatpush.bf16.msra.mxu0 %v1102
  %2667 = vmatmul.bf16.gmra.mxu0 %v2378
  %v2668 = vpop.f32.mrf.mxu0
  %v2669 = vadd.f32 %v2655, %v2668
  %v2670 = vpop.f32.mrf.mxu0
  %v2671 = vadd.f32 %v2657, %v2670
  %2672 = vdwg.mxu0
  %v2673 = vadd.f32 %v997, %v2641
  %v2674 = vadd.f32 %v998, %v2669
  %v2675 = vadd.f32 %v997, %v2643
  %v2676 = vadd.f32 %v998, %v2671
  %2677 = vmatpush.bf16.msra.mxu0 %v1292
  %2678 = vmatpush.bf16.msra.mxu0 %v1290
  %2679 = vmatpush.bf16.msra.mxu0 %v1288
  %2680 = vmatpush.bf16.msra.mxu0 %v1286
  %2681 = vmatpush.bf16.msra.mxu0 %v1284
  %2682 = vmatpush.bf16.msra.mxu0 %v1282
  %2683 = vmatpush.bf16.msra.mxu0 %v1280
  %2684 = vmatpush.bf16.msra.mxu0 %v1278
  %2685 = vmatmul.bf16.gmra.mxu0 %v2446
  %v2686 = vpop.f32.mrf.mxu0
  %v2687 = vadd.f32 0.0, %v2686
  %v2688 = vpop.f32.mrf.mxu0
  %v2689 = vadd.f32 0.0, %v2688
  %2690 = vdwg.mxu0
  %2691 = vmatpush.bf16.msra.mxu0 0
  %2692 = vmatpush.bf16.msra.mxu0 0
  %2693 = vmatpush.bf16.msra.mxu0 0
  %2694 = vmatpush.bf16.msra.mxu0 0
  %2695 = vmatpush.bf16.msra.mxu0 %v1300
  %2696 = vmatpush.bf16.msra.mxu0 %v1298
  %2697 = vmatpush.bf16.msra.mxu0 %v1296
  %2698 = vmatpush.bf16.msra.mxu0 %v1294
  %2699 = vmatmul.bf16.gmra.mxu0 %v2450
  %v2700 = vpop.f32.mrf.mxu0
  %v2701 = vadd.f32 %v2687, %v2700
  %v2702 = vpop.f32.mrf.mxu0
  %v2703 = vadd.f32 %v2689, %v2702
  %2704 = vdwg.mxu0
  %2705 = vmatpush.bf16.msra.mxu0 %v1293
  %2706 = vmatpush.bf16.msra.mxu0 %v1291
  %2707 = vmatpush.bf16.msra.mxu0 %v1289
  %2708 = vmatpush.bf16.msra.mxu0 %v1287
  %2709 = vmatpush.bf16.msra.mxu0 %v1285
  %2710 = vmatpush.bf16.msra.mxu0 %v1283
  %2711 = vmatpush.bf16.msra.mxu0 %v1281
  %2712 = vmatpush.bf16.msra.mxu0 %v1279
  %2713 = vmatmul.bf16.gmra.mxu0 %v2446
  %v2714 = vpop.f32.mrf.mxu0
  %v2715 = vadd.f32 0.0, %v2714
  %v2716 = vpop.f32.mrf.mxu0
  %v2717 = vadd.f32 0.0, %v2716
  %2718 = vdwg.mxu0
  %2719 = vmatpush.bf16.msra.mxu0 0
  %2720 = vmatpush.bf16.msra.mxu0 0
  %2721 = vmatpush.bf16.msra.mxu0 0
  %2722 = vmatpush.bf16.msra.mxu0 0
  %2723 = vmatpush.bf16.msra.mxu0 %v1301
  %2724 = vmatpush.bf16.msra.mxu0 %v1299
  %2725 = vmatpush.bf16.msra.mxu0 %v1297
  %2726 = vmatpush.bf16.msra.mxu0 %v1295
  %2727 = vmatmul.bf16.gmra.mxu0 %v2450
  %v2728 = vpop.f32.mrf.mxu0
  %v2729 = vadd.f32 %v2715, %v2728
  %v2730 = vpop.f32.mrf.mxu0
  %v2731 = vadd.f32 %v2717, %v2730
  %2732 = vdwg.mxu0
  %v2733 = vadd.f32 %v2673, %v2701
  %v2734 = vadd.f32 %v2674, %v2729
  %v2735 = vadd.f32 %v2675, %v2703
  %v2736 = vadd.f32 %v2676, %v2731
  %v2739 = vunpack.c.l.b16 %v787
  %v2740 = vunpack.c.h.b16 %v787
  %v2741 = vunpack.c.l.b16 %v788
  %v2742 = vunpack.c.h.b16 %v788
  %v2743 = vpack.c.b16 %v2741, %v2739
  %v2744 = vpack.c.b16 %v2742, %v2740
  %v2747 = vsel %vm1133, %v2744, 0
  %2749 = vmatpush.bf16.msra.mxu0 %v1484
  %2750 = vmatpush.bf16.msra.mxu0 %v1482
  %2751 = vmatpush.bf16.msra.mxu0 %v1480
  %2752 = vmatpush.bf16.msra.mxu0 %v1478
  %2753 = vmatpush.bf16.msra.mxu0 %v1476
  %2754 = vmatpush.bf16.msra.mxu0 %v1474
  %2755 = vmatpush.bf16.msra.mxu0 %v1472
  %2756 = vmatpush.bf16.msra.mxu0 %v1470
  %2757 = vmatmul.bf16.gmra.mxu0 %v2743
  %v2758 = vpop.f32.mrf.mxu0
  %v2759 = vadd.f32 0.0, %v2758
  %v2760 = vpop.f32.mrf.mxu0
  %v2761 = vadd.f32 0.0, %v2760
  %2762 = vdwg.mxu0
  %2763 = vmatpush.bf16.msra.mxu0 0
  %2764 = vmatpush.bf16.msra.mxu0 0
  %2765 = vmatpush.bf16.msra.mxu0 0
  %2766 = vmatpush.bf16.msra.mxu0 0
  %2767 = vmatpush.bf16.msra.mxu0 %v1492
  %2768 = vmatpush.bf16.msra.mxu0 %v1490
  %2769 = vmatpush.bf16.msra.mxu0 %v1488
  %2770 = vmatpush.bf16.msra.mxu0 %v1486
  %2771 = vmatmul.bf16.gmra.mxu0 %v2747
  %v2772 = vpop.f32.mrf.mxu0
  %v2773 = vadd.f32 %v2759, %v2772
  %v2774 = vpop.f32.mrf.mxu0
  %v2775 = vadd.f32 %v2761, %v2774
  %2776 = vdwg.mxu0
  %2777 = vmatpush.bf16.msra.mxu0 %v1485
  %2778 = vmatpush.bf16.msra.mxu0 %v1483
  %2779 = vmatpush.bf16.msra.mxu0 %v1481
  %2780 = vmatpush.bf16.msra.mxu0 %v1479
  %2781 = vmatpush.bf16.msra.mxu0 %v1477
  %2782 = vmatpush.bf16.msra.mxu0 %v1475
  %2783 = vmatpush.bf16.msra.mxu0 %v1473
  %2784 = vmatpush.bf16.msra.mxu0 %v1471
  %2785 = vmatmul.bf16.gmra.mxu0 %v2743
  %v2786 = vpop.f32.mrf.mxu0
  %v2787 = vadd.f32 0.0, %v2786
  %v2788 = vpop.f32.mrf.mxu0
  %v2789 = vadd.f32 0.0, %v2788
  %2790 = vdwg.mxu0
  %2791 = vmatpush.bf16.msra.mxu0 0
  %2792 = vmatpush.bf16.msra.mxu0 0
  %2793 = vmatpush.bf16.msra.mxu0 0
  %2794 = vmatpush.bf16.msra.mxu0 0
  %2795 = vmatpush.bf16.msra.mxu0 %v1493
  %2796 = vmatpush.bf16.msra.mxu0 %v1491
  %2797 = vmatpush.bf16.msra.mxu0 %v1489
  %2798 = vmatpush.bf16.msra.mxu0 %v1487
  %2799 = vmatmul.bf16.gmra.mxu0 %v2747
  %v2800 = vpop.f32.mrf.mxu0
  %v2801 = vadd.f32 %v2787, %v2800
  %v2802 = vpop.f32.mrf.mxu0
  %v2803 = vadd.f32 %v2789, %v2802
  %2804 = vdwg.mxu0
  %v2805 = vadd.f32 %v2733, %v2773
  %v2806 = vadd.f32 %v2734, %v2801
  %v2807 = vadd.f32 %v2735, %v2775
  %v2808 = vadd.f32 %v2736, %v2803
  %v2811 = vunpack.c.l.b16 %v789
  %v2812 = vunpack.c.h.b16 %v789
  %v2813 = vunpack.c.l.b16 %v790
  %v2814 = vunpack.c.h.b16 %v790
  %v2815 = vpack.c.b16 %v2813, %v2811
  %v2816 = vpack.c.b16 %v2814, %v2812
  %v2819 = vsel %vm1133, %v2816, 0
  %2821 = vmatpush.bf16.msra.mxu0 %v1676
  %2822 = vmatpush.bf16.msra.mxu0 %v1674
  %2823 = vmatpush.bf16.msra.mxu0 %v1672
  %2824 = vmatpush.bf16.msra.mxu0 %v1670
  %2825 = vmatpush.bf16.msra.mxu0 %v1668
  %2826 = vmatpush.bf16.msra.mxu0 %v1666
  %2827 = vmatpush.bf16.msra.mxu0 %v1664
  %2828 = vmatpush.bf16.msra.mxu0 %v1662
  %2829 = vmatmul.bf16.gmra.mxu0 %v2815
  %v2830 = vpop.f32.mrf.mxu0
  %v2831 = vadd.f32 0.0, %v2830
  %v2832 = vpop.f32.mrf.mxu0
  %v2833 = vadd.f32 0.0, %v2832
  %2834 = vdwg.mxu0
  %2835 = vmatpush.bf16.msra.mxu0 0
  %2836 = vmatpush.bf16.msra.mxu0 0
  %2837 = vmatpush.bf16.msra.mxu0 0
  %2838 = vmatpush.bf16.msra.mxu0 0
  %2839 = vmatpush.bf16.msra.mxu0 %v1684
  %2840 = vmatpush.bf16.msra.mxu0 %v1682
  %2841 = vmatpush.bf16.msra.mxu0 %v1680
  %2842 = vmatpush.bf16.msra.mxu0 %v1678
  %2843 = vmatmul.bf16.gmra.mxu0 %v2819
  %v2844 = vpop.f32.mrf.mxu0
  %v2845 = vadd.f32 %v2831, %v2844
  %v2846 = vpop.f32.mrf.mxu0
  %v2847 = vadd.f32 %v2833, %v2846
  %2848 = vdwg.mxu0
  %2849 = vmatpush.bf16.msra.mxu0 %v1677
  %2850 = vmatpush.bf16.msra.mxu0 %v1675
  %2851 = vmatpush.bf16.msra.mxu0 %v1673
  %2852 = vmatpush.bf16.msra.mxu0 %v1671
  %2853 = vmatpush.bf16.msra.mxu0 %v1669
  %2854 = vmatpush.bf16.msra.mxu0 %v1667
  %2855 = vmatpush.bf16.msra.mxu0 %v1665
  %2856 = vmatpush.bf16.msra.mxu0 %v1663
  %2857 = vmatmul.bf16.gmra.mxu0 %v2815
  %v2858 = vpop.f32.mrf.mxu0
  %v2859 = vadd.f32 0.0, %v2858
  %v2860 = vpop.f32.mrf.mxu0
  %v2861 = vadd.f32 0.0, %v2860
  %2862 = vdwg.mxu0
  %2863 = vmatpush.bf16.msra.mxu0 0
  %2864 = vmatpush.bf16.msra.mxu0 0
  %2865 = vmatpush.bf16.msra.mxu0 0
  %2866 = vmatpush.bf16.msra.mxu0 0
  %2867 = vmatpush.bf16.msra.mxu0 %v1685
  %2868 = vmatpush.bf16.msra.mxu0 %v1683
  %2869 = vmatpush.bf16.msra.mxu0 %v1681
  %2870 = vmatpush.bf16.msra.mxu0 %v1679
  %2871 = vmatmul.bf16.gmra.mxu0 %v2819
  %v2872 = vpop.f32.mrf.mxu0
  %v2873 = vadd.f32 %v2859, %v2872
  %v2874 = vpop.f32.mrf.mxu0
  %v2875 = vadd.f32 %v2861, %v2874
  %2876 = vdwg.mxu0
  %v2877 = vadd.f32 %v2805, %v2845
  %v2878 = vadd.f32 %v2806, %v2873
  %v2879 = vadd.f32 %v2807, %v2847
  %v2880 = vadd.f32 %v2808, %v2875
  %v2881 = vpack.c.bf16 %v2879, %v2877
  %v2882 = vpack.c.bf16 %v2880, %v2878
  %v2883 = vunpack.c.l.bf16 %v2881
  %v2884 = vunpack.c.l.bf16 %v2882
  %v2885 = vunpack.c.h.bf16 %v2881
  %v2886 = vunpack.c.h.bf16 %v2882
  %v2887 = vtanh.pop %v2883
  %v2888 = vtanh.pop %v2884
  %v2889 = vtanh.pop %v2885
  %v2890 = vtanh.pop %v2886
  %v2891 = vpack.c.bf16 %v2889, %v2887
  %v2892 = vpack.c.bf16 %v2890, %v2888
  %v2913 = vunpack.c.l.b16 %v951
  %v2914 = vunpack.c.l.b16 %v952
  %v2915 = vunpack.c.l.b16 %v953
  %v2916 = vunpack.c.l.b16 %v954
  %v2917 = vunpack.c.l.b16 %v955
  %v2918 = vunpack.c.l.b16 %v956
  %v2919 = vunpack.c.l.b16 %v957
  %v2920 = vunpack.c.l.b16 %v958
  %v2921 = vunpack.c.l.b16 %v959
  %v2922 = vunpack.c.l.b16 %v960
  %v2923 = vunpack.c.l.b16 %v961
  %v2924 = vunpack.c.l.b16 %v962
  %v2925 = vunpack.c.l.b16 %v963
  %v2926 = vunpack.c.l.b16 %v964
  %v2927 = vunpack.c.l.b16 %v965
  %v2928 = vunpack.c.l.b16 %v966
  %v2929 = vunpack.c.l.b16 %v967
  %v2930 = vunpack.c.l.b16 %v968
  %v2931 = vunpack.c.l.b16 %v969
  %v2932 = vunpack.c.l.b16 %v970
  %v2933 = vpack.c.b16 %v2914, %v2913
  %v2934 = vpack.c.b16 %v2916, %v2915
  %v2935 = vpack.c.b16 %v2918, %v2917
  %v2936 = vpack.c.b16 %v2920, %v2919
  %v2937 = vpack.c.b16 %v2922, %v2921
  %v2938 = vpack.c.b16 %v2924, %v2923
  %v2939 = vpack.c.b16 %v2926, %v2925
  %v2940 = vpack.c.b16 %v2928, %v2927
  %v2941 = vpack.c.b16 %v2930, %v2929
  %v2942 = vpack.c.b16 %v2932, %v2931
  %v2954 = vsel %vm1845, %v2892, 0
  %2956 = vmatpush.bf16.msra.mxu0 %v2940
  %2957 = vmatpush.bf16.msra.mxu0 %v2939
  %2958 = vmatpush.bf16.msra.mxu0 %v2938
  %2959 = vmatpush.bf16.msra.mxu0 %v2937
  %2960 = vmatpush.bf16.msra.mxu0 %v2936
  %2961 = vmatpush.bf16.msra.mxu0 %v2935
  %2962 = vmatpush.bf16.msra.mxu0 %v2934
  %2963 = vmatpush.bf16.msra.mxu0 %v2933
  %2964 = vmatmul.bf16.gmra.mxu0 %v2891
  %v2965 = vpop.f32.mrf.mxu0
  %v2966 = vadd.f32 0.0, %v2965
  %v2967 = vpop.f32.mrf.mxu0
  %v2968 = vadd.f32 0.0, %v2967
  %2969 = vdwg.mxu0
  %2970 = vmatpush.bf16.msra.mxu0 0
  %2971 = vmatpush.bf16.msra.mxu0 0
  %2972 = vmatpush.bf16.msra.mxu0 0
  %2973 = vmatpush.bf16.msra.mxu0 0
  %2974 = vmatpush.bf16.msra.mxu0 0
  %2975 = vmatpush.bf16.msra.mxu0 0
  %2976 = vmatpush.bf16.msra.mxu0 %v2942
  %2977 = vmatpush.bf16.msra.mxu0 %v2941
  %2978 = vmatmul.bf16.gmra.mxu0 %v2954
  %v2979 = vpop.f32.mrf.mxu0
  %v2980 = vadd.f32 %v2966, %v2979
  %v2981 = vpop.f32.mrf.mxu0
  %v2982 = vadd.f32 %v2968, %v2981
  %2983 = vdwg.mxu0
  %v2984 = vadd.f32 %v2615, %v2980
  %v2985 = vadd.f32 %v2616, %v2982
  %2986 = vmatpush.bf16.msra.mxu0 %v1099
  %2987 = vmatpush.bf16.msra.mxu0 %v1097
  %2988 = vmatpush.bf16.msra.mxu0 %v1095
  %2989 = vmatpush.bf16.msra.mxu0 %v1093
  %2990 = vmatpush.bf16.msra.mxu0 %v1091
  %2991 = vmatpush.bf16.msra.mxu0 %v1089
  %2992 = vmatpush.bf16.msra.mxu0 %v1087
  %2993 = vmatpush.bf16.msra.mxu0 %v1085
  %2994 = vmatmul.bf16.gmra.mxu0 %v2743
  %v2995 = vpop.f32.mrf.mxu0
  %v2996 = vadd.f32 0.0, %v2995
  %v2997 = vpop.f32.mrf.mxu0
  %v2998 = vadd.f32 0.0, %v2997
  %2999 = vdwg.mxu0
  %3000 = vmatpush.bf16.msra.mxu0 0
  %3001 = vmatpush.bf16.msra.mxu0 0
  %3002 = vmatpush.bf16.msra.mxu0 0
  %3003 = vmatpush.bf16.msra.mxu0 0
  %3004 = vmatpush.bf16.msra.mxu0 %v1107
  %3005 = vmatpush.bf16.msra.mxu0 %v1105
  %3006 = vmatpush.bf16.msra.mxu0 %v1103
  %3007 = vmatpush.bf16.msra.mxu0 %v1101
  %3008 = vmatmul.bf16.gmra.mxu0 %v2747
  %v3009 = vpop.f32.mrf.mxu0
  %v3010 = vadd.f32 %v2996, %v3009
  %v3011 = vpop.f32.mrf.mxu0
  %v3012 = vadd.f32 %v2998, %v3011
  %3013 = vdwg.mxu0
  %3014 = vmatpush.bf16.msra.mxu0 %v1100
  %3015 = vmatpush.bf16.msra.mxu0 %v1098
  %3016 = vmatpush.bf16.msra.mxu0 %v1096
  %3017 = vmatpush.bf16.msra.mxu0 %v1094
  %3018 = vmatpush.bf16.msra.mxu0 %v1092
  %3019 = vmatpush.bf16.msra.mxu0 %v1090
  %3020 = vmatpush.bf16.msra.mxu0 %v1088
  %3021 = vmatpush.bf16.msra.mxu0 %v1086
  %3022 = vmatmul.bf16.gmra.mxu0 %v2743
  %v3023 = vpop.f32.mrf.mxu0
  %v3024 = vadd.f32 0.0, %v3023
  %v3025 = vpop.f32.mrf.mxu0
  %v3026 = vadd.f32 0.0, %v3025
  %3027 = vdwg.mxu0
  %3028 = vmatpush.bf16.msra.mxu0 0
  %3029 = vmatpush.bf16.msra.mxu0 0
  %3030 = vmatpush.bf16.msra.mxu0 0
  %3031 = vmatpush.bf16.msra.mxu0 0
  %3032 = vmatpush.bf16.msra.mxu0 %v1108
  %3033 = vmatpush.bf16.msra.mxu0 %v1106
  %3034 = vmatpush.bf16.msra.mxu0 %v1104
  %3035 = vmatpush.bf16.msra.mxu0 %v1102
  %3036 = vmatmul.bf16.gmra.mxu0 %v2747
  %v3037 = vpop.f32.mrf.mxu0
  %v3038 = vadd.f32 %v3024, %v3037
  %v3039 = vpop.f32.mrf.mxu0
  %v3040 = vadd.f32 %v3026, %v3039
  %3041 = vdwg.mxu0
  %v3042 = vadd.f32 %v997, %v3010
  %v3043 = vadd.f32 %v998, %v3038
  %v3044 = vadd.f32 %v997, %v3012
  %v3045 = vadd.f32 %v998, %v3040
  %3046 = vmatpush.bf16.msra.mxu0 %v1292
  %3047 = vmatpush.bf16.msra.mxu0 %v1290
  %3048 = vmatpush.bf16.msra.mxu0 %v1288
  %3049 = vmatpush.bf16.msra.mxu0 %v1286
  %3050 = vmatpush.bf16.msra.mxu0 %v1284
  %3051 = vmatpush.bf16.msra.mxu0 %v1282
  %3052 = vmatpush.bf16.msra.mxu0 %v1280
  %3053 = vmatpush.bf16.msra.mxu0 %v1278
  %3054 = vmatmul.bf16.gmra.mxu0 %v2815
  %v3055 = vpop.f32.mrf.mxu0
  %v3056 = vadd.f32 0.0, %v3055
  %v3057 = vpop.f32.mrf.mxu0
  %v3058 = vadd.f32 0.0, %v3057
  %3059 = vdwg.mxu0
  %3060 = vmatpush.bf16.msra.mxu0 0
  %3061 = vmatpush.bf16.msra.mxu0 0
  %3062 = vmatpush.bf16.msra.mxu0 0
  %3063 = vmatpush.bf16.msra.mxu0 0
  %3064 = vmatpush.bf16.msra.mxu0 %v1300
  %3065 = vmatpush.bf16.msra.mxu0 %v1298
  %3066 = vmatpush.bf16.msra.mxu0 %v1296
  %3067 = vmatpush.bf16.msra.mxu0 %v1294
  %3068 = vmatmul.bf16.gmra.mxu0 %v2819
  %v3069 = vpop.f32.mrf.mxu0
  %v3070 = vadd.f32 %v3056, %v3069
  %v3071 = vpop.f32.mrf.mxu0
  %v3072 = vadd.f32 %v3058, %v3071
  %3073 = vdwg.mxu0
  %3074 = vmatpush.bf16.msra.mxu0 %v1293
  %3075 = vmatpush.bf16.msra.mxu0 %v1291
  %3076 = vmatpush.bf16.msra.mxu0 %v1289
  %3077 = vmatpush.bf16.msra.mxu0 %v1287
  %3078 = vmatpush.bf16.msra.mxu0 %v1285
  %3079 = vmatpush.bf16.msra.mxu0 %v1283
  %3080 = vmatpush.bf16.msra.mxu0 %v1281
  %3081 = vmatpush.bf16.msra.mxu0 %v1279
  %3082 = vmatmul.bf16.gmra.mxu0 %v2815
  %v3083 = vpop.f32.mrf.mxu0
  %v3084 = vadd.f32 0.0, %v3083
  %v3085 = vpop.f32.mrf.mxu0
  %v3086 = vadd.f32 0.0, %v3085
  %3087 = vdwg.mxu0
  %3088 = vmatpush.bf16.msra.mxu0 0
  %3089 = vmatpush.bf16.msra.mxu0 0
  %3090 = vmatpush.bf16.msra.mxu0 0
  %3091 = vmatpush.bf16.msra.mxu0 0
  %3092 = vmatpush.bf16.msra.mxu0 %v1301
  %3093 = vmatpush.bf16.msra.mxu0 %v1299
  %3094 = vmatpush.bf16.msra.mxu0 %v1297
  %3095 = vmatpush.bf16.msra.mxu0 %v1295
  %3096 = vmatmul.bf16.gmra.mxu0 %v2819
  %v3097 = vpop.f32.mrf.mxu0
  %v3098 = vadd.f32 %v3084, %v3097
  %v3099 = vpop.f32.mrf.mxu0
  %v3100 = vadd.f32 %v3086, %v3099
  %3101 = vdwg.mxu0
  %v3102 = vadd.f32 %v3042, %v3070
  %v3103 = vadd.f32 %v3043, %v3098
  %v3104 = vadd.f32 %v3044, %v3072
  %v3105 = vadd.f32 %v3045, %v3100
  %v3108 = vunpack.c.l.b16 %v791
  %v3109 = vunpack.c.h.b16 %v791
  %v3110 = vunpack.c.l.b16 %v792
  %v3111 = vunpack.c.h.b16 %v792
  %v3112 = vpack.c.b16 %v3110, %v3108
  %v3113 = vpack.c.b16 %v3111, %v3109
  %v3116 = vsel %vm1133, %v3113, 0
  %3118 = vmatpush.bf16.msra.mxu0 %v1484
  %3119 = vmatpush.bf16.msra.mxu0 %v1482
  %3120 = vmatpush.bf16.msra.mxu0 %v1480
  %3121 = vmatpush.bf16.msra.mxu0 %v1478
  %3122 = vmatpush.bf16.msra.mxu0 %v1476
  %3123 = vmatpush.bf16.msra.mxu0 %v1474
  %3124 = vmatpush.bf16.msra.mxu0 %v1472
  %3125 = vmatpush.bf16.msra.mxu0 %v1470
  %3126 = vmatmul.bf16.gmra.mxu0 %v3112
  %v3127 = vpop.f32.mrf.mxu0
  %v3128 = vadd.f32 0.0, %v3127
  %v3129 = vpop.f32.mrf.mxu0
  %v3130 = vadd.f32 0.0, %v3129
  %3131 = vdwg.mxu0
  %3132 = vmatpush.bf16.msra.mxu0 0
  %3133 = vmatpush.bf16.msra.mxu0 0
  %3134 = vmatpush.bf16.msra.mxu0 0
  %3135 = vmatpush.bf16.msra.mxu0 0
  %3136 = vmatpush.bf16.msra.mxu0 %v1492
  %3137 = vmatpush.bf16.msra.mxu0 %v1490
  %3138 = vmatpush.bf16.msra.mxu0 %v1488
  %3139 = vmatpush.bf16.msra.mxu0 %v1486
  %3140 = vmatmul.bf16.gmra.mxu0 %v3116
  %v3141 = vpop.f32.mrf.mxu0
  %v3142 = vadd.f32 %v3128, %v3141
  %v3143 = vpop.f32.mrf.mxu0
  %v3144 = vadd.f32 %v3130, %v3143
  %3145 = vdwg.mxu0
  %3146 = vmatpush.bf16.msra.mxu0 %v1485
  %3147 = vmatpush.bf16.msra.mxu0 %v1483
  %3148 = vmatpush.bf16.msra.mxu0 %v1481
  %3149 = vmatpush.bf16.msra.mxu0 %v1479
  %3150 = vmatpush.bf16.msra.mxu0 %v1477
  %3151 = vmatpush.bf16.msra.mxu0 %v1475
  %3152 = vmatpush.bf16.msra.mxu0 %v1473
  %3153 = vmatpush.bf16.msra.mxu0 %v1471
  %3154 = vmatmul.bf16.gmra.mxu0 %v3112
  %v3155 = vpop.f32.mrf.mxu0
  %v3156 = vadd.f32 0.0, %v3155
  %v3157 = vpop.f32.mrf.mxu0
  %v3158 = vadd.f32 0.0, %v3157
  %3159 = vdwg.mxu0
  %3160 = vmatpush.bf16.msra.mxu0 0
  %3161 = vmatpush.bf16.msra.mxu0 0
  %3162 = vmatpush.bf16.msra.mxu0 0
  %3163 = vmatpush.bf16.msra.mxu0 0
  %3164 = vmatpush.bf16.msra.mxu0 %v1493
  %3165 = vmatpush.bf16.msra.mxu0 %v1491
  %3166 = vmatpush.bf16.msra.mxu0 %v1489
  %3167 = vmatpush.bf16.msra.mxu0 %v1487
  %3168 = vmatmul.bf16.gmra.mxu0 %v3116
  %v3169 = vpop.f32.mrf.mxu0
  %v3170 = vadd.f32 %v3156, %v3169
  %v3171 = vpop.f32.mrf.mxu0
  %v3172 = vadd.f32 %v3158, %v3171
  %3173 = vdwg.mxu0
  %v3174 = vadd.f32 %v3102, %v3142
  %v3175 = vadd.f32 %v3103, %v3170
  %v3176 = vadd.f32 %v3104, %v3144
  %v3177 = vadd.f32 %v3105, %v3172
  %v3180 = vunpack.c.l.b16 %v793
  %v3181 = vunpack.c.h.b16 %v793
  %v3182 = vunpack.c.l.b16 %v794
  %v3183 = vunpack.c.h.b16 %v794
  %v3184 = vpack.c.b16 %v3182, %v3180
  %v3185 = vpack.c.b16 %v3183, %v3181
  %v3188 = vsel %vm1133, %v3185, 0
  %3190 = vmatpush.bf16.msra.mxu0 %v1676
  %3191 = vmatpush.bf16.msra.mxu0 %v1674
  %3192 = vmatpush.bf16.msra.mxu0 %v1672
  %3193 = vmatpush.bf16.msra.mxu0 %v1670
  %3194 = vmatpush.bf16.msra.mxu0 %v1668
  %3195 = vmatpush.bf16.msra.mxu0 %v1666
  %3196 = vmatpush.bf16.msra.mxu0 %v1664
  %3197 = vmatpush.bf16.msra.mxu0 %v1662
  %3198 = vmatmul.bf16.gmra.mxu0 %v3184
  %v3199 = vpop.f32.mrf.mxu0
  %v3200 = vadd.f32 0.0, %v3199
  %v3201 = vpop.f32.mrf.mxu0
  %v3202 = vadd.f32 0.0, %v3201
  %3203 = vdwg.mxu0
  %3204 = vmatpush.bf16.msra.mxu0 0
  %3205 = vmatpush.bf16.msra.mxu0 0
  %3206 = vmatpush.bf16.msra.mxu0 0
  %3207 = vmatpush.bf16.msra.mxu0 0
  %3208 = vmatpush.bf16.msra.mxu0 %v1684
  %3209 = vmatpush.bf16.msra.mxu0 %v1682
  %3210 = vmatpush.bf16.msra.mxu0 %v1680
  %3211 = vmatpush.bf16.msra.mxu0 %v1678
  %3212 = vmatmul.bf16.gmra.mxu0 %v3188
  %v3213 = vpop.f32.mrf.mxu0
  %v3214 = vadd.f32 %v3200, %v3213
  %v3215 = vpop.f32.mrf.mxu0
  %v3216 = vadd.f32 %v3202, %v3215
  %3217 = vdwg.mxu0
  %3218 = vmatpush.bf16.msra.mxu0 %v1677
  %3219 = vmatpush.bf16.msra.mxu0 %v1675
  %3220 = vmatpush.bf16.msra.mxu0 %v1673
  %3221 = vmatpush.bf16.msra.mxu0 %v1671
  %3222 = vmatpush.bf16.msra.mxu0 %v1669
  %3223 = vmatpush.bf16.msra.mxu0 %v1667
  %3224 = vmatpush.bf16.msra.mxu0 %v1665
  %3225 = vmatpush.bf16.msra.mxu0 %v1663
  %3226 = vmatmul.bf16.gmra.mxu0 %v3184
  %v3227 = vpop.f32.mrf.mxu0
  %v3228 = vadd.f32 0.0, %v3227
  %v3229 = vpop.f32.mrf.mxu0
  %v3230 = vadd.f32 0.0, %v3229
  %3231 = vdwg.mxu0
  %3232 = vmatpush.bf16.msra.mxu0 0
  %3233 = vmatpush.bf16.msra.mxu0 0
  %3234 = vmatpush.bf16.msra.mxu0 0
  %3235 = vmatpush.bf16.msra.mxu0 0
  %3236 = vmatpush.bf16.msra.mxu0 %v1685
  %3237 = vmatpush.bf16.msra.mxu0 %v1683
  %3238 = vmatpush.bf16.msra.mxu0 %v1681
  %3239 = vmatpush.bf16.msra.mxu0 %v1679
  %3240 = vmatmul.bf16.gmra.mxu0 %v3188
  %v3241 = vpop.f32.mrf.mxu0
  %v3242 = vadd.f32 %v3228, %v3241
  %v3243 = vpop.f32.mrf.mxu0
  %v3244 = vadd.f32 %v3230, %v3243
  %3245 = vdwg.mxu0
  %v3246 = vadd.f32 %v3174, %v3214
  %v3247 = vadd.f32 %v3175, %v3242
  %v3248 = vadd.f32 %v3176, %v3216
  %v3249 = vadd.f32 %v3177, %v3244
  %v3250 = vpack.c.bf16 %v3248, %v3246
  %v3251 = vpack.c.bf16 %v3249, %v3247
  %v3252 = vunpack.c.l.bf16 %v3250
  %v3253 = vunpack.c.l.bf16 %v3251
  %v3254 = vunpack.c.h.bf16 %v3250
  %v3255 = vunpack.c.h.bf16 %v3251
  %v3256 = vtanh.pop %v3252
  %v3257 = vtanh.pop %v3253
  %v3258 = vtanh.pop %v3254
  %v3259 = vtanh.pop %v3255
  %v3260 = vpack.c.bf16 %v3258, %v3256
  %v3261 = vpack.c.bf16 %v3259, %v3257
  %v3282 = vunpack.c.l.b16 %v971
  %v3283 = vunpack.c.l.b16 %v972
  %v3284 = vunpack.c.l.b16 %v973
  %v3285 = vunpack.c.l.b16 %v974
  %v3286 = vunpack.c.l.b16 %v975
  %v3287 = vunpack.c.l.b16 %v976
  %v3288 = vunpack.c.l.b16 %v977
  %v3289 = vunpack.c.l.b16 %v978
  %v3290 = vunpack.c.l.b16 %v979
  %v3291 = vunpack.c.l.b16 %v980
  %v3292 = vunpack.c.l.b16 %v981
  %v3293 = vunpack.c.l.b16 %v982
  %v3294 = vunpack.c.l.b16 %v983
  %v3295 = vunpack.c.l.b16 %v984
  %v3296 = vunpack.c.l.b16 %v985
  %v3297 = vunpack.c.l.b16 %v986
  %v3298 = vunpack.c.l.b16 %v987
  %v3299 = vunpack.c.l.b16 %v988
  %v3300 = vunpack.c.l.b16 %v989
  %v3301 = vunpack.c.l.b16 %v990
  %v3302 = vpack.c.b16 %v3283, %v3282
  %v3303 = vpack.c.b16 %v3285, %v3284
  %v3304 = vpack.c.b16 %v3287, %v3286
  %v3305 = vpack.c.b16 %v3289, %v3288
  %v3306 = vpack.c.b16 %v3291, %v3290
  %v3307 = vpack.c.b16 %v3293, %v3292
  %v3308 = vpack.c.b16 %v3295, %v3294
  %v3309 = vpack.c.b16 %v3297, %v3296
  %v3310 = vpack.c.b16 %v3299, %v3298
  %v3311 = vpack.c.b16 %v3301, %v3300
  %v3323 = vsel %vm1845, %v3261, 0
  %3325 = vmatpush.bf16.msra.mxu0 %v3309
  %3326 = vmatpush.bf16.msra.mxu0 %v3308
  %3327 = vmatpush.bf16.msra.mxu0 %v3307
  %3328 = vmatpush.bf16.msra.mxu0 %v3306
  %3329 = vmatpush.bf16.msra.mxu0 %v3305
  %3330 = vmatpush.bf16.msra.mxu0 %v3304
  %3331 = vmatpush.bf16.msra.mxu0 %v3303
  %3332 = vmatpush.bf16.msra.mxu0 %v3302
  %3333 = vmatmul.bf16.gmra.mxu0 %v3260
  %v3334 = vpop.f32.mrf.mxu0
  %v3335 = vadd.f32 0.0, %v3334
  %v3336 = vpop.f32.mrf.mxu0
  %v3337 = vadd.f32 0.0, %v3336
  %3338 = vdwg.mxu0
  %3339 = vmatpush.bf16.msra.mxu0 0
  %3340 = vmatpush.bf16.msra.mxu0 0
  %3341 = vmatpush.bf16.msra.mxu0 0
  %3342 = vmatpush.bf16.msra.mxu0 0
  %3343 = vmatpush.bf16.msra.mxu0 0
  %3344 = vmatpush.bf16.msra.mxu0 0
  %3345 = vmatpush.bf16.msra.mxu0 %v3311
  %3346 = vmatpush.bf16.msra.mxu0 %v3310
  %3347 = vmatmul.bf16.gmra.mxu0 %v3323
  %v3348 = vpop.f32.mrf.mxu0
  %v3349 = vadd.f32 %v3335, %v3348
  %v3350 = vpop.f32.mrf.mxu0
  %v3351 = vadd.f32 %v3337, %v3350
  %3352 = vdwg.mxu0
  %v3353 = vadd.f32 %v2984, %v3349
  %v3354 = vadd.f32 %v2985, %v3351
  %v3355 = vpack.c.bf16 %v3354, %v3353
  %v3356 = vunpack.c.l.bf16 %v3355
  %v3357 = vunpack.c.h.bf16 %v3355
  %v3358 = vtanh.pop %v3356
  %v3359 = vtanh.pop %v3357
  %v3360 = vpack.c.bf16 %v3359, %v3358
  %v3361 = vld [vmem:[%s7] sm:$0xf]
  %v3362 = vld [vmem:[%s7 + $0x4] sm:$0xf]
  %v3363 = vld [vmem:[%s7 + $0x8] sm:$0xf]
  %v3364 = vld [vmem:[%s7 + $0xc] sm:$0xf]
  %v3365 = vld [vmem:[%s8] sm:$0x1]
  %v3367 = vperm.slane %v3365, 0
  %v3373 = vunpack.c.l.b16 %v3361
  %v3374 = vunpack.c.l.b16 %v3362
  %v3375 = vunpack.c.l.b16 %v3363
  %v3376 = vunpack.c.l.b16 %v3364
  %v3377 = vpack.c.b16 %v3374, %v3373
  %v3378 = vpack.c.b16 %v3376, %v3375
  %v3382 = vsel %vm1845, %v3360, 0
  %3384 = vmatpush.bf16.msra.mxu0 0
  %3385 = vmatpush.bf16.msra.mxu0 0
  %3386 = vmatpush.bf16.msra.mxu0 0
  %3387 = vmatpush.bf16.msra.mxu0 0
  %3388 = vmatpush.bf16.msra.mxu0 0
  %3389 = vmatpush.bf16.msra.mxu0 0
  %3390 = vmatpush.bf16.msra.mxu0 %v3378
  %3391 = vmatpush.bf16.msra.mxu0 %v3377
  %3392 = vmatmul.bf16.gmra.mxu0 %v3382
  %v3393 = vpop.f32.mrf.mxu0
  %v3394 = vadd.f32 %v3367, %v3393
  %v3395 = vpop.f32.mrf.mxu0
  %v3396 = vadd.f32 %v3367, %v3395
  %3397 = vdwg.mxu0
  %3398 = vst [vmem:[%s9] sm:$0xff] %v3394
  %3399 = vst [vmem:[%s9 + $0x8] sm:$0xff] %v3396
  // Predicated region
  $region38: #{convnet_forward.1} parent=0 // pred_check
    _
  $region39: #{convnet_forward.1} parent=0 // pred_check_branch
    %3401 = sbr.rel (0) target = $region41
  $region40: #{convnet_forward.1} parent=0 // pred_region
    _
  $region41: #{convnet_forward.1} parent=0 // pred_fallthru
    _
  // Predicated region
  $region42: #{convnet_forward.1} parent=0 // pred_check
    _
  $region43: #{convnet_forward.1} parent=0 // pred_check_branch
    %3403 = sbr.rel (0) target = $region45
  $region44: #{convnet_forward.1} parent=0 // pred_region
    _
  $region45: #{convnet_forward.1} parent=0 // pred_fallthru
    _

</llo_original>
